<compile_context>
chip_gen: v5e
topology: v5e:2x2
jax: 0.10.0
libtpu: 0.0.40
codegen_flags: <defaults>
</compile_context>

<pallas_src>
import functools

import jax
import jax.numpy as jnp
from jax import lax
from jax.experimental import pallas as pl
from jax.experimental.pallas import tpu as pltpu


def _round_up(n, m):
    return ((n + m - 1) // m) * m


def _pad_hidden_weight(w, H, Hp):
    """(..., H, 4H) -> (..., Hp, 4*Hp) with zero padding per gate block."""
    lead = w.shape[:-2]
    w = w.reshape(*lead, H, 4, H)
    pads = [(0, 0)] * len(lead) + [(0, Hp - H), (0, 0), (0, Hp - H)]
    w = jnp.pad(w, pads)
    return w.reshape(*lead, Hp, 4 * Hp)


def _pad_gate_vec(b, H, Hp):
    """(..., 4H) -> (..., 4*Hp) with zero padding per gate block."""
    lead = b.shape[:-1]
    b = b.reshape(*lead, 4, H)
    pads = [(0, 0)] * len(lead) + [(0, 0), (0, Hp - H)]
    b = jnp.pad(b, pads)
    return b.reshape(*lead, 4 * Hp)


def _make_lstm_kernel(num_layers, hidden_pad, time_chunk, batch):
    L, Hp, T, B = num_layers, hidden_pad, time_chunk, batch
    has_rest = L > 1

    def kernel(*refs):
        if has_rest:
            (gx_ref, wrest_ref, whh_ref, brest_ref,
             out_ref, hlast_ref, clast_ref, h_scr, c_scr) = refs
        else:
            (gx_ref, whh_ref,
             out_ref, hlast_ref, clast_ref, h_scr, c_scr) = refs
            wrest_ref = brest_ref = None

        chunk = pl.program_id(0)

        # Zero the carried (h, c) state at the first chunk only.
        @pl.when(chunk == 0)
        def _():
            h_scr[...] = jnp.zeros_like(h_scr)
            c_scr[...] = jnp.zeros_like(c_scr)

        # Hoist weight / bias loads (and the bias broadcast) out of the
        # per-timestep loop. Weight blocks have constant block indices, so
        # they are resident in VMEM across the whole grid.
        whh = [whh_ref[i] for i in range(L)]                      # (Hp, 4Hp)
        if has_rest:
            wrest = [wrest_ref[i] for i in range(L - 1)]          # (Hp, 4Hp)
            brest = [jnp.broadcast_to(brest_ref[pl.ds(i, 1), :], (B, 4 * Hp))
                     for i in range(L - 1)]
        else:
            wrest = brest = None

        h_init = tuple(h_scr[i] for i in range(L))
        c_init = tuple(c_scr[i] for i in range(L))

        def step(t, carry):
            hs, cs = carry
            hs, cs = list(hs), list(cs)
            # Precomputed layer-0 pre-activations: x[t] @ W_ih0 + b_hh0,
            # already in the gate-block-padded (B, 4*Hp) layout.
            x_gates = gx_ref[t]
            for i in range(L):
                if i == 0:
                    gates = x_gates + jnp.dot(
                        hs[0], whh[0], preferred_element_type=jnp.float32)
                else:
                    gates = (jnp.dot(hs[i - 1], wrest[i - 1],
                                     preferred_element_type=jnp.float32)
                             + jnp.dot(hs[i], whh[i],
                                       preferred_element_type=jnp.float32)
                             + brest[i - 1])
                # Each slice is a full 128-lane-aligned block (Hp % 128 == 0).
                ig = jax.nn.sigmoid(gates[:, 0 * Hp:1 * Hp])
                fg = jax.nn.sigmoid(gates[:, 1 * Hp:2 * Hp])
                gg = jnp.tanh(gates[:, 2 * Hp:3 * Hp])
                og = jax.nn.sigmoid(gates[:, 3 * Hp:4 * Hp])
                c_new = fg * cs[i] + ig * gg
                h_new = og * jnp.tanh(c_new)
                hs[i], cs[i] = h_new, c_new
            # Lane-dense (B, Hp) store of the last layer's hidden state.
            out_ref[t] = hs[L - 1].astype(out_ref.dtype)
            return tuple(hs), tuple(cs)

        hs, cs = lax.fori_loop(0, T, step, (h_init, c_init), unroll=True)

        # Persist state for the next chunk.
        for i in range(L):
            h_scr[i] = hs[i]
            c_scr[i] = cs[i]

        # Only the final chunk's values matter for the resident outputs.
        @pl.when(chunk == pl.num_programs(0) - 1)
        def _():
            hlast_ref[...] = hs[L - 1].astype(hlast_ref.dtype)
            clast_ref[...] = cs[L - 1].astype(clast_ref.dtype)

    return kernel


def lstm_forward(x, wih0, wih_rest, whh, bias, *, hidden_size, num_layers,
                 time_chunk=None):
    """x: (B, S, I) batch-major (PyTorch convention). Returns (outputs, (h, c))."""
    B, S, I = x.shape
    H = hidden_size
    L = num_layers
    Hp = _round_up(H, 128)            # lane-dense padded hidden size
    has_rest = L > 1
    f32 = jnp.float32

    T = S if time_chunk is None else int(time_chunk)
    if T <= 0 or S % T != 0:
        T = S                         # simple fallback: whole sequence per chunk
    n_chunks = S // T

    # ---- Hoisted, fully parallel layer-0 input projection (+ its bias), laid
    #      out gate-block padded to Hp lanes, time-major: (S, B, 4*Hp).
    gx = jnp.einsum('bsi,ig->bsg', x.astype(f32), wih0.astype(f32)) \
        + bias[0].astype(f32)
    gx = gx.reshape(B, S, 4, H)
    gx = jnp.pad(gx, ((0, 0), (0, 0), (0, 0), (0, Hp - H)))
    gx = jnp.transpose(gx.reshape(B, S, 4 * Hp), (1, 0, 2))

    # ---- Pad recurrent / inter-layer weights and biases per gate block.
    whh_p = _pad_hidden_weight(whh.astype(f32), H, Hp)            # (L, Hp, 4Hp)

    args = [gx]
    in_specs = [pl.BlockSpec((T, B, 4 * Hp), lambda s: (s, 0, 0))]
    if has_rest:
        wrest_p = _pad_hidden_weight(wih_rest.astype(f32), H, Hp)  # (L-1,Hp,4Hp)
        args.append(wrest_p)
        in_specs.append(pl.BlockSpec((L - 1, Hp, 4 * Hp), lambda s: (0, 0, 0)))
    args.append(whh_p)
    in_specs.append(pl.BlockSpec((L, Hp, 4 * Hp), lambda s: (0, 0, 0)))
    if has_rest:
        brest_p = _pad_gate_vec(bias[1:].astype(f32), H, Hp)       # (L-1, 4Hp)
        args.append(brest_p)
        in_specs.append(pl.BlockSpec((L - 1, 4 * Hp), lambda s: (0, 0)))

    out_shape = (
        jax.ShapeDtypeStruct((S, B, Hp), x.dtype),   # per-step last-layer h
        jax.ShapeDtypeStruct((B, Hp), x.dtype),      # final h (last layer)
        jax.ShapeDtypeStruct((B, Hp), x.dtype),      # final c (last layer)
    )
    out_specs = (
        pl.BlockSpec((T, B, Hp), lambda s: (s, 0, 0)),
        pl.BlockSpec((B, Hp), lambda s: (0, 0)),
        pl.BlockSpec((B, Hp), lambda s: (0, 0)),
    )

    kernel = _make_lstm_kernel(L, Hp, T, B)

    outputs_t, h_last, c_last = pl.pallas_call(
        kernel,
        out_shape=out_shape,
        grid_spec=pltpu.PrefetchScalarGridSpec(
            num_scalar_prefetch=0,
            grid=(n_chunks,),
            in_specs=in_specs,
            out_specs=out_specs,
            scratch_shapes=[
                pltpu.VMEM((L, B, Hp), jnp.float32),   # h state per layer
                pltpu.VMEM((L, B, Hp), jnp.float32),   # c state per layer
            ],
        ),
        compiler_params=pltpu.CompilerParams(
            dimension_semantics=("arbitrary",)),       # sequential recurrence
    )(*args)

    outputs = jnp.transpose(outputs_t, (1, 0, 2))[:, :, :H]   # (B, S, H)
    return outputs, (h_last[:, :H], c_last[:, :H])


def lstm_reference(x, wih0, wih_rest, whh, bias, *, hidden_size, num_layers):
    """Pure-JAX reference matching the PyTorch forward exactly."""
    B, S, I = x.shape
    H = hidden_size
    L = num_layers
    h = [jnp.zeros((B, H), jnp.float32) for _ in range(L)]
    c = [jnp.zeros((B, H), jnp.float32) for _ in range(L)]
    outs = []
    for t in range(S):
        xc = x[:, t, :]
        for i in range(L):
            wih = wih0 if i == 0 else wih_rest[i - 1]
            gates = xc @ wih + h[i] @ whh[i] + bias[i]
            ig = jax.nn.sigmoid(gates[:, :H])
            fg = jax.nn.sigmoid(gates[:, H:2 * H])
            gg = jnp.tanh(gates[:, 2 * H:3 * H])
            og = jax.nn.sigmoid(gates[:, 3 * H:])
            c_new = fg * c[i] + ig * gg
            h_new = og * jnp.tanh(c_new)
            h[i], c[i] = h_new, c_new
            xc = h_new
        outs.append(xc)
    return jnp.stack(outs, axis=1), (h[-1], c[-1])


if __name__ == "__main__":
    # Small shapes consistent with the module's forward:
    # input (batch, seq, input_size); hidden_size H; num_layers L.
    B, S, I, H, L = 8, 16, 32, 32, 2
    num_flayers = 1  # all layers beyond the first use the plain LSTMCell path

    key = jax.random.PRNGKey(0)
    k = jax.random.split(key, 5)

    # Deterministic parameter init (uniform like nn.Linear), stored as (in, 4H)
    # so that gates = x @ W  (equivalent to PyTorch's x @ W_linear.T).
    bi = 1.0 / jnp.sqrt(I)
    bh = 1.0 / jnp.sqrt(H)
    wih0 = jax.random.uniform(k[0], (I, 4 * H), jnp.float32, -bi, bi)
    wih_rest = jax.random.uniform(k[1], (L - 1, H, 4 * H), jnp.float32, -bh, bh)
    whh = jax.random.uniform(k[2], (L, H, 4 * H), jnp.float32, -bh, bh)
    bias = jax.random.uniform(k[3], (L, 4 * H), jnp.float32, -bh, bh)

    x = jax.random.normal(k[4], (B, S, I), jnp.float32)

    run = jax.jit(functools.partial(
        lstm_forward, hidden_size=H, num_layers=L, time_chunk=8))
    outputs, (h_last, c_last) = run(x, wih0, wih_rest, whh, bias)
    jax.block_until_ready((outputs, h_last, c_last))

    ref_out, (ref_h, ref_c) = lstm_reference(
        x, wih0, wih_rest, whh, bias, hidden_size=H, num_layers=L)

    assert outputs.shape == (B, S, H)
    assert h_last.shape == (B, H) and c_last.shape == (B, H)
    assert jnp.allclose(outputs, ref_out, rtol=2e-5, atol=2e-5)
    assert jnp.allclose(h_last, ref_h, rtol=2e-5, atol=2e-5)
    assert jnp.allclose(c_last, ref_c, rtol=2e-5, atol=2e-5)

    print("KERNEL_OK")
</pallas_src>

<mosaic_0001>
module attributes {stable_mosaic.version = 11 : i64} {
  func.func @kernel(%arg0: i32, %arg1: memref<8x8x512xf32, #tpu.memory_space<vmem>>, %arg2: memref<1x128x512xf32, #tpu.memory_space<vmem>>, %arg3: memref<2x128x512xf32, #tpu.memory_space<vmem>>, %arg4: memref<1x512xf32, #tpu.memory_space<vmem>>, %arg5: memref<8x8x128xf32, #tpu.memory_space<vmem>>, %arg6: memref<8x128xf32, #tpu.memory_space<vmem>>, %arg7: memref<8x128xf32, #tpu.memory_space<vmem>>, %arg8: memref<2x8x128xf32, #tpu.memory_space<vmem>>, %arg9: memref<2x8x128xf32, #tpu.memory_space<vmem>>) attributes {dimension_semantics = [#tpu.dimension_semantics<arbitrary>], iteration_bounds = array<i64: 2>, scalar_prefetch = 0 : i64, scratch_operands = 2 : i64, tpu.core_type = #tpu.core_type<tc>, window_params = [{transform_indices = @transform_0, window_bounds = array<i64: 8, 8, 512>}, {pipeline_mode = #tpu.pipeline_mode<synchronous>, transform_indices = @transform_1, window_bounds = array<i64: 1, 128, 512>}, {pipeline_mode = #tpu.pipeline_mode<synchronous>, transform_indices = @transform_2, window_bounds = array<i64: 2, 128, 512>}, {pipeline_mode = #tpu.pipeline_mode<synchronous>, transform_indices = @transform_3, window_bounds = array<i64: 1, 512>}, {transform_indices = @transform_4, window_bounds = array<i64: 8, 8, 128>}, {pipeline_mode = #tpu.pipeline_mode<synchronous>, transform_indices = @transform_5, window_bounds = array<i64: 8, 128>}, {pipeline_mode = #tpu.pipeline_mode<synchronous>, transform_indices = @transform_6, window_bounds = array<i64: 8, 128>}]} {
    %c0_i32 = arith.constant 0 : i32
    %0 = arith.cmpi eq, %arg0, %c0_i32 : i32
    %1 = arith.extui %0 : i1 to i32
    %c0_i32_0 = arith.constant 0 : i32
    %2 = arith.cmpi ne, %1, %c0_i32_0 : i32
    scf.if %2 {
      %cst_140 = arith.constant 0.000000e+00 : f32
      %539 = vector.broadcast %cst_140 : f32 to vector<2x8x128xf32>
      %c0_141 = arith.constant 0 : index
      %c0_142 = arith.constant 0 : index
      %c0_143 = arith.constant 0 : index
      %540 = vector.load %arg8[%c0_141, %c0_142, %c0_143] : memref<2x8x128xf32, #tpu.memory_space<vmem>>, vector<2x8x128xf32>
      tpu.vector_store %arg8[%c0_141, %c0_142, %c0_143], %539 {strides = array<i32>} : memref<2x8x128xf32, #tpu.memory_space<vmem>>, vector<2x8x128xf32>,
      %cst_144 = arith.constant 0.000000e+00 : f32
      %541 = vector.broadcast %cst_144 : f32 to vector<2x8x128xf32>
      %c0_145 = arith.constant 0 : index
      %c0_146 = arith.constant 0 : index
      %c0_147 = arith.constant 0 : index
      %542 = vector.load %arg9[%c0_145, %c0_146, %c0_147] : memref<2x8x128xf32, #tpu.memory_space<vmem>>, vector<2x8x128xf32>
      tpu.vector_store %arg9[%c0_145, %c0_146, %c0_147], %541 {strides = array<i32>} : memref<2x8x128xf32, #tpu.memory_space<vmem>>, vector<2x8x128xf32>,
    } else {
    }
    %c0 = arith.constant 0 : index
    %c0_1 = arith.constant 0 : index
    %c0_2 = arith.constant 0 : index
    %3 = vector.load %arg3[%c0, %c0_1, %c0_2] : memref<2x128x512xf32, #tpu.memory_space<vmem>>, vector<1x128x512xf32>
    %4 = vector.shape_cast %3 : vector<1x128x512xf32> to vector<128x512xf32>
    %c1 = arith.constant 1 : index
    %c0_3 = arith.constant 0 : index
    %c0_4 = arith.constant 0 : index
    %5 = vector.load %arg3[%c1, %c0_3, %c0_4] : memref<2x128x512xf32, #tpu.memory_space<vmem>>, vector<1x128x512xf32>
    %6 = vector.shape_cast %5 : vector<1x128x512xf32> to vector<128x512xf32>
    %c0_5 = arith.constant 0 : index
    %c0_6 = arith.constant 0 : index
    %c0_7 = arith.constant 0 : index
    %7 = vector.load %arg2[%c0_5, %c0_6, %c0_7] : memref<1x128x512xf32, #tpu.memory_space<vmem>>, vector<1x128x512xf32>
    %8 = vector.shape_cast %7 : vector<1x128x512xf32> to vector<128x512xf32>
    %c0_8 = arith.constant 0 : index
    %c0_9 = arith.constant 0 : index
    %9 = vector.load %arg4[%c0_8, %c0_9] : memref<1x512xf32, #tpu.memory_space<vmem>>, vector<1x512xf32>
    %10 = vector.shape_cast %9 : vector<1x512xf32> to vector<1x512xf32>
    %11 = vector.broadcast %10 : vector<1x512xf32> to vector<8x512xf32>
    %c0_10 = arith.constant 0 : index
    %c0_11 = arith.constant 0 : index
    %c0_12 = arith.constant 0 : index
    %12 = vector.load %arg8[%c0_10, %c0_11, %c0_12] : memref<2x8x128xf32, #tpu.memory_space<vmem>>, vector<1x8x128xf32>
    %13 = vector.shape_cast %12 : vector<1x8x128xf32> to vector<8x128xf32>
    %c1_13 = arith.constant 1 : index
    %c0_14 = arith.constant 0 : index
    %c0_15 = arith.constant 0 : index
    %14 = vector.load %arg8[%c1_13, %c0_14, %c0_15] : memref<2x8x128xf32, #tpu.memory_space<vmem>>, vector<1x8x128xf32>
    %15 = vector.shape_cast %14 : vector<1x8x128xf32> to vector<8x128xf32>
    %c0_16 = arith.constant 0 : index
    %c0_17 = arith.constant 0 : index
    %c0_18 = arith.constant 0 : index
    %16 = vector.load %arg9[%c0_16, %c0_17, %c0_18] : memref<2x8x128xf32, #tpu.memory_space<vmem>>, vector<1x8x128xf32>
    %17 = vector.shape_cast %16 : vector<1x8x128xf32> to vector<8x128xf32>
    %c1_19 = arith.constant 1 : index
    %c0_20 = arith.constant 0 : index
    %c0_21 = arith.constant 0 : index
    %18 = vector.load %arg9[%c1_19, %c0_20, %c0_21] : memref<2x8x128xf32, #tpu.memory_space<vmem>>, vector<1x8x128xf32>
    %19 = vector.shape_cast %18 : vector<1x8x128xf32> to vector<8x128xf32>
    %c0_i32_22 = arith.constant 0 : i32
    %20 = arith.index_cast %c0_i32_22 : i32 to index
    %c0_23 = arith.constant 0 : index
    %c0_24 = arith.constant 0 : index
    %21 = vector.load %arg1[%20, %c0_23, %c0_24] : memref<8x8x512xf32, #tpu.memory_space<vmem>>, vector<1x8x512xf32>
    %22 = vector.shape_cast %21 : vector<1x8x512xf32> to vector<8x512xf32>
    %cst = arith.constant dense<0.000000e+00> : vector<8x512xf32>
    %23 = tpu.matmul %13, %4, %cst {dimension_numbers = #tpu.dot_dimension_numbers<[1], [0], [0], [1], [0, 0, 1, 1], [], []>} : vector<8x128xf32>, vector<128x512xf32>, vector<8x512xf32> -> vector<8x512xf32>
    %24 = arith.addf %22, %23 : vector<8x512xf32>
    %25 = vector.extract_strided_slice %24 {offsets = [0, 0], sizes = [8, 128], strides = [1, 1]} : vector<8x512xf32> to vector<8x128xf32>
    %26 = arith.negf %25 : vector<8x128xf32>
    %27 = math.exp %26 : vector<8x128xf32>
    %cst_25 = arith.constant 1.000000e+00 : f32
    %28 = vector.broadcast %cst_25 : f32 to vector<8x128xf32>
    %29 = arith.addf %28, %27 : vector<8x128xf32>
    %30 = arith.divf %28, %29 : vector<8x128xf32>
    %31 = vector.extract_strided_slice %24 {offsets = [0, 128], sizes = [8, 128], strides = [1, 1]} : vector<8x512xf32> to vector<8x128xf32>
    %32 = arith.negf %31 : vector<8x128xf32>
    %33 = math.exp %32 : vector<8x128xf32>
    %cst_26 = arith.constant 1.000000e+00 : f32
    %34 = vector.broadcast %cst_26 : f32 to vector<8x128xf32>
    %35 = arith.addf %34, %33 : vector<8x128xf32>
    %36 = arith.divf %34, %35 : vector<8x128xf32>
    %37 = vector.extract_strided_slice %24 {offsets = [0, 256], sizes = [8, 128], strides = [1, 1]} : vector<8x512xf32> to vector<8x128xf32>
    %38 = math.tanh %37 : vector<8x128xf32>
    %39 = vector.extract_strided_slice %24 {offsets = [0, 384], sizes = [8, 128], strides = [1, 1]} : vector<8x512xf32> to vector<8x128xf32>
    %40 = arith.negf %39 : vector<8x128xf32>
    %41 = math.exp %40 : vector<8x128xf32>
    %cst_27 = arith.constant 1.000000e+00 : f32
    %42 = vector.broadcast %cst_27 : f32 to vector<8x128xf32>
    %43 = arith.addf %42, %41 : vector<8x128xf32>
    %44 = arith.divf %42, %43 : vector<8x128xf32>
    %45 = arith.mulf %36, %17 : vector<8x128xf32>
    %46 = arith.mulf %30, %38 : vector<8x128xf32>
    %47 = arith.addf %45, %46 : vector<8x128xf32>
    %48 = math.tanh %47 : vector<8x128xf32>
    %49 = arith.mulf %44, %48 : vector<8x128xf32>
    %cst_28 = arith.constant dense<0.000000e+00> : vector<8x512xf32>
    %50 = tpu.matmul %49, %8, %cst_28 {dimension_numbers = #tpu.dot_dimension_numbers<[1], [0], [0], [1], [0, 0, 1, 1], [], []>} : vector<8x128xf32>, vector<128x512xf32>, vector<8x512xf32> -> vector<8x512xf32>
    %cst_29 = arith.constant dense<0.000000e+00> : vector<8x512xf32>
    %51 = tpu.matmul %15, %6, %cst_29 {dimension_numbers = #tpu.dot_dimension_numbers<[1], [0], [0], [1], [0, 0, 1, 1], [], []>} : vector<8x128xf32>, vector<128x512xf32>, vector<8x512xf32> -> vector<8x512xf32>
    %52 = arith.addf %50, %51 : vector<8x512xf32>
    %53 = arith.addf %52, %11 : vector<8x512xf32>
    %54 = vector.extract_strided_slice %53 {offsets = [0, 0], sizes = [8, 128], strides = [1, 1]} : vector<8x512xf32> to vector<8x128xf32>
    %55 = arith.negf %54 : vector<8x128xf32>
    %56 = math.exp %55 : vector<8x128xf32>
    %cst_30 = arith.constant 1.000000e+00 : f32
    %57 = vector.broadcast %cst_30 : f32 to vector<8x128xf32>
    %58 = arith.addf %57, %56 : vector<8x128xf32>
    %59 = arith.divf %57, %58 : vector<8x128xf32>
    %60 = vector.extract_strided_slice %53 {offsets = [0, 128], sizes = [8, 128], strides = [1, 1]} : vector<8x512xf32> to vector<8x128xf32>
    %61 = arith.negf %60 : vector<8x128xf32>
    %62 = math.exp %61 : vector<8x128xf32>
    %cst_31 = arith.constant 1.000000e+00 : f32
    %63 = vector.broadcast %cst_31 : f32 to vector<8x128xf32>
    %64 = arith.addf %63, %62 : vector<8x128xf32>
    %65 = arith.divf %63, %64 : vector<8x128xf32>
    %66 = vector.extract_strided_slice %53 {offsets = [0, 256], sizes = [8, 128], strides = [1, 1]} : vector<8x512xf32> to vector<8x128xf32>
    %67 = math.tanh %66 : vector<8x128xf32>
    %68 = vector.extract_strided_slice %53 {offsets = [0, 384], sizes = [8, 128], strides = [1, 1]} : vector<8x512xf32> to vector<8x128xf32>
    %69 = arith.negf %68 : vector<8x128xf32>
    %70 = math.exp %69 : vector<8x128xf32>
    %cst_32 = arith.constant 1.000000e+00 : f32
    %71 = vector.broadcast %cst_32 : f32 to vector<8x128xf32>
    %72 = arith.addf %71, %70 : vector<8x128xf32>
    %73 = arith.divf %71, %72 : vector<8x128xf32>
    %74 = arith.mulf %65, %19 : vector<8x128xf32>
    %75 = arith.mulf %59, %67 : vector<8x128xf32>
    %76 = arith.addf %74, %75 : vector<8x128xf32>
    %77 = math.tanh %76 : vector<8x128xf32>
    %78 = arith.mulf %73, %77 : vector<8x128xf32>
    %79 = arith.index_cast %c0_i32_22 : i32 to index
    %c0_33 = arith.constant 0 : index
    %c0_34 = arith.constant 0 : index
    %80 = vector.load %arg5[%79, %c0_33, %c0_34] : memref<8x8x128xf32, #tpu.memory_space<vmem>>, vector<1x8x128xf32>
    %81 = vector.shape_cast %80 : vector<1x8x128xf32> to vector<8x128xf32>
    %82 = vector.shape_cast %78 : vector<8x128xf32> to vector<1x8x128xf32>
    tpu.vector_store %arg5[%79, %c0_33, %c0_34], %82 {strides = array<i32>} : memref<8x8x128xf32, #tpu.memory_space<vmem>>, vector<1x8x128xf32>,
    %c1_i32 = arith.constant 1 : i32
    %83 = arith.index_cast %c1_i32 : i32 to index
    %c0_35 = arith.constant 0 : index
    %c0_36 = arith.constant 0 : index
    %84 = vector.load %arg1[%83, %c0_35, %c0_36] : memref<8x8x512xf32, #tpu.memory_space<vmem>>, vector<1x8x512xf32>
    %85 = vector.shape_cast %84 : vector<1x8x512xf32> to vector<8x512xf32>
    %cst_37 = arith.constant dense<0.000000e+00> : vector<8x512xf32>
    %86 = tpu.matmul %49, %4, %cst_37 {dimension_numbers = #tpu.dot_dimension_numbers<[1], [0], [0], [1], [0, 0, 1, 1], [], []>} : vector<8x128xf32>, vector<128x512xf32>, vector<8x512xf32> -> vector<8x512xf32>
    %87 = arith.addf %85, %86 : vector<8x512xf32>
    %88 = vector.extract_strided_slice %87 {offsets = [0, 0], sizes = [8, 128], strides = [1, 1]} : vector<8x512xf32> to vector<8x128xf32>
    %89 = arith.negf %88 : vector<8x128xf32>
    %90 = math.exp %89 : vector<8x128xf32>
    %cst_38 = arith.constant 1.000000e+00 : f32
    %91 = vector.broadcast %cst_38 : f32 to vector<8x128xf32>
    %92 = arith.addf %91, %90 : vector<8x128xf32>
    %93 = arith.divf %91, %92 : vector<8x128xf32>
    %94 = vector.extract_strided_slice %87 {offsets = [0, 128], sizes = [8, 128], strides = [1, 1]} : vector<8x512xf32> to vector<8x128xf32>
    %95 = arith.negf %94 : vector<8x128xf32>
    %96 = math.exp %95 : vector<8x128xf32>
    %cst_39 = arith.constant 1.000000e+00 : f32
    %97 = vector.broadcast %cst_39 : f32 to vector<8x128xf32>
    %98 = arith.addf %97, %96 : vector<8x128xf32>
    %99 = arith.divf %97, %98 : vector<8x128xf32>
    %100 = vector.extract_strided_slice %87 {offsets = [0, 256], sizes = [8, 128], strides = [1, 1]} : vector<8x512xf32> to vector<8x128xf32>
    %101 = math.tanh %100 : vector<8x128xf32>
    %102 = vector.extract_strided_slice %87 {offsets = [0, 384], sizes = [8, 128], strides = [1, 1]} : vector<8x512xf32> to vector<8x128xf32>
    %103 = arith.negf %102 : vector<8x128xf32>
    %104 = math.exp %103 : vector<8x128xf32>
    %cst_40 = arith.constant 1.000000e+00 : f32
    %105 = vector.broadcast %cst_40 : f32 to vector<8x128xf32>
    %106 = arith.addf %105, %104 : vector<8x128xf32>
    %107 = arith.divf %105, %106 : vector<8x128xf32>
    %108 = arith.mulf %99, %47 : vector<8x128xf32>
    %109 = arith.mulf %93, %101 : vector<8x128xf32>
    %110 = arith.addf %108, %109 : vector<8x128xf32>
    %111 = math.tanh %110 : vector<8x128xf32>
    %112 = arith.mulf %107, %111 : vector<8x128xf32>
    %cst_41 = arith.constant dense<0.000000e+00> : vector<8x512xf32>
    %113 = tpu.matmul %112, %8, %cst_41 {dimension_numbers = #tpu.dot_dimension_numbers<[1], [0], [0], [1], [0, 0, 1, 1], [], []>} : vector<8x128xf32>, vector<128x512xf32>, vector<8x512xf32> -> vector<8x512xf32>
    %cst_42 = arith.constant dense<0.000000e+00> : vector<8x512xf32>
    %114 = tpu.matmul %78, %6, %cst_42 {dimension_numbers = #tpu.dot_dimension_numbers<[1], [0], [0], [1], [0, 0, 1, 1], [], []>} : vector<8x128xf32>, vector<128x512xf32>, vector<8x512xf32> -> vector<8x512xf32>
    %115 = arith.addf %113, %114 : vector<8x512xf32>
    %116 = arith.addf %115, %11 : vector<8x512xf32>
    %117 = vector.extract_strided_slice %116 {offsets = [0, 0], sizes = [8, 128], strides = [1, 1]} : vector<8x512xf32> to vector<8x128xf32>
    %118 = arith.negf %117 : vector<8x128xf32>
    %119 = math.exp %118 : vector<8x128xf32>
    %cst_43 = arith.constant 1.000000e+00 : f32
    %120 = vector.broadcast %cst_43 : f32 to vector<8x128xf32>
    %121 = arith.addf %120, %119 : vector<8x128xf32>
    %122 = arith.divf %120, %121 : vector<8x128xf32>
    %123 = vector.extract_strided_slice %116 {offsets = [0, 128], sizes = [8, 128], strides = [1, 1]} : vector<8x512xf32> to vector<8x128xf32>
    %124 = arith.negf %123 : vector<8x128xf32>
    %125 = math.exp %124 : vector<8x128xf32>
    %cst_44 = arith.constant 1.000000e+00 : f32
    %126 = vector.broadcast %cst_44 : f32 to vector<8x128xf32>
    %127 = arith.addf %126, %125 : vector<8x128xf32>
    %128 = arith.divf %126, %127 : vector<8x128xf32>
    %129 = vector.extract_strided_slice %116 {offsets = [0, 256], sizes = [8, 128], strides = [1, 1]} : vector<8x512xf32> to vector<8x128xf32>
    %130 = math.tanh %129 : vector<8x128xf32>
    %131 = vector.extract_strided_slice %116 {offsets = [0, 384], sizes = [8, 128], strides = [1, 1]} : vector<8x512xf32> to vector<8x128xf32>
    %132 = arith.negf %131 : vector<8x128xf32>
    %133 = math.exp %132 : vector<8x128xf32>
    %cst_45 = arith.constant 1.000000e+00 : f32
    %134 = vector.broadcast %cst_45 : f32 to vector<8x128xf32>
    %135 = arith.addf %134, %133 : vector<8x128xf32>
    %136 = arith.divf %134, %135 : vector<8x128xf32>
    %137 = arith.mulf %128, %76 : vector<8x128xf32>
    %138 = arith.mulf %122, %130 : vector<8x128xf32>
    %139 = arith.addf %137, %138 : vector<8x128xf32>
    %140 = math.tanh %139 : vector<8x128xf32>
    %141 = arith.mulf %136, %140 : vector<8x128xf32>
    %142 = arith.index_cast %c1_i32 : i32 to index
    %c0_46 = arith.constant 0 : index
    %c0_47 = arith.constant 0 : index
    %143 = vector.load %arg5[%142, %c0_46, %c0_47] : memref<8x8x128xf32, #tpu.memory_space<vmem>>, vector<1x8x128xf32>
    %144 = vector.shape_cast %143 : vector<1x8x128xf32> to vector<8x128xf32>
    %145 = vector.shape_cast %141 : vector<8x128xf32> to vector<1x8x128xf32>
    tpu.vector_store %arg5[%142, %c0_46, %c0_47], %145 {strides = array<i32>} : memref<8x8x128xf32, #tpu.memory_space<vmem>>, vector<1x8x128xf32>,
    %c2_i32 = arith.constant 2 : i32
    %146 = arith.index_cast %c2_i32 : i32 to index
    %c0_48 = arith.constant 0 : index
    %c0_49 = arith.constant 0 : index
    %147 = vector.load %arg1[%146, %c0_48, %c0_49] : memref<8x8x512xf32, #tpu.memory_space<vmem>>, vector<1x8x512xf32>
    %148 = vector.shape_cast %147 : vector<1x8x512xf32> to vector<8x512xf32>
    %cst_50 = arith.constant dense<0.000000e+00> : vector<8x512xf32>
    %149 = tpu.matmul %112, %4, %cst_50 {dimension_numbers = #tpu.dot_dimension_numbers<[1], [0], [0], [1], [0, 0, 1, 1], [], []>} : vector<8x128xf32>, vector<128x512xf32>, vector<8x512xf32> -> vector<8x512xf32>
    %150 = arith.addf %148, %149 : vector<8x512xf32>
    %151 = vector.extract_strided_slice %150 {offsets = [0, 0], sizes = [8, 128], strides = [1, 1]} : vector<8x512xf32> to vector<8x128xf32>
    %152 = arith.negf %151 : vector<8x128xf32>
    %153 = math.exp %152 : vector<8x128xf32>
    %cst_51 = arith.constant 1.000000e+00 : f32
    %154 = vector.broadcast %cst_51 : f32 to vector<8x128xf32>
    %155 = arith.addf %154, %153 : vector<8x128xf32>
    %156 = arith.divf %154, %155 : vector<8x128xf32>
    %157 = vector.extract_strided_slice %150 {offsets = [0, 128], sizes = [8, 128], strides = [1, 1]} : vector<8x512xf32> to vector<8x128xf32>
    %158 = arith.negf %157 : vector<8x128xf32>
    %159 = math.exp %158 : vector<8x128xf32>
    %cst_52 = arith.constant 1.000000e+00 : f32
    %160 = vector.broadcast %cst_52 : f32 to vector<8x128xf32>
    %161 = arith.addf %160, %159 : vector<8x128xf32>
    %162 = arith.divf %160, %161 : vector<8x128xf32>
    %163 = vector.extract_strided_slice %150 {offsets = [0, 256], sizes = [8, 128], strides = [1, 1]} : vector<8x512xf32> to vector<8x128xf32>
    %164 = math.tanh %163 : vector<8x128xf32>
    %165 = vector.extract_strided_slice %150 {offsets = [0, 384], sizes = [8, 128], strides = [1, 1]} : vector<8x512xf32> to vector<8x128xf32>
    %166 = arith.negf %165 : vector<8x128xf32>
    %167 = math.exp %166 : vector<8x128xf32>
    %cst_53 = arith.constant 1.000000e+00 : f32
    %168 = vector.broadcast %cst_53 : f32 to vector<8x128xf32>
    %169 = arith.addf %168, %167 : vector<8x128xf32>
    %170 = arith.divf %168, %169 : vector<8x128xf32>
    %171 = arith.mulf %162, %110 : vector<8x128xf32>
    %172 = arith.mulf %156, %164 : vector<8x128xf32>
    %173 = arith.addf %171, %172 : vector<8x128xf32>
    %174 = math.tanh %173 : vector<8x128xf32>
    %175 = arith.mulf %170, %174 : vector<8x128xf32>
    %cst_54 = arith.constant dense<0.000000e+00> : vector<8x512xf32>
    %176 = tpu.matmul %175, %8, %cst_54 {dimension_numbers = #tpu.dot_dimension_numbers<[1], [0], [0], [1], [0, 0, 1, 1], [], []>} : vector<8x128xf32>, vector<128x512xf32>, vector<8x512xf32> -> vector<8x512xf32>
    %cst_55 = arith.constant dense<0.000000e+00> : vector<8x512xf32>
    %177 = tpu.matmul %141, %6, %cst_55 {dimension_numbers = #tpu.dot_dimension_numbers<[1], [0], [0], [1], [0, 0, 1, 1], [], []>} : vector<8x128xf32>, vector<128x512xf32>, vector<8x512xf32> -> vector<8x512xf32>
    %178 = arith.addf %176, %177 : vector<8x512xf32>
    %179 = arith.addf %178, %11 : vector<8x512xf32>
    %180 = vector.extract_strided_slice %179 {offsets = [0, 0], sizes = [8, 128], strides = [1, 1]} : vector<8x512xf32> to vector<8x128xf32>
    %181 = arith.negf %180 : vector<8x128xf32>
    %182 = math.exp %181 : vector<8x128xf32>
    %cst_56 = arith.constant 1.000000e+00 : f32
    %183 = vector.broadcast %cst_56 : f32 to vector<8x128xf32>
    %184 = arith.addf %183, %182 : vector<8x128xf32>
    %185 = arith.divf %183, %184 : vector<8x128xf32>
    %186 = vector.extract_strided_slice %179 {offsets = [0, 128], sizes = [8, 128], strides = [1, 1]} : vector<8x512xf32> to vector<8x128xf32>
    %187 = arith.negf %186 : vector<8x128xf32>
    %188 = math.exp %187 : vector<8x128xf32>
    %cst_57 = arith.constant 1.000000e+00 : f32
    %189 = vector.broadcast %cst_57 : f32 to vector<8x128xf32>
    %190 = arith.addf %189, %188 : vector<8x128xf32>
    %191 = arith.divf %189, %190 : vector<8x128xf32>
    %192 = vector.extract_strided_slice %179 {offsets = [0, 256], sizes = [8, 128], strides = [1, 1]} : vector<8x512xf32> to vector<8x128xf32>
    %193 = math.tanh %192 : vector<8x128xf32>
    %194 = vector.extract_strided_slice %179 {offsets = [0, 384], sizes = [8, 128], strides = [1, 1]} : vector<8x512xf32> to vector<8x128xf32>
    %195 = arith.negf %194 : vector<8x128xf32>
    %196 = math.exp %195 : vector<8x128xf32>
    %cst_58 = arith.constant 1.000000e+00 : f32
    %197 = vector.broadcast %cst_58 : f32 to vector<8x128xf32>
    %198 = arith.addf %197, %196 : vector<8x128xf32>
    %199 = arith.divf %197, %198 : vector<8x128xf32>
    %200 = arith.mulf %191, %139 : vector<8x128xf32>
    %201 = arith.mulf %185, %193 : vector<8x128xf32>
    %202 = arith.addf %200, %201 : vector<8x128xf32>
    %203 = math.tanh %202 : vector<8x128xf32>
    %204 = arith.mulf %199, %203 : vector<8x128xf32>
    %205 = arith.index_cast %c2_i32 : i32 to index
    %c0_59 = arith.constant 0 : index
    %c0_60 = arith.constant 0 : index
    %206 = vector.load %arg5[%205, %c0_59, %c0_60] : memref<8x8x128xf32, #tpu.memory_space<vmem>>, vector<1x8x128xf32>
    %207 = vector.shape_cast %206 : vector<1x8x128xf32> to vector<8x128xf32>
    %208 = vector.shape_cast %204 : vector<8x128xf32> to vector<1x8x128xf32>
    tpu.vector_store %arg5[%205, %c0_59, %c0_60], %208 {strides = array<i32>} : memref<8x8x128xf32, #tpu.memory_space<vmem>>, vector<1x8x128xf32>,
    %c3_i32 = arith.constant 3 : i32
    %209 = arith.index_cast %c3_i32 : i32 to index
    %c0_61 = arith.constant 0 : index
    %c0_62 = arith.constant 0 : index
    %210 = vector.load %arg1[%209, %c0_61, %c0_62] : memref<8x8x512xf32, #tpu.memory_space<vmem>>, vector<1x8x512xf32>
    %211 = vector.shape_cast %210 : vector<1x8x512xf32> to vector<8x512xf32>
    %cst_63 = arith.constant dense<0.000000e+00> : vector<8x512xf32>
    %212 = tpu.matmul %175, %4, %cst_63 {dimension_numbers = #tpu.dot_dimension_numbers<[1], [0], [0], [1], [0, 0, 1, 1], [], []>} : vector<8x128xf32>, vector<128x512xf32>, vector<8x512xf32> -> vector<8x512xf32>
    %213 = arith.addf %211, %212 : vector<8x512xf32>
    %214 = vector.extract_strided_slice %213 {offsets = [0, 0], sizes = [8, 128], strides = [1, 1]} : vector<8x512xf32> to vector<8x128xf32>
    %215 = arith.negf %214 : vector<8x128xf32>
    %216 = math.exp %215 : vector<8x128xf32>
    %cst_64 = arith.constant 1.000000e+00 : f32
    %217 = vector.broadcast %cst_64 : f32 to vector<8x128xf32>
    %218 = arith.addf %217, %216 : vector<8x128xf32>
    %219 = arith.divf %217, %218 : vector<8x128xf32>
    %220 = vector.extract_strided_slice %213 {offsets = [0, 128], sizes = [8, 128], strides = [1, 1]} : vector<8x512xf32> to vector<8x128xf32>
    %221 = arith.negf %220 : vector<8x128xf32>
    %222 = math.exp %221 : vector<8x128xf32>
    %cst_65 = arith.constant 1.000000e+00 : f32
    %223 = vector.broadcast %cst_65 : f32 to vector<8x128xf32>
    %224 = arith.addf %223, %222 : vector<8x128xf32>
    %225 = arith.divf %223, %224 : vector<8x128xf32>
    %226 = vector.extract_strided_slice %213 {offsets = [0, 256], sizes = [8, 128], strides = [1, 1]} : vector<8x512xf32> to vector<8x128xf32>
    %227 = math.tanh %226 : vector<8x128xf32>
    %228 = vector.extract_strided_slice %213 {offsets = [0, 384], sizes = [8, 128], strides = [1, 1]} : vector<8x512xf32> to vector<8x128xf32>
    %229 = arith.negf %228 : vector<8x128xf32>
    %230 = math.exp %229 : vector<8x128xf32>
    %cst_66 = arith.constant 1.000000e+00 : f32
    %231 = vector.broadcast %cst_66 : f32 to vector<8x128xf32>
    %232 = arith.addf %231, %230 : vector<8x128xf32>
    %233 = arith.divf %231, %232 : vector<8x128xf32>
    %234 = arith.mulf %225, %173 : vector<8x128xf32>
    %235 = arith.mulf %219, %227 : vector<8x128xf32>
    %236 = arith.addf %234, %235 : vector<8x128xf32>
    %237 = math.tanh %236 : vector<8x128xf32>
    %238 = arith.mulf %233, %237 : vector<8x128xf32>
    %cst_67 = arith.constant dense<0.000000e+00> : vector<8x512xf32>
    %239 = tpu.matmul %238, %8, %cst_67 {dimension_numbers = #tpu.dot_dimension_numbers<[1], [0], [0], [1], [0, 0, 1, 1], [], []>} : vector<8x128xf32>, vector<128x512xf32>, vector<8x512xf32> -> vector<8x512xf32>
    %cst_68 = arith.constant dense<0.000000e+00> : vector<8x512xf32>
    %240 = tpu.matmul %204, %6, %cst_68 {dimension_numbers = #tpu.dot_dimension_numbers<[1], [0], [0], [1], [0, 0, 1, 1], [], []>} : vector<8x128xf32>, vector<128x512xf32>, vector<8x512xf32> -> vector<8x512xf32>
    %241 = arith.addf %239, %240 : vector<8x512xf32>
    %242 = arith.addf %241, %11 : vector<8x512xf32>
    %243 = vector.extract_strided_slice %242 {offsets = [0, 0], sizes = [8, 128], strides = [1, 1]} : vector<8x512xf32> to vector<8x128xf32>
    %244 = arith.negf %243 : vector<8x128xf32>
    %245 = math.exp %244 : vector<8x128xf32>
    %cst_69 = arith.constant 1.000000e+00 : f32
    %246 = vector.broadcast %cst_69 : f32 to vector<8x128xf32>
    %247 = arith.addf %246, %245 : vector<8x128xf32>
    %248 = arith.divf %246, %247 : vector<8x128xf32>
    %249 = vector.extract_strided_slice %242 {offsets = [0, 128], sizes = [8, 128], strides = [1, 1]} : vector<8x512xf32> to vector<8x128xf32>
    %250 = arith.negf %249 : vector<8x128xf32>
    %251 = math.exp %250 : vector<8x128xf32>
    %cst_70 = arith.constant 1.000000e+00 : f32
    %252 = vector.broadcast %cst_70 : f32 to vector<8x128xf32>
    %253 = arith.addf %252, %251 : vector<8x128xf32>
    %254 = arith.divf %252, %253 : vector<8x128xf32>
    %255 = vector.extract_strided_slice %242 {offsets = [0, 256], sizes = [8, 128], strides = [1, 1]} : vector<8x512xf32> to vector<8x128xf32>
    %256 = math.tanh %255 : vector<8x128xf32>
    %257 = vector.extract_strided_slice %242 {offsets = [0, 384], sizes = [8, 128], strides = [1, 1]} : vector<8x512xf32> to vector<8x128xf32>
    %258 = arith.negf %257 : vector<8x128xf32>
    %259 = math.exp %258 : vector<8x128xf32>
    %cst_71 = arith.constant 1.000000e+00 : f32
    %260 = vector.broadcast %cst_71 : f32 to vector<8x128xf32>
    %261 = arith.addf %260, %259 : vector<8x128xf32>
    %262 = arith.divf %260, %261 : vector<8x128xf32>
    %263 = arith.mulf %254, %202 : vector<8x128xf32>
    %264 = arith.mulf %248, %256 : vector<8x128xf32>
    %265 = arith.addf %263, %264 : vector<8x128xf32>
    %266 = math.tanh %265 : vector<8x128xf32>
    %267 = arith.mulf %262, %266 : vector<8x128xf32>
    %268 = arith.index_cast %c3_i32 : i32 to index
    %c0_72 = arith.constant 0 : index
    %c0_73 = arith.constant 0 : index
    %269 = vector.load %arg5[%268, %c0_72, %c0_73] : memref<8x8x128xf32, #tpu.memory_space<vmem>>, vector<1x8x128xf32>
    %270 = vector.shape_cast %269 : vector<1x8x128xf32> to vector<8x128xf32>
    %271 = vector.shape_cast %267 : vector<8x128xf32> to vector<1x8x128xf32>
    tpu.vector_store %arg5[%268, %c0_72, %c0_73], %271 {strides = array<i32>} : memref<8x8x128xf32, #tpu.memory_space<vmem>>, vector<1x8x128xf32>,
    %c4_i32 = arith.constant 4 : i32
    %272 = arith.index_cast %c4_i32 : i32 to index
    %c0_74 = arith.constant 0 : index
    %c0_75 = arith.constant 0 : index
    %273 = vector.load %arg1[%272, %c0_74, %c0_75] : memref<8x8x512xf32, #tpu.memory_space<vmem>>, vector<1x8x512xf32>
    %274 = vector.shape_cast %273 : vector<1x8x512xf32> to vector<8x512xf32>
    %cst_76 = arith.constant dense<0.000000e+00> : vector<8x512xf32>
    %275 = tpu.matmul %238, %4, %cst_76 {dimension_numbers = #tpu.dot_dimension_numbers<[1], [0], [0], [1], [0, 0, 1, 1], [], []>} : vector<8x128xf32>, vector<128x512xf32>, vector<8x512xf32> -> vector<8x512xf32>
    %276 = arith.addf %274, %275 : vector<8x512xf32>
    %277 = vector.extract_strided_slice %276 {offsets = [0, 0], sizes = [8, 128], strides = [1, 1]} : vector<8x512xf32> to vector<8x128xf32>
    %278 = arith.negf %277 : vector<8x128xf32>
    %279 = math.exp %278 : vector<8x128xf32>
    %cst_77 = arith.constant 1.000000e+00 : f32
    %280 = vector.broadcast %cst_77 : f32 to vector<8x128xf32>
    %281 = arith.addf %280, %279 : vector<8x128xf32>
    %282 = arith.divf %280, %281 : vector<8x128xf32>
    %283 = vector.extract_strided_slice %276 {offsets = [0, 128], sizes = [8, 128], strides = [1, 1]} : vector<8x512xf32> to vector<8x128xf32>
    %284 = arith.negf %283 : vector<8x128xf32>
    %285 = math.exp %284 : vector<8x128xf32>
    %cst_78 = arith.constant 1.000000e+00 : f32
    %286 = vector.broadcast %cst_78 : f32 to vector<8x128xf32>
    %287 = arith.addf %286, %285 : vector<8x128xf32>
    %288 = arith.divf %286, %287 : vector<8x128xf32>
    %289 = vector.extract_strided_slice %276 {offsets = [0, 256], sizes = [8, 128], strides = [1, 1]} : vector<8x512xf32> to vector<8x128xf32>
    %290 = math.tanh %289 : vector<8x128xf32>
    %291 = vector.extract_strided_slice %276 {offsets = [0, 384], sizes = [8, 128], strides = [1, 1]} : vector<8x512xf32> to vector<8x128xf32>
    %292 = arith.negf %291 : vector<8x128xf32>
    %293 = math.exp %292 : vector<8x128xf32>
    %cst_79 = arith.constant 1.000000e+00 : f32
    %294 = vector.broadcast %cst_79 : f32 to vector<8x128xf32>
    %295 = arith.addf %294, %293 : vector<8x128xf32>
    %296 = arith.divf %294, %295 : vector<8x128xf32>
    %297 = arith.mulf %288, %236 : vector<8x128xf32>
    %298 = arith.mulf %282, %290 : vector<8x128xf32>
    %299 = arith.addf %297, %298 : vector<8x128xf32>
    %300 = math.tanh %299 : vector<8x128xf32>
    %301 = arith.mulf %296, %300 : vector<8x128xf32>
    %cst_80 = arith.constant dense<0.000000e+00> : vector<8x512xf32>
    %302 = tpu.matmul %301, %8, %cst_80 {dimension_numbers = #tpu.dot_dimension_numbers<[1], [0], [0], [1], [0, 0, 1, 1], [], []>} : vector<8x128xf32>, vector<128x512xf32>, vector<8x512xf32> -> vector<8x512xf32>
    %cst_81 = arith.constant dense<0.000000e+00> : vector<8x512xf32>
    %303 = tpu.matmul %267, %6, %cst_81 {dimension_numbers = #tpu.dot_dimension_numbers<[1], [0], [0], [1], [0, 0, 1, 1], [], []>} : vector<8x128xf32>, vector<128x512xf32>, vector<8x512xf32> -> vector<8x512xf32>
    %304 = arith.addf %302, %303 : vector<8x512xf32>
    %305 = arith.addf %304, %11 : vector<8x512xf32>
    %306 = vector.extract_strided_slice %305 {offsets = [0, 0], sizes = [8, 128], strides = [1, 1]} : vector<8x512xf32> to vector<8x128xf32>
    %307 = arith.negf %306 : vector<8x128xf32>
    %308 = math.exp %307 : vector<8x128xf32>
    %cst_82 = arith.constant 1.000000e+00 : f32
    %309 = vector.broadcast %cst_82 : f32 to vector<8x128xf32>
    %310 = arith.addf %309, %308 : vector<8x128xf32>
    %311 = arith.divf %309, %310 : vector<8x128xf32>
    %312 = vector.extract_strided_slice %305 {offsets = [0, 128], sizes = [8, 128], strides = [1, 1]} : vector<8x512xf32> to vector<8x128xf32>
    %313 = arith.negf %312 : vector<8x128xf32>
    %314 = math.exp %313 : vector<8x128xf32>
    %cst_83 = arith.constant 1.000000e+00 : f32
    %315 = vector.broadcast %cst_83 : f32 to vector<8x128xf32>
    %316 = arith.addf %315, %314 : vector<8x128xf32>
    %317 = arith.divf %315, %316 : vector<8x128xf32>
    %318 = vector.extract_strided_slice %305 {offsets = [0, 256], sizes = [8, 128], strides = [1, 1]} : vector<8x512xf32> to vector<8x128xf32>
    %319 = math.tanh %318 : vector<8x128xf32>
    %320 = vector.extract_strided_slice %305 {offsets = [0, 384], sizes = [8, 128], strides = [1, 1]} : vector<8x512xf32> to vector<8x128xf32>
    %321 = arith.negf %320 : vector<8x128xf32>
    %322 = math.exp %321 : vector<8x128xf32>
    %cst_84 = arith.constant 1.000000e+00 : f32
    %323 = vector.broadcast %cst_84 : f32 to vector<8x128xf32>
    %324 = arith.addf %323, %322 : vector<8x128xf32>
    %325 = arith.divf %323, %324 : vector<8x128xf32>
    %326 = arith.mulf %317, %265 : vector<8x128xf32>
    %327 = arith.mulf %311, %319 : vector<8x128xf32>
    %328 = arith.addf %326, %327 : vector<8x128xf32>
    %329 = math.tanh %328 : vector<8x128xf32>
    %330 = arith.mulf %325, %329 : vector<8x128xf32>
    %331 = arith.index_cast %c4_i32 : i32 to index
    %c0_85 = arith.constant 0 : index
    %c0_86 = arith.constant 0 : index
    %332 = vector.load %arg5[%331, %c0_85, %c0_86] : memref<8x8x128xf32, #tpu.memory_space<vmem>>, vector<1x8x128xf32>
    %333 = vector.shape_cast %332 : vector<1x8x128xf32> to vector<8x128xf32>
    %334 = vector.shape_cast %330 : vector<8x128xf32> to vector<1x8x128xf32>
    tpu.vector_store %arg5[%331, %c0_85, %c0_86], %334 {strides = array<i32>} : memref<8x8x128xf32, #tpu.memory_space<vmem>>, vector<1x8x128xf32>,
    %c5_i32 = arith.constant 5 : i32
    %335 = arith.index_cast %c5_i32 : i32 to index
    %c0_87 = arith.constant 0 : index
    %c0_88 = arith.constant 0 : index
    %336 = vector.load %arg1[%335, %c0_87, %c0_88] : memref<8x8x512xf32, #tpu.memory_space<vmem>>, vector<1x8x512xf32>
    %337 = vector.shape_cast %336 : vector<1x8x512xf32> to vector<8x512xf32>
    %cst_89 = arith.constant dense<0.000000e+00> : vector<8x512xf32>
    %338 = tpu.matmul %301, %4, %cst_89 {dimension_numbers = #tpu.dot_dimension_numbers<[1], [0], [0], [1], [0, 0, 1, 1], [], []>} : vector<8x128xf32>, vector<128x512xf32>, vector<8x512xf32> -> vector<8x512xf32>
    %339 = arith.addf %337, %338 : vector<8x512xf32>
    %340 = vector.extract_strided_slice %339 {offsets = [0, 0], sizes = [8, 128], strides = [1, 1]} : vector<8x512xf32> to vector<8x128xf32>
    %341 = arith.negf %340 : vector<8x128xf32>
    %342 = math.exp %341 : vector<8x128xf32>
    %cst_90 = arith.constant 1.000000e+00 : f32
    %343 = vector.broadcast %cst_90 : f32 to vector<8x128xf32>
    %344 = arith.addf %343, %342 : vector<8x128xf32>
    %345 = arith.divf %343, %344 : vector<8x128xf32>
    %346 = vector.extract_strided_slice %339 {offsets = [0, 128], sizes = [8, 128], strides = [1, 1]} : vector<8x512xf32> to vector<8x128xf32>
    %347 = arith.negf %346 : vector<8x128xf32>
    %348 = math.exp %347 : vector<8x128xf32>
    %cst_91 = arith.constant 1.000000e+00 : f32
    %349 = vector.broadcast %cst_91 : f32 to vector<8x128xf32>
    %350 = arith.addf %349, %348 : vector<8x128xf32>
    %351 = arith.divf %349, %350 : vector<8x128xf32>
    %352 = vector.extract_strided_slice %339 {offsets = [0, 256], sizes = [8, 128], strides = [1, 1]} : vector<8x512xf32> to vector<8x128xf32>
    %353 = math.tanh %352 : vector<8x128xf32>
    %354 = vector.extract_strided_slice %339 {offsets = [0, 384], sizes = [8, 128], strides = [1, 1]} : vector<8x512xf32> to vector<8x128xf32>
    %355 = arith.negf %354 : vector<8x128xf32>
    %356 = math.exp %355 : vector<8x128xf32>
    %cst_92 = arith.constant 1.000000e+00 : f32
    %357 = vector.broadcast %cst_92 : f32 to vector<8x128xf32>
    %358 = arith.addf %357, %356 : vector<8x128xf32>
    %359 = arith.divf %357, %358 : vector<8x128xf32>
    %360 = arith.mulf %351, %299 : vector<8x128xf32>
    %361 = arith.mulf %345, %353 : vector<8x128xf32>
    %362 = arith.addf %360, %361 : vector<8x128xf32>
    %363 = math.tanh %362 : vector<8x128xf32>
    %364 = arith.mulf %359, %363 : vector<8x128xf32>
    %cst_93 = arith.constant dense<0.000000e+00> : vector<8x512xf32>
    %365 = tpu.matmul %364, %8, %cst_93 {dimension_numbers = #tpu.dot_dimension_numbers<[1], [0], [0], [1], [0, 0, 1, 1], [], []>} : vector<8x128xf32>, vector<128x512xf32>, vector<8x512xf32> -> vector<8x512xf32>
    %cst_94 = arith.constant dense<0.000000e+00> : vector<8x512xf32>
    %366 = tpu.matmul %330, %6, %cst_94 {dimension_numbers = #tpu.dot_dimension_numbers<[1], [0], [0], [1], [0, 0, 1, 1], [], []>} : vector<8x128xf32>, vector<128x512xf32>, vector<8x512xf32> -> vector<8x512xf32>
    %367 = arith.addf %365, %366 : vector<8x512xf32>
    %368 = arith.addf %367, %11 : vector<8x512xf32>
    %369 = vector.extract_strided_slice %368 {offsets = [0, 0], sizes = [8, 128], strides = [1, 1]} : vector<8x512xf32> to vector<8x128xf32>
    %370 = arith.negf %369 : vector<8x128xf32>
    %371 = math.exp %370 : vector<8x128xf32>
    %cst_95 = arith.constant 1.000000e+00 : f32
    %372 = vector.broadcast %cst_95 : f32 to vector<8x128xf32>
    %373 = arith.addf %372, %371 : vector<8x128xf32>
    %374 = arith.divf %372, %373 : vector<8x128xf32>
    %375 = vector.extract_strided_slice %368 {offsets = [0, 128], sizes = [8, 128], strides = [1, 1]} : vector<8x512xf32> to vector<8x128xf32>
    %376 = arith.negf %375 : vector<8x128xf32>
    %377 = math.exp %376 : vector<8x128xf32>
    %cst_96 = arith.constant 1.000000e+00 : f32
    %378 = vector.broadcast %cst_96 : f32 to vector<8x128xf32>
    %379 = arith.addf %378, %377 : vector<8x128xf32>
    %380 = arith.divf %378, %379 : vector<8x128xf32>
    %381 = vector.extract_strided_slice %368 {offsets = [0, 256], sizes = [8, 128], strides = [1, 1]} : vector<8x512xf32> to vector<8x128xf32>
    %382 = math.tanh %381 : vector<8x128xf32>
    %383 = vector.extract_strided_slice %368 {offsets = [0, 384], sizes = [8, 128], strides = [1, 1]} : vector<8x512xf32> to vector<8x128xf32>
    %384 = arith.negf %383 : vector<8x128xf32>
    %385 = math.exp %384 : vector<8x128xf32>
    %cst_97 = arith.constant 1.000000e+00 : f32
    %386 = vector.broadcast %cst_97 : f32 to vector<8x128xf32>
    %387 = arith.addf %386, %385 : vector<8x128xf32>
    %388 = arith.divf %386, %387 : vector<8x128xf32>
    %389 = arith.mulf %380, %328 : vector<8x128xf32>
    %390 = arith.mulf %374, %382 : vector<8x128xf32>
    %391 = arith.addf %389, %390 : vector<8x128xf32>
    %392 = math.tanh %391 : vector<8x128xf32>
    %393 = arith.mulf %388, %392 : vector<8x128xf32>
    %394 = arith.index_cast %c5_i32 : i32 to index
    %c0_98 = arith.constant 0 : index
    %c0_99 = arith.constant 0 : index
    %395 = vector.load %arg5[%394, %c0_98, %c0_99] : memref<8x8x128xf32, #tpu.memory_space<vmem>>, vector<1x8x128xf32>
    %396 = vector.shape_cast %395 : vector<1x8x128xf32> to vector<8x128xf32>
    %397 = vector.shape_cast %393 : vector<8x128xf32> to vector<1x8x128xf32>
    tpu.vector_store %arg5[%394, %c0_98, %c0_99], %397 {strides = array<i32>} : memref<8x8x128xf32, #tpu.memory_space<vmem>>, vector<1x8x128xf32>,
    %c6_i32 = arith.constant 6 : i32
    %398 = arith.index_cast %c6_i32 : i32 to index
    %c0_100 = arith.constant 0 : index
    %c0_101 = arith.constant 0 : index
    %399 = vector.load %arg1[%398, %c0_100, %c0_101] : memref<8x8x512xf32, #tpu.memory_space<vmem>>, vector<1x8x512xf32>
    %400 = vector.shape_cast %399 : vector<1x8x512xf32> to vector<8x512xf32>
    %cst_102 = arith.constant dense<0.000000e+00> : vector<8x512xf32>
    %401 = tpu.matmul %364, %4, %cst_102 {dimension_numbers = #tpu.dot_dimension_numbers<[1], [0], [0], [1], [0, 0, 1, 1], [], []>} : vector<8x128xf32>, vector<128x512xf32>, vector<8x512xf32> -> vector<8x512xf32>
    %402 = arith.addf %400, %401 : vector<8x512xf32>
    %403 = vector.extract_strided_slice %402 {offsets = [0, 0], sizes = [8, 128], strides = [1, 1]} : vector<8x512xf32> to vector<8x128xf32>
    %404 = arith.negf %403 : vector<8x128xf32>
    %405 = math.exp %404 : vector<8x128xf32>
    %cst_103 = arith.constant 1.000000e+00 : f32
    %406 = vector.broadcast %cst_103 : f32 to vector<8x128xf32>
    %407 = arith.addf %406, %405 : vector<8x128xf32>
    %408 = arith.divf %406, %407 : vector<8x128xf32>
    %409 = vector.extract_strided_slice %402 {offsets = [0, 128], sizes = [8, 128], strides = [1, 1]} : vector<8x512xf32> to vector<8x128xf32>
    %410 = arith.negf %409 : vector<8x128xf32>
    %411 = math.exp %410 : vector<8x128xf32>
    %cst_104 = arith.constant 1.000000e+00 : f32
    %412 = vector.broadcast %cst_104 : f32 to vector<8x128xf32>
    %413 = arith.addf %412, %411 : vector<8x128xf32>
    %414 = arith.divf %412, %413 : vector<8x128xf32>
    %415 = vector.extract_strided_slice %402 {offsets = [0, 256], sizes = [8, 128], strides = [1, 1]} : vector<8x512xf32> to vector<8x128xf32>
    %416 = math.tanh %415 : vector<8x128xf32>
    %417 = vector.extract_strided_slice %402 {offsets = [0, 384], sizes = [8, 128], strides = [1, 1]} : vector<8x512xf32> to vector<8x128xf32>
    %418 = arith.negf %417 : vector<8x128xf32>
    %419 = math.exp %418 : vector<8x128xf32>
    %cst_105 = arith.constant 1.000000e+00 : f32
    %420 = vector.broadcast %cst_105 : f32 to vector<8x128xf32>
    %421 = arith.addf %420, %419 : vector<8x128xf32>
    %422 = arith.divf %420, %421 : vector<8x128xf32>
    %423 = arith.mulf %414, %362 : vector<8x128xf32>
    %424 = arith.mulf %408, %416 : vector<8x128xf32>
    %425 = arith.addf %423, %424 : vector<8x128xf32>
    %426 = math.tanh %425 : vector<8x128xf32>
    %427 = arith.mulf %422, %426 : vector<8x128xf32>
    %cst_106 = arith.constant dense<0.000000e+00> : vector<8x512xf32>
    %428 = tpu.matmul %427, %8, %cst_106 {dimension_numbers = #tpu.dot_dimension_numbers<[1], [0], [0], [1], [0, 0, 1, 1], [], []>} : vector<8x128xf32>, vector<128x512xf32>, vector<8x512xf32> -> vector<8x512xf32>
    %cst_107 = arith.constant dense<0.000000e+00> : vector<8x512xf32>
    %429 = tpu.matmul %393, %6, %cst_107 {dimension_numbers = #tpu.dot_dimension_numbers<[1], [0], [0], [1], [0, 0, 1, 1], [], []>} : vector<8x128xf32>, vector<128x512xf32>, vector<8x512xf32> -> vector<8x512xf32>
    %430 = arith.addf %428, %429 : vector<8x512xf32>
    %431 = arith.addf %430, %11 : vector<8x512xf32>
    %432 = vector.extract_strided_slice %431 {offsets = [0, 0], sizes = [8, 128], strides = [1, 1]} : vector<8x512xf32> to vector<8x128xf32>
    %433 = arith.negf %432 : vector<8x128xf32>
    %434 = math.exp %433 : vector<8x128xf32>
    %cst_108 = arith.constant 1.000000e+00 : f32
    %435 = vector.broadcast %cst_108 : f32 to vector<8x128xf32>
    %436 = arith.addf %435, %434 : vector<8x128xf32>
    %437 = arith.divf %435, %436 : vector<8x128xf32>
    %438 = vector.extract_strided_slice %431 {offsets = [0, 128], sizes = [8, 128], strides = [1, 1]} : vector<8x512xf32> to vector<8x128xf32>
    %439 = arith.negf %438 : vector<8x128xf32>
    %440 = math.exp %439 : vector<8x128xf32>
    %cst_109 = arith.constant 1.000000e+00 : f32
    %441 = vector.broadcast %cst_109 : f32 to vector<8x128xf32>
    %442 = arith.addf %441, %440 : vector<8x128xf32>
    %443 = arith.divf %441, %442 : vector<8x128xf32>
    %444 = vector.extract_strided_slice %431 {offsets = [0, 256], sizes = [8, 128], strides = [1, 1]} : vector<8x512xf32> to vector<8x128xf32>
    %445 = math.tanh %444 : vector<8x128xf32>
    %446 = vector.extract_strided_slice %431 {offsets = [0, 384], sizes = [8, 128], strides = [1, 1]} : vector<8x512xf32> to vector<8x128xf32>
    %447 = arith.negf %446 : vector<8x128xf32>
    %448 = math.exp %447 : vector<8x128xf32>
    %cst_110 = arith.constant 1.000000e+00 : f32
    %449 = vector.broadcast %cst_110 : f32 to vector<8x128xf32>
    %450 = arith.addf %449, %448 : vector<8x128xf32>
    %451 = arith.divf %449, %450 : vector<8x128xf32>
    %452 = arith.mulf %443, %391 : vector<8x128xf32>
    %453 = arith.mulf %437, %445 : vector<8x128xf32>
    %454 = arith.addf %452, %453 : vector<8x128xf32>
    %455 = math.tanh %454 : vector<8x128xf32>
    %456 = arith.mulf %451, %455 : vector<8x128xf32>
    %457 = arith.index_cast %c6_i32 : i32 to index
    %c0_111 = arith.constant 0 : index
    %c0_112 = arith.constant 0 : index
    %458 = vector.load %arg5[%457, %c0_111, %c0_112] : memref<8x8x128xf32, #tpu.memory_space<vmem>>, vector<1x8x128xf32>
    %459 = vector.shape_cast %458 : vector<1x8x128xf32> to vector<8x128xf32>
    %460 = vector.shape_cast %456 : vector<8x128xf32> to vector<1x8x128xf32>
    tpu.vector_store %arg5[%457, %c0_111, %c0_112], %460 {strides = array<i32>} : memref<8x8x128xf32, #tpu.memory_space<vmem>>, vector<1x8x128xf32>,
    %c7_i32 = arith.constant 7 : i32
    %461 = arith.index_cast %c7_i32 : i32 to index
    %c0_113 = arith.constant 0 : index
    %c0_114 = arith.constant 0 : index
    %462 = vector.load %arg1[%461, %c0_113, %c0_114] : memref<8x8x512xf32, #tpu.memory_space<vmem>>, vector<1x8x512xf32>
    %463 = vector.shape_cast %462 : vector<1x8x512xf32> to vector<8x512xf32>
    %cst_115 = arith.constant dense<0.000000e+00> : vector<8x512xf32>
    %464 = tpu.matmul %427, %4, %cst_115 {dimension_numbers = #tpu.dot_dimension_numbers<[1], [0], [0], [1], [0, 0, 1, 1], [], []>} : vector<8x128xf32>, vector<128x512xf32>, vector<8x512xf32> -> vector<8x512xf32>
    %465 = arith.addf %463, %464 : vector<8x512xf32>
    %466 = vector.extract_strided_slice %465 {offsets = [0, 0], sizes = [8, 128], strides = [1, 1]} : vector<8x512xf32> to vector<8x128xf32>
    %467 = arith.negf %466 : vector<8x128xf32>
    %468 = math.exp %467 : vector<8x128xf32>
    %cst_116 = arith.constant 1.000000e+00 : f32
    %469 = vector.broadcast %cst_116 : f32 to vector<8x128xf32>
    %470 = arith.addf %469, %468 : vector<8x128xf32>
    %471 = arith.divf %469, %470 : vector<8x128xf32>
    %472 = vector.extract_strided_slice %465 {offsets = [0, 128], sizes = [8, 128], strides = [1, 1]} : vector<8x512xf32> to vector<8x128xf32>
    %473 = arith.negf %472 : vector<8x128xf32>
    %474 = math.exp %473 : vector<8x128xf32>
    %cst_117 = arith.constant 1.000000e+00 : f32
    %475 = vector.broadcast %cst_117 : f32 to vector<8x128xf32>
    %476 = arith.addf %475, %474 : vector<8x128xf32>
    %477 = arith.divf %475, %476 : vector<8x128xf32>
    %478 = vector.extract_strided_slice %465 {offsets = [0, 256], sizes = [8, 128], strides = [1, 1]} : vector<8x512xf32> to vector<8x128xf32>
    %479 = math.tanh %478 : vector<8x128xf32>
    %480 = vector.extract_strided_slice %465 {offsets = [0, 384], sizes = [8, 128], strides = [1, 1]} : vector<8x512xf32> to vector<8x128xf32>
    %481 = arith.negf %480 : vector<8x128xf32>
    %482 = math.exp %481 : vector<8x128xf32>
    %cst_118 = arith.constant 1.000000e+00 : f32
    %483 = vector.broadcast %cst_118 : f32 to vector<8x128xf32>
    %484 = arith.addf %483, %482 : vector<8x128xf32>
    %485 = arith.divf %483, %484 : vector<8x128xf32>
    %486 = arith.mulf %477, %425 : vector<8x128xf32>
    %487 = arith.mulf %471, %479 : vector<8x128xf32>
    %488 = arith.addf %486, %487 : vector<8x128xf32>
    %489 = math.tanh %488 : vector<8x128xf32>
    %490 = arith.mulf %485, %489 : vector<8x128xf32>
    %cst_119 = arith.constant dense<0.000000e+00> : vector<8x512xf32>
    %491 = tpu.matmul %490, %8, %cst_119 {dimension_numbers = #tpu.dot_dimension_numbers<[1], [0], [0], [1], [0, 0, 1, 1], [], []>} : vector<8x128xf32>, vector<128x512xf32>, vector<8x512xf32> -> vector<8x512xf32>
    %cst_120 = arith.constant dense<0.000000e+00> : vector<8x512xf32>
    %492 = tpu.matmul %456, %6, %cst_120 {dimension_numbers = #tpu.dot_dimension_numbers<[1], [0], [0], [1], [0, 0, 1, 1], [], []>} : vector<8x128xf32>, vector<128x512xf32>, vector<8x512xf32> -> vector<8x512xf32>
    %493 = arith.addf %491, %492 : vector<8x512xf32>
    %494 = arith.addf %493, %11 : vector<8x512xf32>
    %495 = vector.extract_strided_slice %494 {offsets = [0, 0], sizes = [8, 128], strides = [1, 1]} : vector<8x512xf32> to vector<8x128xf32>
    %496 = arith.negf %495 : vector<8x128xf32>
    %497 = math.exp %496 : vector<8x128xf32>
    %cst_121 = arith.constant 1.000000e+00 : f32
    %498 = vector.broadcast %cst_121 : f32 to vector<8x128xf32>
    %499 = arith.addf %498, %497 : vector<8x128xf32>
    %500 = arith.divf %498, %499 : vector<8x128xf32>
    %501 = vector.extract_strided_slice %494 {offsets = [0, 128], sizes = [8, 128], strides = [1, 1]} : vector<8x512xf32> to vector<8x128xf32>
    %502 = arith.negf %501 : vector<8x128xf32>
    %503 = math.exp %502 : vector<8x128xf32>
    %cst_122 = arith.constant 1.000000e+00 : f32
    %504 = vector.broadcast %cst_122 : f32 to vector<8x128xf32>
    %505 = arith.addf %504, %503 : vector<8x128xf32>
    %506 = arith.divf %504, %505 : vector<8x128xf32>
    %507 = vector.extract_strided_slice %494 {offsets = [0, 256], sizes = [8, 128], strides = [1, 1]} : vector<8x512xf32> to vector<8x128xf32>
    %508 = math.tanh %507 : vector<8x128xf32>
    %509 = vector.extract_strided_slice %494 {offsets = [0, 384], sizes = [8, 128], strides = [1, 1]} : vector<8x512xf32> to vector<8x128xf32>
    %510 = arith.negf %509 : vector<8x128xf32>
    %511 = math.exp %510 : vector<8x128xf32>
    %cst_123 = arith.constant 1.000000e+00 : f32
    %512 = vector.broadcast %cst_123 : f32 to vector<8x128xf32>
    %513 = arith.addf %512, %511 : vector<8x128xf32>
    %514 = arith.divf %512, %513 : vector<8x128xf32>
    %515 = arith.mulf %506, %454 : vector<8x128xf32>
    %516 = arith.mulf %500, %508 : vector<8x128xf32>
    %517 = arith.addf %515, %516 : vector<8x128xf32>
    %518 = math.tanh %517 : vector<8x128xf32>
    %519 = arith.mulf %514, %518 : vector<8x128xf32>
    %520 = arith.index_cast %c7_i32 : i32 to index
    %c0_124 = arith.constant 0 : index
    %c0_125 = arith.constant 0 : index
    %521 = vector.load %arg5[%520, %c0_124, %c0_125] : memref<8x8x128xf32, #tpu.memory_space<vmem>>, vector<1x8x128xf32>
    %522 = vector.shape_cast %521 : vector<1x8x128xf32> to vector<8x128xf32>
    %523 = vector.shape_cast %519 : vector<8x128xf32> to vector<1x8x128xf32>
    tpu.vector_store %arg5[%520, %c0_124, %c0_125], %523 {strides = array<i32>} : memref<8x8x128xf32, #tpu.memory_space<vmem>>, vector<1x8x128xf32>,
    %c8_i32 = arith.constant 8 : i32
    %c0_126 = arith.constant 0 : index
    %c0_127 = arith.constant 0 : index
    %c0_128 = arith.constant 0 : index
    %524 = vector.load %arg8[%c0_126, %c0_127, %c0_128] : memref<2x8x128xf32, #tpu.memory_space<vmem>>, vector<1x8x128xf32>
    %525 = vector.shape_cast %524 : vector<1x8x128xf32> to vector<8x128xf32>
    %526 = vector.shape_cast %490 : vector<8x128xf32> to vector<1x8x128xf32>
    tpu.vector_store %arg8[%c0_126, %c0_127, %c0_128], %526 {strides = array<i32>} : memref<2x8x128xf32, #tpu.memory_space<vmem>>, vector<1x8x128xf32>,
    %c0_129 = arith.constant 0 : index
    %c0_130 = arith.constant 0 : index
    %c0_131 = arith.constant 0 : index
    %527 = vector.load %arg9[%c0_129, %c0_130, %c0_131] : memref<2x8x128xf32, #tpu.memory_space<vmem>>, vector<1x8x128xf32>
    %528 = vector.shape_cast %527 : vector<1x8x128xf32> to vector<8x128xf32>
    %529 = vector.shape_cast %488 : vector<8x128xf32> to vector<1x8x128xf32>
    tpu.vector_store %arg9[%c0_129, %c0_130, %c0_131], %529 {strides = array<i32>} : memref<2x8x128xf32, #tpu.memory_space<vmem>>, vector<1x8x128xf32>,
    %c1_132 = arith.constant 1 : index
    %c0_133 = arith.constant 0 : index
    %c0_134 = arith.constant 0 : index
    %530 = vector.load %arg8[%c1_132, %c0_133, %c0_134] : memref<2x8x128xf32, #tpu.memory_space<vmem>>, vector<1x8x128xf32>
    %531 = vector.shape_cast %530 : vector<1x8x128xf32> to vector<8x128xf32>
    %532 = vector.shape_cast %519 : vector<8x128xf32> to vector<1x8x128xf32>
    tpu.vector_store %arg8[%c1_132, %c0_133, %c0_134], %532 {strides = array<i32>} : memref<2x8x128xf32, #tpu.memory_space<vmem>>, vector<1x8x128xf32>,
    %c1_135 = arith.constant 1 : index
    %c0_136 = arith.constant 0 : index
    %c0_137 = arith.constant 0 : index
    %533 = vector.load %arg9[%c1_135, %c0_136, %c0_137] : memref<2x8x128xf32, #tpu.memory_space<vmem>>, vector<1x8x128xf32>
    %534 = vector.shape_cast %533 : vector<1x8x128xf32> to vector<8x128xf32>
    %535 = vector.shape_cast %517 : vector<8x128xf32> to vector<1x8x128xf32>
    tpu.vector_store %arg9[%c1_135, %c0_136, %c0_137], %535 {strides = array<i32>} : memref<2x8x128xf32, #tpu.memory_space<vmem>>, vector<1x8x128xf32>,
    %c1_i32_138 = arith.constant 1 : i32
    %536 = arith.cmpi eq, %arg0, %c1_i32_138 : i32
    %537 = arith.extui %536 : i1 to i32
    %c0_i32_139 = arith.constant 0 : i32
    %538 = arith.cmpi ne, %537, %c0_i32_139 : i32
    scf.if %538 {
      %c0_140 = arith.constant 0 : index
      %c0_141 = arith.constant 0 : index
      %539 = vector.load %arg6[%c0_140, %c0_141] : memref<8x128xf32, #tpu.memory_space<vmem>>, vector<8x128xf32>
      tpu.vector_store %arg6[%c0_140, %c0_141], %519 {strides = array<i32>} : memref<8x128xf32, #tpu.memory_space<vmem>>, vector<8x128xf32>,
      %c0_142 = arith.constant 0 : index
      %c0_143 = arith.constant 0 : index
      %540 = vector.load %arg7[%c0_142, %c0_143] : memref<8x128xf32, #tpu.memory_space<vmem>>, vector<8x128xf32>
      tpu.vector_store %arg7[%c0_142, %c0_143], %517 {strides = array<i32>} : memref<8x128xf32, #tpu.memory_space<vmem>>, vector<8x128xf32>,
    } else {
    }
    return
  }
  func.func @transform_0(%arg0: i32) -> (i32, i32, i32) {
    %c0_i32 = arith.constant 0 : i32
    %c0_i32_0 = arith.constant 0 : i32
    %c0_i32_1 = arith.constant 0 : i32
    return %arg0, %c0_i32, %c0_i32_0 : i32, i32, i32
  }
  func.func @transform_1(%arg0: i32) -> (i32, i32, i32) {
    %c0_i32 = arith.constant 0 : i32
    %c0_i32_0 = arith.constant 0 : i32
    %c0_i32_1 = arith.constant 0 : i32
    %c0_i32_2 = arith.constant 0 : i32
    return %c0_i32, %c0_i32_0, %c0_i32_1 : i32, i32, i32
  }
  func.func @transform_2(%arg0: i32) -> (i32, i32, i32) {
    %c0_i32 = arith.constant 0 : i32
    %c0_i32_0 = arith.constant 0 : i32
    %c0_i32_1 = arith.constant 0 : i32
    %c0_i32_2 = arith.constant 0 : i32
    return %c0_i32, %c0_i32_0, %c0_i32_1 : i32, i32, i32
  }
  func.func @transform_3(%arg0: i32) -> (i32, i32) {
    %c0_i32 = arith.constant 0 : i32
    %c0_i32_0 = arith.constant 0 : i32
    %c0_i32_1 = arith.constant 0 : i32
    return %c0_i32, %c0_i32_0 : i32, i32
  }
  func.func @transform_4(%arg0: i32) -> (i32, i32, i32) {
    %c0_i32 = arith.constant 0 : i32
    %c0_i32_0 = arith.constant 0 : i32
    %c0_i32_1 = arith.constant 0 : i32
    return %arg0, %c0_i32, %c0_i32_0 : i32, i32, i32
  }
  func.func @transform_5(%arg0: i32) -> (i32, i32) {
    %c0_i32 = arith.constant 0 : i32
    %c0_i32_0 = arith.constant 0 : i32
    %c0_i32_1 = arith.constant 0 : i32
    return %c0_i32, %c0_i32_0 : i32, i32
  }
  func.func @transform_6(%arg0: i32) -> (i32, i32) {
    %c0_i32 = arith.constant 0 : i32
    %c0_i32_0 = arith.constant 0 : i32
    %c0_i32_1 = arith.constant 0 : i32
    return %c0_i32, %c0_i32_0 : i32, i32
  }
}

</mosaic_0001>

<llo_original>
// kernel: lstm_forward.1
$region0: #{lstm_forward.1}
  #allocation0 [shape = 'u32[]', space=smem, size = 0x4, offset = 0x4, fixed_abs, tag = 'smem constant byte address 0x4 - core index']
  #allocation1 [shape = 'u32[72,128]{1,0:T(1,128)}', space=vmem, size = 0x9000, scoped, tag = 'internal scratch']
  #allocation2 [shape = 'f32[2,8,128]{2,1,0:T(8,128)}', space=vmem, size = 0x2000, scoped, tag = 'scratch operand']
  #allocation3 [shape = 'f32[2,8,128]{2,1,0:T(8,128)}', space=vmem, size = 0x2000, scoped, tag = 'scratch operand']
  %s0 = inlined_call_operand.vmem [shape: f32[16,8,512], index: 0, kind: input, shape index: {}]
  %s1 = inlined_call_operand.vmem [shape: f32[1,128,512], index: 1, kind: input, shape index: {}]
  %s2 = inlined_call_operand.vmem [shape: f32[2,128,512], index: 2, kind: input, shape index: {}]
  %s3 = inlined_call_operand.vmem [shape: f32[1,512], index: 3, kind: input, shape index: {}]
  %s4 = inlined_call_operand.vmem [shape: f32[16,8,128], index: 4, kind: output, shape index: {0}]
  %s5 = inlined_call_operand.hbm [shape: f32[8,128], index: 5, kind: output, shape index: {1}]
  %s6 = inlined_call_operand.hbm [shape: f32[8,128], index: 6, kind: output, shape index: {2}]
  %7 = xla_tuple %s4, %s5, %s6
  %s8 = sld [smem:[#allocation0]]
  $region73: #{lstm_forward.1} parent=0
    _
  %s10 = ssub.s32 1, %s8
  %s11 = scalar_select 0, %s10, %s8
  $region1: #{lstm_forward.1} parent=0
    #allocation4 [shape = 'u8[4096]{0}', space=vmem, size = 0x1000, scoped, tag = 'output window, operand 1, single buffered']
    #allocation5 [shape = 's32[2]{0}', space=sflag, size = 0x8, scoped, tag = 'scoped memory for lstm_forward.1']
    #allocation6 [shape = 'u8[4096]{0}', space=vmem, size = 0x1000, scoped, tag = 'output window, operand 2, single buffered']
    #allocation7 [shape = 's32[1]{0}', space=sflag, size = 0x4, scoped, tag = 'scoped memory for lstm_forward.1']
    %12 = vsyncpa [#allocation5], 0
    %13 = vsyncpa [#allocation7], 0
    loop: start=0, step=1, limit=4
    $region2: #{lstm_forward.1} parent=1 // loop_pre_header
      _
    $region3: #{lstm_forward.1} parent=1 // loop_header
      %s15 = sphi 0, %s19
      %p16 = scmp.ge.s32.totalorder %s15, 4
      %s25 = sphi 0, %s27
      %s28 = sphi 0, %s25
      %s29 = sphi 0, %s28
      %s45 = sphi 0, %s29
      %s49 = sphi 0, %s49
      %s51 = sphi 0, %s49
      %s52 = sphi 0, %s51
      %s66 = sphi 0, %s52
      %s70 = sphi 0, %s70
      %s72 = sphi 0, %s70
      %s73 = sphi 0, %s72
      %s87 = sphi 0, %s73
      %s91 = sphi 0, %s91
      %s93 = sphi 0, %s91
      %s94 = sphi 0, %s93
      %s108 = sphi 0, %s94
      %s114 = sphi 0, %s116
      %s117 = sphi 0, %s114
      %s118 = sphi 0, %s117
      %s134 = sphi 0, %s118
      %s138 = sphi 0, %s138
      %s140 = sphi 0, %s138
      %s141 = sphi 0, %s140
      %s155 = sphi 0, %s141
      %s159 = sphi 0, %s159
      %s161 = sphi 0, %s159
      %s162 = sphi 0, %s161
      %s176 = sphi 0, %s162
    $region4: #{lstm_forward.1} parent=1 // loop_header_branch
      %18 = sbr.rel (%p16) target = $region8
    $region5: #{lstm_forward.1} parent=1 // loop_body
      %s20 = ssub.s32 %s15, 1
      %s21 = ssub.s32 %s15, 2
      %s22 = sadd.s32 %s15, 1
      %s23 = ssub.s32 %s15, %s22
      %p24 = scmp.eq.s32.totalorder %s23, 0
      %s26 = sadd.s32 %s25, 1
      %s27 = scalar_select %p24, %s25, %s26
      %p30 = pneg %p24
      %p31 = scmp.eq.s32.totalorder %s15, 1
      %p32 = por %p30, %p31
      %p33 = scmp.ne.s32.totalorder %s25, %s28
      %p34 = scmp.eq.s32.totalorder %s15, 0
      %p35 = por %p33, %p34
      %p36 = scmp.ne.s32.totalorder %s25, %s28
      %p37 = scmp.eq.s32.totalorder %s20, 1
      %p38 = por %p36, %p37
      %p39 = scmp.ne.s32.totalorder %s28, %s29
      %p40 = scmp.eq.s32.totalorder %s20, 0
      %p41 = por %p39, %p40
      %p42 = scmp.ne.s32.totalorder %s28, %s29
      %p43 = scmp.eq.s32.totalorder %s21, 1
      %p44 = por %p42, %p43
      %p46 = scmp.ne.s32.totalorder %s29, %s45
      %p47 = scmp.eq.s32.totalorder %s21, 0
      %p48 = por %p46, %p47
      %s50 = sadd.s32 %s49, 1
      %p53 = scmp.eq.s32.totalorder %s15, 1
      %p54 = scmp.ne.s32.totalorder %s49, %s51
      %p55 = scmp.eq.s32.totalorder %s15, 0
      %p56 = por %p54, %p55
      %p57 = scmp.ne.s32.totalorder %s49, %s51
      %p58 = scmp.eq.s32.totalorder %s20, 1
      %p59 = por %p57, %p58
      %p60 = scmp.ne.s32.totalorder %s51, %s52
      %p61 = scmp.eq.s32.totalorder %s20, 0
      %p62 = por %p60, %p61
      %p63 = scmp.ne.s32.totalorder %s51, %s52
      %p64 = scmp.eq.s32.totalorder %s21, 1
      %p65 = por %p63, %p64
      %p67 = scmp.ne.s32.totalorder %s52, %s66
      %p68 = scmp.eq.s32.totalorder %s21, 0
      %p69 = por %p67, %p68
      %s71 = sadd.s32 %s70, 1
      %p74 = scmp.eq.s32.totalorder %s15, 1
      %p75 = scmp.ne.s32.totalorder %s70, %s72
      %p76 = scmp.eq.s32.totalorder %s15, 0
      %p77 = por %p75, %p76
      %p78 = scmp.ne.s32.totalorder %s70, %s72
      %p79 = scmp.eq.s32.totalorder %s20, 1
      %p80 = por %p78, %p79
      %p81 = scmp.ne.s32.totalorder %s72, %s73
      %p82 = scmp.eq.s32.totalorder %s20, 0
      %p83 = por %p81, %p82
      %p84 = scmp.ne.s32.totalorder %s72, %s73
      %p85 = scmp.eq.s32.totalorder %s21, 1
      %p86 = por %p84, %p85
      %p88 = scmp.ne.s32.totalorder %s73, %s87
      %p89 = scmp.eq.s32.totalorder %s21, 0
      %p90 = por %p88, %p89
      %s92 = sadd.s32 %s91, 1
      %p95 = scmp.eq.s32.totalorder %s15, 1
      %p96 = scmp.ne.s32.totalorder %s91, %s93
      %p97 = scmp.eq.s32.totalorder %s15, 0
      %p98 = por %p96, %p97
      %p99 = scmp.ne.s32.totalorder %s91, %s93
      %p100 = scmp.eq.s32.totalorder %s20, 1
      %p101 = por %p99, %p100
      %p102 = scmp.ne.s32.totalorder %s93, %s94
      %p103 = scmp.eq.s32.totalorder %s20, 0
      %p104 = por %p102, %p103
      %p105 = scmp.ne.s32.totalorder %s93, %s94
      %p106 = scmp.eq.s32.totalorder %s21, 1
      %p107 = por %p105, %p106
      %p109 = scmp.ne.s32.totalorder %s94, %s108
      %p110 = scmp.eq.s32.totalorder %s21, 0
      %p111 = por %p109, %p110
      %s112 = ssub.s32 %s15, %s22
      %p113 = scmp.eq.s32.totalorder %s112, 0
      %s115 = sadd.s32 %s114, 1
      %s116 = scalar_select %p113, %s114, %s115
      %p119 = pneg %p113
      %p120 = scmp.eq.s32.totalorder %s15, 1
      %p121 = por %p119, %p120
      %p122 = scmp.ne.s32.totalorder %s114, %s117
      %p123 = scmp.eq.s32.totalorder %s15, 0
      %p124 = por %p122, %p123
      %p125 = scmp.ne.s32.totalorder %s114, %s117
      %p126 = scmp.eq.s32.totalorder %s20, 1
      %p127 = por %p125, %p126
      %p128 = scmp.ne.s32.totalorder %s117, %s118
      %p129 = scmp.eq.s32.totalorder %s20, 0
      %p130 = por %p128, %p129
      %p131 = scmp.ne.s32.totalorder %s117, %s118
      %p132 = scmp.eq.s32.totalorder %s21, 1
      %p133 = por %p131, %p132
      %p135 = scmp.ne.s32.totalorder %s118, %s134
      %p136 = scmp.eq.s32.totalorder %s21, 0
      %p137 = por %p135, %p136
      %s139 = sadd.s32 %s138, 1
      %p142 = scmp.eq.s32.totalorder %s15, 1
      %p143 = scmp.ne.s32.totalorder %s138, %s140
      %p144 = scmp.eq.s32.totalorder %s15, 0
      %p145 = por %p143, %p144
      %p146 = scmp.ne.s32.totalorder %s138, %s140
      %p147 = scmp.eq.s32.totalorder %s20, 1
      %p148 = por %p146, %p147
      %p149 = scmp.ne.s32.totalorder %s140, %s141
      %p150 = scmp.eq.s32.totalorder %s20, 0
      %p151 = por %p149, %p150
      %p152 = scmp.ne.s32.totalorder %s140, %s141
      %p153 = scmp.eq.s32.totalorder %s21, 1
      %p154 = por %p152, %p153
      %p156 = scmp.ne.s32.totalorder %s141, %s155
      %p157 = scmp.eq.s32.totalorder %s21, 0
      %p158 = por %p156, %p157
      %s160 = sadd.s32 %s159, 1
      %p163 = scmp.eq.s32.totalorder %s15, 1
      %p164 = scmp.ne.s32.totalorder %s159, %s161
      %p165 = scmp.eq.s32.totalorder %s15, 0
      %p166 = por %p164, %p165
      %p167 = scmp.ne.s32.totalorder %s159, %s161
      %p168 = scmp.eq.s32.totalorder %s20, 1
      %p169 = por %p167, %p168
      %p170 = scmp.ne.s32.totalorder %s161, %s162
      %p171 = scmp.eq.s32.totalorder %s20, 0
      %p172 = por %p170, %p171
      %p173 = scmp.ne.s32.totalorder %s161, %s162
      %p174 = scmp.eq.s32.totalorder %s21, 1
      %p175 = por %p173, %p174
      %p177 = scmp.ne.s32.totalorder %s162, %s176
      %p178 = scmp.eq.s32.totalorder %s21, 0
      %p179 = por %p177, %p178
      %p180 = scmp.le.s32.totalorder 1, %s15
      %p181 = scmp.lt.s32.totalorder %s15, 3
      %p182 = pnand %p180, %p181
      %p183 = pneg %p182
      // Predicated region
      $region9: #{lstm_forward.1} parent=5 // pred_check
        _
      $region10: #{lstm_forward.1} parent=5 // pred_check_branch
        %185 = sbr.rel (%p182) target = $region12
      $region11: #{lstm_forward.1} parent=5 // pred_region
        %s186 = ssub.s32 %s15, 1
        // Predicated region
        $region13: #{lstm_forward.1} parent=11 // pred_check
          %p187 = pneg %p62
        $region14: #{lstm_forward.1} parent=11 // pred_check_branch
          %189 = sbr.rel (%p187) target = $region16
        $region15: #{lstm_forward.1} parent=11 // pred_region
          _
        $region16: #{lstm_forward.1} parent=11 // pred_fallthru
          _
        // Predicated region
        $region17: #{lstm_forward.1} parent=11 // pred_check
          %p190 = pneg %p83
        $region18: #{lstm_forward.1} parent=11 // pred_check_branch
          %192 = sbr.rel (%p190) target = $region20
        $region19: #{lstm_forward.1} parent=11 // pred_region
          _
        $region20: #{lstm_forward.1} parent=11 // pred_fallthru
          _
        // Predicated region
        $region21: #{lstm_forward.1} parent=11 // pred_check
          %p193 = pneg %p104
        $region22: #{lstm_forward.1} parent=11 // pred_check_branch
          %195 = sbr.rel (%p193) target = $region24
        $region23: #{lstm_forward.1} parent=11 // pred_region
          _
        $region24: #{lstm_forward.1} parent=11 // pred_fallthru
          _
      $region12: #{lstm_forward.1} parent=5 // pred_fallthru
        _
      %p196 = scmp.lt.s32.totalorder %s15, 2
      // Predicated region
      $region25: #{lstm_forward.1} parent=5 // pred_check
        %p197 = pneg %p196
      $region26: #{lstm_forward.1} parent=5 // pred_check_branch
        %199 = sbr.rel (%p197) target = $region28
      $region27: #{lstm_forward.1} parent=5 // pred_region
        // Predicated region
        $region29: #{lstm_forward.1} parent=27 // pred_check
          %p200 = pneg %p35
        $region30: #{lstm_forward.1} parent=27 // pred_check_branch
          %202 = sbr.rel (%p200) target = $region32
        $region31: #{lstm_forward.1} parent=27 // pred_region
          %s203 = smul.u32 8, %s15
          %p204 = scmp.lt.s32.totalorder %s203, 15
          %s205 = scalar_select %p204, %s203, 15
          %s206 = smul.addr %s205, 4
          %s207 = smul.addr %s206, 8
          %s208 = scalar_lea.vmem %s0, %s207
          %s209 = smul.u32 8, %s15
        $region32: #{lstm_forward.1} parent=27 // pred_fallthru
          _
      $region28: #{lstm_forward.1} parent=5 // pred_fallthru
        _
      %p210 = scmp.le.s32.totalorder 1, %s15
      %p211 = scmp.lt.s32.totalorder %s15, 3
      %p212 = pnand %p210, %p211
      %p213 = pneg %p212
      // Predicated region
      $region33: #{lstm_forward.1} parent=5 // pred_check
        _
      $region34: #{lstm_forward.1} parent=5 // pred_check_branch
        %215 = sbr.rel (%p212) target = $region36
      $region35: #{lstm_forward.1} parent=5 // pred_region
        %s216 = ssub.s32 %s15, 1
        %s217 = smul.u32 8, %s20
        %p218 = scmp.lt.s32.totalorder %s217, 15
        %s219 = scalar_select %p218, %s217, 15
        %s220 = smul.addr %s219, 4
        %s221 = smul.addr %s220, 8
        %s222 = scalar_lea.vmem %s0, %s221
        %p223 = pneg %p41
        %p224 = pneg %p38
        %p225 = pneg %p62
        %p226 = pneg %p59
        %p227 = pneg %p83
        %p228 = pneg %p80
        %p229 = pneg %p104
        %p230 = pneg %p101
        %p231 = pneg %p130
        %p232 = pneg %p127
        %s233 = smul.u32 8, %s20
        %p234 = scmp.lt.s32.totalorder %s233, 15
        %s235 = scalar_select %p234, %s233, 15
        %s236 = smul.addr %s235, 8
        %s237 = scalar_lea.vmem %s4, %s236
        %p238 = pneg %p151
        %p239 = pneg %p148
        %p240 = pneg %p172
        %p241 = pneg %p169
        %s242 = smul.u32 8, %s20
        %p243 = scmp.lt.s32.totalorder %s242, 15
        %s244 = scalar_select %p243, %s242, 15
        %s245 = smul.addr %s244, 4
        %s246 = smul.addr %s245, 8
        %s247 = scalar_lea.vmem %s0, %s246
        %s248 = smul.u32 8, %s20
        %s249 = smul.u32 8, %s20
        %p250 = scmp.lt.s32.totalorder %s249, 15
        %s251 = scalar_select %p250, %s249, 15
        %s252 = smul.addr %s251, 8
        %s253 = scalar_lea.vmem %s4, %s252
        %s254 = smul.u32 8, %s20
        %p255 = scmp.eq.s32.totalorder %s20, 0
        // Predicated region
        $region37: #{lstm_forward.1} parent=35 // pred_check
          %p256 = pneg %p255
        $region38: #{lstm_forward.1} parent=35 // pred_check_branch
          %258 = sbr.rel (%p256) target = $region40
        $region39: #{lstm_forward.1} parent=35 // pred_region
          %259 = vst [vmem:[#allocation2] sm:$0xff] 0.0
          %260 = vst [vmem:[#allocation2 + $0x8] sm:$0xff] 0.0
          %261 = vst [vmem:[#allocation3] sm:$0xff] 0.0
          %262 = vst [vmem:[#allocation3 + $0x8] sm:$0xff] 0.0
        $region40: #{lstm_forward.1} parent=35 // pred_fallthru
          _
        %v263 = vld [vmem:[%s2] sm:$0xff]
        %v264 = vld [vmem:[%s2 + $0x8] sm:$0xff]
        %v265 = vld [vmem:[%s2 + $0x10] sm:$0xff]
        %v266 = vld [vmem:[%s2 + $0x18] sm:$0xff]
        %v267 = vld [vmem:[%s2 + $0x20] sm:$0xff]
        %v268 = vld [vmem:[%s2 + $0x28] sm:$0xff]
        %v269 = vld [vmem:[%s2 + $0x30] sm:$0xff]
        %v270 = vld [vmem:[%s2 + $0x38] sm:$0xff]
        %v271 = vld [vmem:[%s2 + $0x40] sm:$0xff]
        %v272 = vld [vmem:[%s2 + $0x48] sm:$0xff]
        %v273 = vld [vmem:[%s2 + $0x50] sm:$0xff]
        %v274 = vld [vmem:[%s2 + $0x58] sm:$0xff]
        %v275 = vld [vmem:[%s2 + $0x60] sm:$0xff]
        %v276 = vld [vmem:[%s2 + $0x68] sm:$0xff]
        %v277 = vld [vmem:[%s2 + $0x70] sm:$0xff]
        %v278 = vld [vmem:[%s2 + $0x78] sm:$0xff]
        %v279 = vld [vmem:[%s2 + $0x80] sm:$0xff]
        %v280 = vld [vmem:[%s2 + $0x88] sm:$0xff]
        %v281 = vld [vmem:[%s2 + $0x90] sm:$0xff]
        %v282 = vld [vmem:[%s2 + $0x98] sm:$0xff]
        %v283 = vld [vmem:[%s2 + $0xa0] sm:$0xff]
        %v284 = vld [vmem:[%s2 + $0xa8] sm:$0xff]
        %v285 = vld [vmem:[%s2 + $0xb0] sm:$0xff]
        %v286 = vld [vmem:[%s2 + $0xb8] sm:$0xff]
        %v287 = vld [vmem:[%s2 + $0xc0] sm:$0xff]
        %v288 = vld [vmem:[%s2 + $0xc8] sm:$0xff]
        %v289 = vld [vmem:[%s2 + $0xd0] sm:$0xff]
        %v290 = vld [vmem:[%s2 + $0xd8] sm:$0xff]
        %v291 = vld [vmem:[%s2 + $0xe0] sm:$0xff]
        %v292 = vld [vmem:[%s2 + $0xe8] sm:$0xff]
        %v293 = vld [vmem:[%s2 + $0xf0] sm:$0xff]
        %v294 = vld [vmem:[%s2 + $0xf8] sm:$0xff]
        %v295 = vld [vmem:[%s2 + $0x100] sm:$0xff]
        %v296 = vld [vmem:[%s2 + $0x108] sm:$0xff]
        %v297 = vld [vmem:[%s2 + $0x110] sm:$0xff]
        %v298 = vld [vmem:[%s2 + $0x118] sm:$0xff]
        %v299 = vld [vmem:[%s2 + $0x120] sm:$0xff]
        %v300 = vld [vmem:[%s2 + $0x128] sm:$0xff]
        %v301 = vld [vmem:[%s2 + $0x130] sm:$0xff]
        %v302 = vld [vmem:[%s2 + $0x138] sm:$0xff]
        %v303 = vld [vmem:[%s2 + $0x140] sm:$0xff]
        %v304 = vld [vmem:[%s2 + $0x148] sm:$0xff]
        %v305 = vld [vmem:[%s2 + $0x150] sm:$0xff]
        %v306 = vld [vmem:[%s2 + $0x158] sm:$0xff]
        %v307 = vld [vmem:[%s2 + $0x160] sm:$0xff]
        %v308 = vld [vmem:[%s2 + $0x168] sm:$0xff]
        %v309 = vld [vmem:[%s2 + $0x170] sm:$0xff]
        %v310 = vld [vmem:[%s2 + $0x178] sm:$0xff]
        %v311 = vld [vmem:[%s2 + $0x180] sm:$0xff]
        %v312 = vld [vmem:[%s2 + $0x188] sm:$0xff]
        %v313 = vld [vmem:[%s2 + $0x190] sm:$0xff]
        %v314 = vld [vmem:[%s2 + $0x198] sm:$0xff]
        %v315 = vld [vmem:[%s2 + $0x1a0] sm:$0xff]
        %v316 = vld [vmem:[%s2 + $0x1a8] sm:$0xff]
        %v317 = vld [vmem:[%s2 + $0x1b0] sm:$0xff]
        %v318 = vld [vmem:[%s2 + $0x1b8] sm:$0xff]
        %v319 = vld [vmem:[%s2 + $0x1c0] sm:$0xff]
        %v320 = vld [vmem:[%s2 + $0x1c8] sm:$0xff]
        %v321 = vld [vmem:[%s2 + $0x1d0] sm:$0xff]
        %v322 = vld [vmem:[%s2 + $0x1d8] sm:$0xff]
        %v323 = vld [vmem:[%s2 + $0x1e0] sm:$0xff]
        %v324 = vld [vmem:[%s2 + $0x1e8] sm:$0xff]
        %v325 = vld [vmem:[%s2 + $0x1f0] sm:$0xff]
        %v326 = vld [vmem:[%s2 + $0x1f8] sm:$0xff]
        %s327 = scalar_lea.vmem %s2, 512
        %v328 = vld [vmem:[%s327] sm:$0xff]
        %v329 = vld [vmem:[%s327 + $0x8] sm:$0xff]
        %v330 = vld [vmem:[%s327 + $0x10] sm:$0xff]
        %v331 = vld [vmem:[%s327 + $0x18] sm:$0xff]
        %v332 = vld [vmem:[%s327 + $0x20] sm:$0xff]
        %v333 = vld [vmem:[%s327 + $0x28] sm:$0xff]
        %v334 = vld [vmem:[%s327 + $0x30] sm:$0xff]
        %v335 = vld [vmem:[%s327 + $0x38] sm:$0xff]
        %v336 = vld [vmem:[%s327 + $0x40] sm:$0xff]
        %v337 = vld [vmem:[%s327 + $0x48] sm:$0xff]
        %v338 = vld [vmem:[%s327 + $0x50] sm:$0xff]
        %v339 = vld [vmem:[%s327 + $0x58] sm:$0xff]
        %v340 = vld [vmem:[%s327 + $0x60] sm:$0xff]
        %v341 = vld [vmem:[%s327 + $0x68] sm:$0xff]
        %v342 = vld [vmem:[%s327 + $0x70] sm:$0xff]
        %v343 = vld [vmem:[%s327 + $0x78] sm:$0xff]
        %v344 = vld [vmem:[%s327 + $0x80] sm:$0xff]
        %v345 = vld [vmem:[%s327 + $0x88] sm:$0xff]
        %v346 = vld [vmem:[%s327 + $0x90] sm:$0xff]
        %v347 = vld [vmem:[%s327 + $0x98] sm:$0xff]
        %v348 = vld [vmem:[%s327 + $0xa0] sm:$0xff]
        %v349 = vld [vmem:[%s327 + $0xa8] sm:$0xff]
        %v350 = vld [vmem:[%s327 + $0xb0] sm:$0xff]
        %v351 = vld [vmem:[%s327 + $0xb8] sm:$0xff]
        %v352 = vld [vmem:[%s327 + $0xc0] sm:$0xff]
        %v353 = vld [vmem:[%s327 + $0xc8] sm:$0xff]
        %v354 = vld [vmem:[%s327 + $0xd0] sm:$0xff]
        %v355 = vld [vmem:[%s327 + $0xd8] sm:$0xff]
        %v356 = vld [vmem:[%s327 + $0xe0] sm:$0xff]
        %v357 = vld [vmem:[%s327 + $0xe8] sm:$0xff]
        %v358 = vld [vmem:[%s327 + $0xf0] sm:$0xff]
        %v359 = vld [vmem:[%s327 + $0xf8] sm:$0xff]
        %v360 = vld [vmem:[%s327 + $0x100] sm:$0xff]
        %v361 = vld [vmem:[%s327 + $0x108] sm:$0xff]
        %v362 = vld [vmem:[%s327 + $0x110] sm:$0xff]
        %v363 = vld [vmem:[%s327 + $0x118] sm:$0xff]
        %v364 = vld [vmem:[%s327 + $0x120] sm:$0xff]
        %v365 = vld [vmem:[%s327 + $0x128] sm:$0xff]
        %v366 = vld [vmem:[%s327 + $0x130] sm:$0xff]
        %v367 = vld [vmem:[%s327 + $0x138] sm:$0xff]
        %v368 = vld [vmem:[%s327 + $0x140] sm:$0xff]
        %v369 = vld [vmem:[%s327 + $0x148] sm:$0xff]
        %v370 = vld [vmem:[%s327 + $0x150] sm:$0xff]
        %v371 = vld [vmem:[%s327 + $0x158] sm:$0xff]
        %v372 = vld [vmem:[%s327 + $0x160] sm:$0xff]
        %v373 = vld [vmem:[%s327 + $0x168] sm:$0xff]
        %v374 = vld [vmem:[%s327 + $0x170] sm:$0xff]
        %v375 = vld [vmem:[%s327 + $0x178] sm:$0xff]
        %v376 = vld [vmem:[%s327 + $0x180] sm:$0xff]
        %v377 = vld [vmem:[%s327 + $0x188] sm:$0xff]
        %v378 = vld [vmem:[%s327 + $0x190] sm:$0xff]
        %v379 = vld [vmem:[%s327 + $0x198] sm:$0xff]
        %v380 = vld [vmem:[%s327 + $0x1a0] sm:$0xff]
        %v381 = vld [vmem:[%s327 + $0x1a8] sm:$0xff]
        %v382 = vld [vmem:[%s327 + $0x1b0] sm:$0xff]
        %v383 = vld [vmem:[%s327 + $0x1b8] sm:$0xff]
        %v384 = vld [vmem:[%s327 + $0x1c0] sm:$0xff]
        %v385 = vld [vmem:[%s327 + $0x1c8] sm:$0xff]
        %v386 = vld [vmem:[%s327 + $0x1d0] sm:$0xff]
        %v387 = vld [vmem:[%s327 + $0x1d8] sm:$0xff]
        %v388 = vld [vmem:[%s327 + $0x1e0] sm:$0xff]
        %v389 = vld [vmem:[%s327 + $0x1e8] sm:$0xff]
        %v390 = vld [vmem:[%s327 + $0x1f0] sm:$0xff]
        %v391 = vld [vmem:[%s327 + $0x1f8] sm:$0xff]
        %v392 = vld [vmem:[%s1] sm:$0xff]
        %v393 = vld [vmem:[%s1 + $0x8] sm:$0xff]
        %v394 = vld [vmem:[%s1 + $0x10] sm:$0xff]
        %v395 = vld [vmem:[%s1 + $0x18] sm:$0xff]
        %v396 = vld [vmem:[%s1 + $0x20] sm:$0xff]
        %v397 = vld [vmem:[%s1 + $0x28] sm:$0xff]
        %v398 = vld [vmem:[%s1 + $0x30] sm:$0xff]
        %v399 = vld [vmem:[%s1 + $0x38] sm:$0xff]
        %v400 = vld [vmem:[%s1 + $0x40] sm:$0xff]
        %v401 = vld [vmem:[%s1 + $0x48] sm:$0xff]
        %v402 = vld [vmem:[%s1 + $0x50] sm:$0xff]
        %v403 = vld [vmem:[%s1 + $0x58] sm:$0xff]
        %v404 = vld [vmem:[%s1 + $0x60] sm:$0xff]
        %v405 = vld [vmem:[%s1 + $0x68] sm:$0xff]
        %v406 = vld [vmem:[%s1 + $0x70] sm:$0xff]
        %v407 = vld [vmem:[%s1 + $0x78] sm:$0xff]
        %v408 = vld [vmem:[%s1 + $0x80] sm:$0xff]
        %v409 = vld [vmem:[%s1 + $0x88] sm:$0xff]
        %v410 = vld [vmem:[%s1 + $0x90] sm:$0xff]
        %v411 = vld [vmem:[%s1 + $0x98] sm:$0xff]
        %v412 = vld [vmem:[%s1 + $0xa0] sm:$0xff]
        %v413 = vld [vmem:[%s1 + $0xa8] sm:$0xff]
        %v414 = vld [vmem:[%s1 + $0xb0] sm:$0xff]
        %v415 = vld [vmem:[%s1 + $0xb8] sm:$0xff]
        %v416 = vld [vmem:[%s1 + $0xc0] sm:$0xff]
        %v417 = vld [vmem:[%s1 + $0xc8] sm:$0xff]
        %v418 = vld [vmem:[%s1 + $0xd0] sm:$0xff]
        %v419 = vld [vmem:[%s1 + $0xd8] sm:$0xff]
        %v420 = vld [vmem:[%s1 + $0xe0] sm:$0xff]
        %v421 = vld [vmem:[%s1 + $0xe8] sm:$0xff]
        %v422 = vld [vmem:[%s1 + $0xf0] sm:$0xff]
        %v423 = vld [vmem:[%s1 + $0xf8] sm:$0xff]
        %v424 = vld [vmem:[%s1 + $0x100] sm:$0xff]
        %v425 = vld [vmem:[%s1 + $0x108] sm:$0xff]
        %v426 = vld [vmem:[%s1 + $0x110] sm:$0xff]
        %v427 = vld [vmem:[%s1 + $0x118] sm:$0xff]
        %v428 = vld [vmem:[%s1 + $0x120] sm:$0xff]
        %v429 = vld [vmem:[%s1 + $0x128] sm:$0xff]
        %v430 = vld [vmem:[%s1 + $0x130] sm:$0xff]
        %v431 = vld [vmem:[%s1 + $0x138] sm:$0xff]
        %v432 = vld [vmem:[%s1 + $0x140] sm:$0xff]
        %v433 = vld [vmem:[%s1 + $0x148] sm:$0xff]
        %v434 = vld [vmem:[%s1 + $0x150] sm:$0xff]
        %v435 = vld [vmem:[%s1 + $0x158] sm:$0xff]
        %v436 = vld [vmem:[%s1 + $0x160] sm:$0xff]
        %v437 = vld [vmem:[%s1 + $0x168] sm:$0xff]
        %v438 = vld [vmem:[%s1 + $0x170] sm:$0xff]
        %v439 = vld [vmem:[%s1 + $0x178] sm:$0xff]
        %v440 = vld [vmem:[%s1 + $0x180] sm:$0xff]
        %v441 = vld [vmem:[%s1 + $0x188] sm:$0xff]
        %v442 = vld [vmem:[%s1 + $0x190] sm:$0xff]
        %v443 = vld [vmem:[%s1 + $0x198] sm:$0xff]
        %v444 = vld [vmem:[%s1 + $0x1a0] sm:$0xff]
        %v445 = vld [vmem:[%s1 + $0x1a8] sm:$0xff]
        %v446 = vld [vmem:[%s1 + $0x1b0] sm:$0xff]
        %v447 = vld [vmem:[%s1 + $0x1b8] sm:$0xff]
        %v448 = vld [vmem:[%s1 + $0x1c0] sm:$0xff]
        %v449 = vld [vmem:[%s1 + $0x1c8] sm:$0xff]
        %v450 = vld [vmem:[%s1 + $0x1d0] sm:$0xff]
        %v451 = vld [vmem:[%s1 + $0x1d8] sm:$0xff]
        %v452 = vld [vmem:[%s1 + $0x1e0] sm:$0xff]
        %v453 = vld [vmem:[%s1 + $0x1e8] sm:$0xff]
        %v454 = vld [vmem:[%s1 + $0x1f0] sm:$0xff]
        %v455 = vld [vmem:[%s1 + $0x1f8] sm:$0xff]
        %v456 = vld [vmem:[%s3] sm:$0xf]
        %v458 = vperm.slane %v456, 0
        %v459 = vperm.slane %v456, 1
        %v460 = vperm.slane %v456, 2
        %v461 = vperm.slane %v456, 3
        %v466 = vld [vmem:[#allocation2] sm:$0xff]
        %s467 = scalar_lea.vmem [#allocation2], 8
        %v468 = vld [vmem:[%s467] sm:$0xff]
        %v469 = vld [vmem:[#allocation3] sm:$0xff]
        %s470 = scalar_lea.vmem [#allocation3], 8
        %v471 = vld [vmem:[%s470] sm:$0xff]
        %v472 = vld [vmem:[%s247] sm:$0xff]
        %v473 = vld [vmem:[%s247 + $0x8] sm:$0xff]
        %v474 = vld [vmem:[%s247 + $0x10] sm:$0xff]
        %v475 = vld [vmem:[%s247 + $0x18] sm:$0xff]
        %476 = vmatpush.msra.mxu0 %v323
        %477 = vmatpush.msra.mxu0 %v319
        %478 = vmatpush.msra.mxu0 %v315
        %479 = vmatpush.msra.mxu0 %v311
        %480 = vmatpush.msra.mxu0 %v307
        %481 = vmatpush.msra.mxu0 %v303
        %482 = vmatpush.msra.mxu0 %v299
        %483 = vmatpush.msra.mxu0 %v295
        %484 = vmatpush.msra.mxu0 %v291
        %485 = vmatpush.msra.mxu0 %v287
        %486 = vmatpush.msra.mxu0 %v283
        %487 = vmatpush.msra.mxu0 %v279
        %488 = vmatpush.msra.mxu0 %v275
        %489 = vmatpush.msra.mxu0 %v271
        %490 = vmatpush.msra.mxu0 %v267
        %491 = vmatpush.msra.mxu0 %v263
        %492 = vmatmul.f32.gmra.mxu0 %v466
        %v493 = vpop.f32.mrf.mxu0
        %v494 = vadd.f32 0.0, %v493
        %495 = vdwg.mxu0
        %496 = vmatpush.msra.mxu0 %v324
        %497 = vmatpush.msra.mxu0 %v320
        %498 = vmatpush.msra.mxu0 %v316
        %499 = vmatpush.msra.mxu0 %v312
        %500 = vmatpush.msra.mxu0 %v308
        %501 = vmatpush.msra.mxu0 %v304
        %502 = vmatpush.msra.mxu0 %v300
        %503 = vmatpush.msra.mxu0 %v296
        %504 = vmatpush.msra.mxu0 %v292
        %505 = vmatpush.msra.mxu0 %v288
        %506 = vmatpush.msra.mxu0 %v284
        %507 = vmatpush.msra.mxu0 %v280
        %508 = vmatpush.msra.mxu0 %v276
        %509 = vmatpush.msra.mxu0 %v272
        %510 = vmatpush.msra.mxu0 %v268
        %511 = vmatpush.msra.mxu0 %v264
        %512 = vmatmul.f32.gmra.mxu0 %v466
        %v513 = vpop.f32.mrf.mxu0
        %v514 = vadd.f32 0.0, %v513
        %515 = vdwg.mxu0
        %516 = vmatpush.msra.mxu0 %v325
        %517 = vmatpush.msra.mxu0 %v321
        %518 = vmatpush.msra.mxu0 %v317
        %519 = vmatpush.msra.mxu0 %v313
        %520 = vmatpush.msra.mxu0 %v309
        %521 = vmatpush.msra.mxu0 %v305
        %522 = vmatpush.msra.mxu0 %v301
        %523 = vmatpush.msra.mxu0 %v297
        %524 = vmatpush.msra.mxu0 %v293
        %525 = vmatpush.msra.mxu0 %v289
        %526 = vmatpush.msra.mxu0 %v285
        %527 = vmatpush.msra.mxu0 %v281
        %528 = vmatpush.msra.mxu0 %v277
        %529 = vmatpush.msra.mxu0 %v273
        %530 = vmatpush.msra.mxu0 %v269
        %531 = vmatpush.msra.mxu0 %v265
        %532 = vmatmul.f32.gmra.mxu0 %v466
        %v533 = vpop.f32.mrf.mxu0
        %v534 = vadd.f32 0.0, %v533
        %535 = vdwg.mxu0
        %536 = vmatpush.msra.mxu0 %v326
        %537 = vmatpush.msra.mxu0 %v322
        %538 = vmatpush.msra.mxu0 %v318
        %539 = vmatpush.msra.mxu0 %v314
        %540 = vmatpush.msra.mxu0 %v310
        %541 = vmatpush.msra.mxu0 %v306
        %542 = vmatpush.msra.mxu0 %v302
        %543 = vmatpush.msra.mxu0 %v298
        %544 = vmatpush.msra.mxu0 %v294
        %545 = vmatpush.msra.mxu0 %v290
        %546 = vmatpush.msra.mxu0 %v286
        %547 = vmatpush.msra.mxu0 %v282
        %548 = vmatpush.msra.mxu0 %v278
        %549 = vmatpush.msra.mxu0 %v274
        %550 = vmatpush.msra.mxu0 %v270
        %551 = vmatpush.msra.mxu0 %v266
        %552 = vmatmul.f32.gmra.mxu0 %v466
        %v553 = vpop.f32.mrf.mxu0
        %v554 = vadd.f32 0.0, %v553
        %555 = vdwg.mxu0
        %v556 = vadd.f32 %v472, %v494
        %v557 = vadd.f32 %v473, %v514
        %v558 = vadd.f32 %v474, %v534
        %v559 = vadd.f32 %v475, %v554
        %v560 = vxor.u32 %v556, 2147483648
        %v561 = vmul.f32 %v560, 1.442695
        %v562 = vpow.pop %v561
        %v563 = vadd.f32 %v562, 1.0
        %v564 = vrcp.pop %v563
        %v565 = vmul.f32 %v563, %v564
        %v566 = vsub.f32 1.0, %v565
        %v567 = vmul.f32 %v564, %v566
        %v568 = vadd.f32 %v564, %v567
        %vm569 = vweird.f32 %v563
        %vm570 = vweird.f32 %v564
        %vm571 = vmor %vm569, %vm570
        %v572 = vsel %vm571, %v564, %v568
        %v573 = vand.u32 2147483647, %v563
        %vm574 = vcmp.eq.f32.partialorder %v573, 8.507059e+37
        %v575 = vand.u32 %v563, 2147483648
        %v576 = vor.u32 1.1754944e-38, %v575
        %v577 = vsel %vm574, %v576, %v572
        %v578 = vmul.f32 1.0, %v577
        %v579 = vxor.u32 %v557, 2147483648
        %v580 = vmul.f32 %v579, 1.442695
        %v581 = vpow.pop %v580
        %v582 = vadd.f32 %v581, 1.0
        %v583 = vrcp.pop %v582
        %v584 = vmul.f32 %v582, %v583
        %v585 = vsub.f32 1.0, %v584
        %v586 = vmul.f32 %v583, %v585
        %v587 = vadd.f32 %v583, %v586
        %vm588 = vweird.f32 %v582
        %vm589 = vweird.f32 %v583
        %vm590 = vmor %vm588, %vm589
        %v591 = vsel %vm590, %v583, %v587
        %v592 = vand.u32 2147483647, %v582
        %vm593 = vcmp.eq.f32.partialorder %v592, 8.507059e+37
        %v594 = vand.u32 %v582, 2147483648
        %v595 = vor.u32 1.1754944e-38, %v594
        %v596 = vsel %vm593, %v595, %v591
        %v597 = vmul.f32 1.0, %v596
        %v598 = vtanh.pop %v558
        %v599 = vxor.u32 %v559, 2147483648
        %v600 = vmul.f32 %v599, 1.442695
        %v601 = vpow.pop %v600
        %v602 = vadd.f32 %v601, 1.0
        %v603 = vrcp.pop %v602
        %v604 = vmul.f32 %v602, %v603
        %v605 = vsub.f32 1.0, %v604
        %v606 = vmul.f32 %v603, %v605
        %v607 = vadd.f32 %v603, %v606
        %vm608 = vweird.f32 %v602
        %vm609 = vweird.f32 %v603
        %vm610 = vmor %vm608, %vm609
        %v611 = vsel %vm610, %v603, %v607
        %v612 = vand.u32 2147483647, %v602
        %vm613 = vcmp.eq.f32.partialorder %v612, 8.507059e+37
        %v614 = vand.u32 %v602, 2147483648
        %v615 = vor.u32 1.1754944e-38, %v614
        %v616 = vsel %vm613, %v615, %v611
        %v617 = vmul.f32 1.0, %v616
        %v618 = vmul.f32 %v597, %v469
        %v619 = vmul.f32 %v578, %v598
        %v620 = vadd.f32 %v618, %v619
        %v621 = vtanh.pop %v620
        %v622 = vmul.f32 %v617, %v621
        %623 = vmatpush.msra.mxu0 %v388
        %624 = vmatpush.msra.mxu0 %v384
        %625 = vmatpush.msra.mxu0 %v380
        %626 = vmatpush.msra.mxu0 %v376
        %627 = vmatpush.msra.mxu0 %v372
        %628 = vmatpush.msra.mxu0 %v368
        %629 = vmatpush.msra.mxu0 %v364
        %630 = vmatpush.msra.mxu0 %v360
        %631 = vmatpush.msra.mxu0 %v356
        %632 = vmatpush.msra.mxu0 %v352
        %633 = vmatpush.msra.mxu0 %v348
        %634 = vmatpush.msra.mxu0 %v344
        %635 = vmatpush.msra.mxu0 %v340
        %636 = vmatpush.msra.mxu0 %v336
        %637 = vmatpush.msra.mxu0 %v332
        %638 = vmatpush.msra.mxu0 %v328
        %639 = vmatmul.f32.gmra.mxu0 %v468
        %v640 = vpop.f32.mrf.mxu0
        %v641 = vadd.f32 0.0, %v640
        %642 = vdwg.mxu0
        %643 = vmatpush.msra.mxu0 %v389
        %644 = vmatpush.msra.mxu0 %v385
        %645 = vmatpush.msra.mxu0 %v381
        %646 = vmatpush.msra.mxu0 %v377
        %647 = vmatpush.msra.mxu0 %v373
        %648 = vmatpush.msra.mxu0 %v369
        %649 = vmatpush.msra.mxu0 %v365
        %650 = vmatpush.msra.mxu0 %v361
        %651 = vmatpush.msra.mxu0 %v357
        %652 = vmatpush.msra.mxu0 %v353
        %653 = vmatpush.msra.mxu0 %v349
        %654 = vmatpush.msra.mxu0 %v345
        %655 = vmatpush.msra.mxu0 %v341
        %656 = vmatpush.msra.mxu0 %v337
        %657 = vmatpush.msra.mxu0 %v333
        %658 = vmatpush.msra.mxu0 %v329
        %659 = vmatmul.f32.gmra.mxu0 %v468
        %v660 = vpop.f32.mrf.mxu0
        %v661 = vadd.f32 0.0, %v660
        %662 = vdwg.mxu0
        %663 = vmatpush.msra.mxu0 %v390
        %664 = vmatpush.msra.mxu0 %v386
        %665 = vmatpush.msra.mxu0 %v382
        %666 = vmatpush.msra.mxu0 %v378
        %667 = vmatpush.msra.mxu0 %v374
        %668 = vmatpush.msra.mxu0 %v370
        %669 = vmatpush.msra.mxu0 %v366
        %670 = vmatpush.msra.mxu0 %v362
        %671 = vmatpush.msra.mxu0 %v358
        %672 = vmatpush.msra.mxu0 %v354
        %673 = vmatpush.msra.mxu0 %v350
        %674 = vmatpush.msra.mxu0 %v346
        %675 = vmatpush.msra.mxu0 %v342
        %676 = vmatpush.msra.mxu0 %v338
        %677 = vmatpush.msra.mxu0 %v334
        %678 = vmatpush.msra.mxu0 %v330
        %679 = vmatmul.f32.gmra.mxu0 %v468
        %v680 = vpop.f32.mrf.mxu0
        %v681 = vadd.f32 0.0, %v680
        %682 = vdwg.mxu0
        %683 = vmatpush.msra.mxu0 %v391
        %684 = vmatpush.msra.mxu0 %v387
        %685 = vmatpush.msra.mxu0 %v383
        %686 = vmatpush.msra.mxu0 %v379
        %687 = vmatpush.msra.mxu0 %v375
        %688 = vmatpush.msra.mxu0 %v371
        %689 = vmatpush.msra.mxu0 %v367
        %690 = vmatpush.msra.mxu0 %v363
        %691 = vmatpush.msra.mxu0 %v359
        %692 = vmatpush.msra.mxu0 %v355
        %693 = vmatpush.msra.mxu0 %v351
        %694 = vmatpush.msra.mxu0 %v347
        %695 = vmatpush.msra.mxu0 %v343
        %696 = vmatpush.msra.mxu0 %v339
        %697 = vmatpush.msra.mxu0 %v335
        %698 = vmatpush.msra.mxu0 %v331
        %699 = vmatmul.f32.gmra.mxu0 %v468
        %v700 = vpop.f32.mrf.mxu0
        %v701 = vadd.f32 0.0, %v700
        %702 = vdwg.mxu0
        %703 = vmatpush.msra.mxu0 %v452
        %704 = vmatpush.msra.mxu0 %v448
        %705 = vmatpush.msra.mxu0 %v444
        %706 = vmatpush.msra.mxu0 %v440
        %707 = vmatpush.msra.mxu0 %v436
        %708 = vmatpush.msra.mxu0 %v432
        %709 = vmatpush.msra.mxu0 %v428
        %710 = vmatpush.msra.mxu0 %v424
        %711 = vmatpush.msra.mxu0 %v420
        %712 = vmatpush.msra.mxu0 %v416
        %713 = vmatpush.msra.mxu0 %v412
        %714 = vmatpush.msra.mxu0 %v408
        %715 = vmatpush.msra.mxu0 %v404
        %716 = vmatpush.msra.mxu0 %v400
        %717 = vmatpush.msra.mxu0 %v396
        %718 = vmatpush.msra.mxu0 %v392
        %719 = vmatmul.f32.gmra.mxu0 %v622
        %v720 = vpop.f32.mrf.mxu0
        %v721 = vadd.f32 %v641, %v720
        %722 = vdwg.mxu0
        %723 = vmatpush.msra.mxu0 %v453
        %724 = vmatpush.msra.mxu0 %v449
        %725 = vmatpush.msra.mxu0 %v445
        %726 = vmatpush.msra.mxu0 %v441
        %727 = vmatpush.msra.mxu0 %v437
        %728 = vmatpush.msra.mxu0 %v433
        %729 = vmatpush.msra.mxu0 %v429
        %730 = vmatpush.msra.mxu0 %v425
        %731 = vmatpush.msra.mxu0 %v421
        %732 = vmatpush.msra.mxu0 %v417
        %733 = vmatpush.msra.mxu0 %v413
        %734 = vmatpush.msra.mxu0 %v409
        %735 = vmatpush.msra.mxu0 %v405
        %736 = vmatpush.msra.mxu0 %v401
        %737 = vmatpush.msra.mxu0 %v397
        %738 = vmatpush.msra.mxu0 %v393
        %739 = vmatmul.f32.gmra.mxu0 %v622
        %v740 = vpop.f32.mrf.mxu0
        %v741 = vadd.f32 %v661, %v740
        %742 = vdwg.mxu0
        %743 = vmatpush.msra.mxu0 %v454
        %744 = vmatpush.msra.mxu0 %v450
        %745 = vmatpush.msra.mxu0 %v446
        %746 = vmatpush.msra.mxu0 %v442
        %747 = vmatpush.msra.mxu0 %v438
        %748 = vmatpush.msra.mxu0 %v434
        %749 = vmatpush.msra.mxu0 %v430
        %750 = vmatpush.msra.mxu0 %v426
        %751 = vmatpush.msra.mxu0 %v422
        %752 = vmatpush.msra.mxu0 %v418
        %753 = vmatpush.msra.mxu0 %v414
        %754 = vmatpush.msra.mxu0 %v410
        %755 = vmatpush.msra.mxu0 %v406
        %756 = vmatpush.msra.mxu0 %v402
        %757 = vmatpush.msra.mxu0 %v398
        %758 = vmatpush.msra.mxu0 %v394
        %759 = vmatmul.f32.gmra.mxu0 %v622
        %v760 = vpop.f32.mrf.mxu0
        %v761 = vadd.f32 %v681, %v760
        %762 = vdwg.mxu0
        %763 = vmatpush.msra.mxu0 %v455
        %764 = vmatpush.msra.mxu0 %v451
        %765 = vmatpush.msra.mxu0 %v447
        %766 = vmatpush.msra.mxu0 %v443
        %767 = vmatpush.msra.mxu0 %v439
        %768 = vmatpush.msra.mxu0 %v435
        %769 = vmatpush.msra.mxu0 %v431
        %770 = vmatpush.msra.mxu0 %v427
        %771 = vmatpush.msra.mxu0 %v423
        %772 = vmatpush.msra.mxu0 %v419
        %773 = vmatpush.msra.mxu0 %v415
        %774 = vmatpush.msra.mxu0 %v411
        %775 = vmatpush.msra.mxu0 %v407
        %776 = vmatpush.msra.mxu0 %v403
        %777 = vmatpush.msra.mxu0 %v399
        %778 = vmatpush.msra.mxu0 %v395
        %779 = vmatmul.f32.gmra.mxu0 %v622
        %v780 = vpop.f32.mrf.mxu0
        %v781 = vadd.f32 %v701, %v780
        %782 = vdwg.mxu0
        %v783 = vadd.f32 %v721, %v458
        %v784 = vadd.f32 %v741, %v459
        %v785 = vadd.f32 %v761, %v460
        %v786 = vadd.f32 %v781, %v461
        %v787 = vxor.u32 %v783, 2147483648
        %v788 = vmul.f32 %v787, 1.442695
        %v789 = vpow.pop %v788
        %v790 = vadd.f32 %v789, 1.0
        %v791 = vrcp.pop %v790
        %v792 = vmul.f32 %v790, %v791
        %v793 = vsub.f32 1.0, %v792
        %v794 = vmul.f32 %v791, %v793
        %v795 = vadd.f32 %v791, %v794
        %vm796 = vweird.f32 %v790
        %vm797 = vweird.f32 %v791
        %vm798 = vmor %vm796, %vm797
        %v799 = vsel %vm798, %v791, %v795
        %v800 = vand.u32 2147483647, %v790
        %vm801 = vcmp.eq.f32.partialorder %v800, 8.507059e+37
        %v802 = vand.u32 %v790, 2147483648
        %v803 = vor.u32 1.1754944e-38, %v802
        %v804 = vsel %vm801, %v803, %v799
        %v805 = vmul.f32 1.0, %v804
        %v806 = vxor.u32 %v784, 2147483648
        %v807 = vmul.f32 %v806, 1.442695
        %v808 = vpow.pop %v807
        %v809 = vadd.f32 %v808, 1.0
        %v810 = vrcp.pop %v809
        %v811 = vmul.f32 %v809, %v810
        %v812 = vsub.f32 1.0, %v811
        %v813 = vmul.f32 %v810, %v812
        %v814 = vadd.f32 %v810, %v813
        %vm815 = vweird.f32 %v809
        %vm816 = vweird.f32 %v810
        %vm817 = vmor %vm815, %vm816
        %v818 = vsel %vm817, %v810, %v814
        %v819 = vand.u32 2147483647, %v809
        %vm820 = vcmp.eq.f32.partialorder %v819, 8.507059e+37
        %v821 = vand.u32 %v809, 2147483648
        %v822 = vor.u32 1.1754944e-38, %v821
        %v823 = vsel %vm820, %v822, %v818
        %v824 = vmul.f32 1.0, %v823
        %v825 = vtanh.pop %v785
        %v826 = vxor.u32 %v786, 2147483648
        %v827 = vmul.f32 %v826, 1.442695
        %v828 = vpow.pop %v827
        %v829 = vadd.f32 %v828, 1.0
        %v830 = vrcp.pop %v829
        %v831 = vmul.f32 %v829, %v830
        %v832 = vsub.f32 1.0, %v831
        %v833 = vmul.f32 %v830, %v832
        %v834 = vadd.f32 %v830, %v833
        %vm835 = vweird.f32 %v829
        %vm836 = vweird.f32 %v830
        %vm837 = vmor %vm835, %vm836
        %v838 = vsel %vm837, %v830, %v834
        %v839 = vand.u32 2147483647, %v829
        %vm840 = vcmp.eq.f32.partialorder %v839, 8.507059e+37
        %v841 = vand.u32 %v829, 2147483648
        %v842 = vor.u32 1.1754944e-38, %v841
        %v843 = vsel %vm840, %v842, %v838
        %v844 = vmul.f32 1.0, %v843
        %v845 = vmul.f32 %v824, %v471
        %v846 = vmul.f32 %v805, %v825
        %v847 = vadd.f32 %v845, %v846
        %v848 = vtanh.pop %v847
        %v849 = vmul.f32 %v844, %v848
        %850 = vst [vmem:[%s253] sm:$0xff] %v849
        %s851 = scalar_lea.vmem %s247, 32
        %v852 = vld [vmem:[%s851] sm:$0xff]
        %v853 = vld [vmem:[%s851 + $0x8] sm:$0xff]
        %v854 = vld [vmem:[%s851 + $0x10] sm:$0xff]
        %v855 = vld [vmem:[%s851 + $0x18] sm:$0xff]
        %856 = vmatpush.msra.mxu0 %v323
        %857 = vmatpush.msra.mxu0 %v319
        %858 = vmatpush.msra.mxu0 %v315
        %859 = vmatpush.msra.mxu0 %v311
        %860 = vmatpush.msra.mxu0 %v307
        %861 = vmatpush.msra.mxu0 %v303
        %862 = vmatpush.msra.mxu0 %v299
        %863 = vmatpush.msra.mxu0 %v295
        %864 = vmatpush.msra.mxu0 %v291
        %865 = vmatpush.msra.mxu0 %v287
        %866 = vmatpush.msra.mxu0 %v283
        %867 = vmatpush.msra.mxu0 %v279
        %868 = vmatpush.msra.mxu0 %v275
        %869 = vmatpush.msra.mxu0 %v271
        %870 = vmatpush.msra.mxu0 %v267
        %871 = vmatpush.msra.mxu0 %v263
        %872 = vmatmul.f32.gmra.mxu0 %v622
        %v873 = vpop.f32.mrf.mxu0
        %v874 = vadd.f32 0.0, %v873
        %875 = vdwg.mxu0
        %876 = vmatpush.msra.mxu0 %v324
        %877 = vmatpush.msra.mxu0 %v320
        %878 = vmatpush.msra.mxu0 %v316
        %879 = vmatpush.msra.mxu0 %v312
        %880 = vmatpush.msra.mxu0 %v308
        %881 = vmatpush.msra.mxu0 %v304
        %882 = vmatpush.msra.mxu0 %v300
        %883 = vmatpush.msra.mxu0 %v296
        %884 = vmatpush.msra.mxu0 %v292
        %885 = vmatpush.msra.mxu0 %v288
        %886 = vmatpush.msra.mxu0 %v284
        %887 = vmatpush.msra.mxu0 %v280
        %888 = vmatpush.msra.mxu0 %v276
        %889 = vmatpush.msra.mxu0 %v272
        %890 = vmatpush.msra.mxu0 %v268
        %891 = vmatpush.msra.mxu0 %v264
        %892 = vmatmul.f32.gmra.mxu0 %v622
        %v893 = vpop.f32.mrf.mxu0
        %v894 = vadd.f32 0.0, %v893
        %895 = vdwg.mxu0
        %896 = vmatpush.msra.mxu0 %v325
        %897 = vmatpush.msra.mxu0 %v321
        %898 = vmatpush.msra.mxu0 %v317
        %899 = vmatpush.msra.mxu0 %v313
        %900 = vmatpush.msra.mxu0 %v309
        %901 = vmatpush.msra.mxu0 %v305
        %902 = vmatpush.msra.mxu0 %v301
        %903 = vmatpush.msra.mxu0 %v297
        %904 = vmatpush.msra.mxu0 %v293
        %905 = vmatpush.msra.mxu0 %v289
        %906 = vmatpush.msra.mxu0 %v285
        %907 = vmatpush.msra.mxu0 %v281
        %908 = vmatpush.msra.mxu0 %v277
        %909 = vmatpush.msra.mxu0 %v273
        %910 = vmatpush.msra.mxu0 %v269
        %911 = vmatpush.msra.mxu0 %v265
        %912 = vmatmul.f32.gmra.mxu0 %v622
        %v913 = vpop.f32.mrf.mxu0
        %v914 = vadd.f32 0.0, %v913
        %915 = vdwg.mxu0
        %916 = vmatpush.msra.mxu0 %v326
        %917 = vmatpush.msra.mxu0 %v322
        %918 = vmatpush.msra.mxu0 %v318
        %919 = vmatpush.msra.mxu0 %v314
        %920 = vmatpush.msra.mxu0 %v310
        %921 = vmatpush.msra.mxu0 %v306
        %922 = vmatpush.msra.mxu0 %v302
        %923 = vmatpush.msra.mxu0 %v298
        %924 = vmatpush.msra.mxu0 %v294
        %925 = vmatpush.msra.mxu0 %v290
        %926 = vmatpush.msra.mxu0 %v286
        %927 = vmatpush.msra.mxu0 %v282
        %928 = vmatpush.msra.mxu0 %v278
        %929 = vmatpush.msra.mxu0 %v274
        %930 = vmatpush.msra.mxu0 %v270
        %931 = vmatpush.msra.mxu0 %v266
        %932 = vmatmul.f32.gmra.mxu0 %v622
        %v933 = vpop.f32.mrf.mxu0
        %v934 = vadd.f32 0.0, %v933
        %935 = vdwg.mxu0
        %v936 = vadd.f32 %v852, %v874
        %v937 = vadd.f32 %v853, %v894
        %v938 = vadd.f32 %v854, %v914
        %v939 = vadd.f32 %v855, %v934
        %v940 = vxor.u32 %v936, 2147483648
        %v941 = vmul.f32 %v940, 1.442695
        %v942 = vpow.pop %v941
        %v943 = vadd.f32 %v942, 1.0
        %v944 = vrcp.pop %v943
        %v945 = vmul.f32 %v943, %v944
        %v946 = vsub.f32 1.0, %v945
        %v947 = vmul.f32 %v944, %v946
        %v948 = vadd.f32 %v944, %v947
        %vm949 = vweird.f32 %v943
        %vm950 = vweird.f32 %v944
        %vm951 = vmor %vm949, %vm950
        %v952 = vsel %vm951, %v944, %v948
        %v953 = vand.u32 2147483647, %v943
        %vm954 = vcmp.eq.f32.partialorder %v953, 8.507059e+37
        %v955 = vand.u32 %v943, 2147483648
        %v956 = vor.u32 1.1754944e-38, %v955
        %v957 = vsel %vm954, %v956, %v952
        %v958 = vmul.f32 1.0, %v957
        %v959 = vxor.u32 %v937, 2147483648
        %v960 = vmul.f32 %v959, 1.442695
        %v961 = vpow.pop %v960
        %v962 = vadd.f32 %v961, 1.0
        %v963 = vrcp.pop %v962
        %v964 = vmul.f32 %v962, %v963
        %v965 = vsub.f32 1.0, %v964
        %v966 = vmul.f32 %v963, %v965
        %v967 = vadd.f32 %v963, %v966
        %vm968 = vweird.f32 %v962
        %vm969 = vweird.f32 %v963
        %vm970 = vmor %vm968, %vm969
        %v971 = vsel %vm970, %v963, %v967
        %v972 = vand.u32 2147483647, %v962
        %vm973 = vcmp.eq.f32.partialorder %v972, 8.507059e+37
        %v974 = vand.u32 %v962, 2147483648
        %v975 = vor.u32 1.1754944e-38, %v974
        %v976 = vsel %vm973, %v975, %v971
        %v977 = vmul.f32 1.0, %v976
        %v978 = vtanh.pop %v938
        %v979 = vxor.u32 %v939, 2147483648
        %v980 = vmul.f32 %v979, 1.442695
        %v981 = vpow.pop %v980
        %v982 = vadd.f32 %v981, 1.0
        %v983 = vrcp.pop %v982
        %v984 = vmul.f32 %v982, %v983
        %v985 = vsub.f32 1.0, %v984
        %v986 = vmul.f32 %v983, %v985
        %v987 = vadd.f32 %v983, %v986
        %vm988 = vweird.f32 %v982
        %vm989 = vweird.f32 %v983
        %vm990 = vmor %vm988, %vm989
        %v991 = vsel %vm990, %v983, %v987
        %v992 = vand.u32 2147483647, %v982
        %vm993 = vcmp.eq.f32.partialorder %v992, 8.507059e+37
        %v994 = vand.u32 %v982, 2147483648
        %v995 = vor.u32 1.1754944e-38, %v994
        %v996 = vsel %vm993, %v995, %v991
        %v997 = vmul.f32 1.0, %v996
        %v998 = vmul.f32 %v977, %v620
        %v999 = vmul.f32 %v958, %v978
        %v1000 = vadd.f32 %v998, %v999
        %v1001 = vtanh.pop %v1000
        %v1002 = vmul.f32 %v997, %v1001
        %1003 = vmatpush.msra.mxu0 %v388
        %1004 = vmatpush.msra.mxu0 %v384
        %1005 = vmatpush.msra.mxu0 %v380
        %1006 = vmatpush.msra.mxu0 %v376
        %1007 = vmatpush.msra.mxu0 %v372
        %1008 = vmatpush.msra.mxu0 %v368
        %1009 = vmatpush.msra.mxu0 %v364
        %1010 = vmatpush.msra.mxu0 %v360
        %1011 = vmatpush.msra.mxu0 %v356
        %1012 = vmatpush.msra.mxu0 %v352
        %1013 = vmatpush.msra.mxu0 %v348
        %1014 = vmatpush.msra.mxu0 %v344
        %1015 = vmatpush.msra.mxu0 %v340
        %1016 = vmatpush.msra.mxu0 %v336
        %1017 = vmatpush.msra.mxu0 %v332
        %1018 = vmatpush.msra.mxu0 %v328
        %1019 = vmatmul.f32.gmra.mxu0 %v849
        %v1020 = vpop.f32.mrf.mxu0
        %v1021 = vadd.f32 0.0, %v1020
        %1022 = vdwg.mxu0
        %1023 = vmatpush.msra.mxu0 %v389
        %1024 = vmatpush.msra.mxu0 %v385
        %1025 = vmatpush.msra.mxu0 %v381
        %1026 = vmatpush.msra.mxu0 %v377
        %1027 = vmatpush.msra.mxu0 %v373
        %1028 = vmatpush.msra.mxu0 %v369
        %1029 = vmatpush.msra.mxu0 %v365
        %1030 = vmatpush.msra.mxu0 %v361
        %1031 = vmatpush.msra.mxu0 %v357
        %1032 = vmatpush.msra.mxu0 %v353
        %1033 = vmatpush.msra.mxu0 %v349
        %1034 = vmatpush.msra.mxu0 %v345
        %1035 = vmatpush.msra.mxu0 %v341
        %1036 = vmatpush.msra.mxu0 %v337
        %1037 = vmatpush.msra.mxu0 %v333
        %1038 = vmatpush.msra.mxu0 %v329
        %1039 = vmatmul.f32.gmra.mxu0 %v849
        %v1040 = vpop.f32.mrf.mxu0
        %v1041 = vadd.f32 0.0, %v1040
        %1042 = vdwg.mxu0
        %1043 = vmatpush.msra.mxu0 %v390
        %1044 = vmatpush.msra.mxu0 %v386
        %1045 = vmatpush.msra.mxu0 %v382
        %1046 = vmatpush.msra.mxu0 %v378
        %1047 = vmatpush.msra.mxu0 %v374
        %1048 = vmatpush.msra.mxu0 %v370
        %1049 = vmatpush.msra.mxu0 %v366
        %1050 = vmatpush.msra.mxu0 %v362
        %1051 = vmatpush.msra.mxu0 %v358
        %1052 = vmatpush.msra.mxu0 %v354
        %1053 = vmatpush.msra.mxu0 %v350
        %1054 = vmatpush.msra.mxu0 %v346
        %1055 = vmatpush.msra.mxu0 %v342
        %1056 = vmatpush.msra.mxu0 %v338
        %1057 = vmatpush.msra.mxu0 %v334
        %1058 = vmatpush.msra.mxu0 %v330
        %1059 = vmatmul.f32.gmra.mxu0 %v849
        %v1060 = vpop.f32.mrf.mxu0
        %v1061 = vadd.f32 0.0, %v1060
        %1062 = vdwg.mxu0
        %1063 = vmatpush.msra.mxu0 %v391
        %1064 = vmatpush.msra.mxu0 %v387
        %1065 = vmatpush.msra.mxu0 %v383
        %1066 = vmatpush.msra.mxu0 %v379
        %1067 = vmatpush.msra.mxu0 %v375
        %1068 = vmatpush.msra.mxu0 %v371
        %1069 = vmatpush.msra.mxu0 %v367
        %1070 = vmatpush.msra.mxu0 %v363
        %1071 = vmatpush.msra.mxu0 %v359
        %1072 = vmatpush.msra.mxu0 %v355
        %1073 = vmatpush.msra.mxu0 %v351
        %1074 = vmatpush.msra.mxu0 %v347
        %1075 = vmatpush.msra.mxu0 %v343
        %1076 = vmatpush.msra.mxu0 %v339
        %1077 = vmatpush.msra.mxu0 %v335
        %1078 = vmatpush.msra.mxu0 %v331
        %1079 = vmatmul.f32.gmra.mxu0 %v849
        %v1080 = vpop.f32.mrf.mxu0
        %v1081 = vadd.f32 0.0, %v1080
        %1082 = vdwg.mxu0
        %1083 = vmatpush.msra.mxu0 %v452
        %1084 = vmatpush.msra.mxu0 %v448
        %1085 = vmatpush.msra.mxu0 %v444
        %1086 = vmatpush.msra.mxu0 %v440
        %1087 = vmatpush.msra.mxu0 %v436
        %1088 = vmatpush.msra.mxu0 %v432
        %1089 = vmatpush.msra.mxu0 %v428
        %1090 = vmatpush.msra.mxu0 %v424
        %1091 = vmatpush.msra.mxu0 %v420
        %1092 = vmatpush.msra.mxu0 %v416
        %1093 = vmatpush.msra.mxu0 %v412
        %1094 = vmatpush.msra.mxu0 %v408
        %1095 = vmatpush.msra.mxu0 %v404
        %1096 = vmatpush.msra.mxu0 %v400
        %1097 = vmatpush.msra.mxu0 %v396
        %1098 = vmatpush.msra.mxu0 %v392
        %1099 = vmatmul.f32.gmra.mxu0 %v1002
        %v1100 = vpop.f32.mrf.mxu0
        %v1101 = vadd.f32 %v1021, %v1100
        %1102 = vdwg.mxu0
        %1103 = vmatpush.msra.mxu0 %v453
        %1104 = vmatpush.msra.mxu0 %v449
        %1105 = vmatpush.msra.mxu0 %v445
        %1106 = vmatpush.msra.mxu0 %v441
        %1107 = vmatpush.msra.mxu0 %v437
        %1108 = vmatpush.msra.mxu0 %v433
        %1109 = vmatpush.msra.mxu0 %v429
        %1110 = vmatpush.msra.mxu0 %v425
        %1111 = vmatpush.msra.mxu0 %v421
        %1112 = vmatpush.msra.mxu0 %v417
        %1113 = vmatpush.msra.mxu0 %v413
        %1114 = vmatpush.msra.mxu0 %v409
        %1115 = vmatpush.msra.mxu0 %v405
        %1116 = vmatpush.msra.mxu0 %v401
        %1117 = vmatpush.msra.mxu0 %v397
        %1118 = vmatpush.msra.mxu0 %v393
        %1119 = vmatmul.f32.gmra.mxu0 %v1002
        %v1120 = vpop.f32.mrf.mxu0
        %v1121 = vadd.f32 %v1041, %v1120
        %1122 = vdwg.mxu0
        %1123 = vmatpush.msra.mxu0 %v454
        %1124 = vmatpush.msra.mxu0 %v450
        %1125 = vmatpush.msra.mxu0 %v446
        %1126 = vmatpush.msra.mxu0 %v442
        %1127 = vmatpush.msra.mxu0 %v438
        %1128 = vmatpush.msra.mxu0 %v434
        %1129 = vmatpush.msra.mxu0 %v430
        %1130 = vmatpush.msra.mxu0 %v426
        %1131 = vmatpush.msra.mxu0 %v422
        %1132 = vmatpush.msra.mxu0 %v418
        %1133 = vmatpush.msra.mxu0 %v414
        %1134 = vmatpush.msra.mxu0 %v410
        %1135 = vmatpush.msra.mxu0 %v406
        %1136 = vmatpush.msra.mxu0 %v402
        %1137 = vmatpush.msra.mxu0 %v398
        %1138 = vmatpush.msra.mxu0 %v394
        %1139 = vmatmul.f32.gmra.mxu0 %v1002
        %v1140 = vpop.f32.mrf.mxu0
        %v1141 = vadd.f32 %v1061, %v1140
        %1142 = vdwg.mxu0
        %1143 = vmatpush.msra.mxu0 %v455
        %1144 = vmatpush.msra.mxu0 %v451
        %1145 = vmatpush.msra.mxu0 %v447
        %1146 = vmatpush.msra.mxu0 %v443
        %1147 = vmatpush.msra.mxu0 %v439
        %1148 = vmatpush.msra.mxu0 %v435
        %1149 = vmatpush.msra.mxu0 %v431
        %1150 = vmatpush.msra.mxu0 %v427
        %1151 = vmatpush.msra.mxu0 %v423
        %1152 = vmatpush.msra.mxu0 %v419
        %1153 = vmatpush.msra.mxu0 %v415
        %1154 = vmatpush.msra.mxu0 %v411
        %1155 = vmatpush.msra.mxu0 %v407
        %1156 = vmatpush.msra.mxu0 %v403
        %1157 = vmatpush.msra.mxu0 %v399
        %1158 = vmatpush.msra.mxu0 %v395
        %1159 = vmatmul.f32.gmra.mxu0 %v1002
        %v1160 = vpop.f32.mrf.mxu0
        %v1161 = vadd.f32 %v1081, %v1160
        %1162 = vdwg.mxu0
        %v1163 = vadd.f32 %v1101, %v458
        %v1164 = vadd.f32 %v1121, %v459
        %v1165 = vadd.f32 %v1141, %v460
        %v1166 = vadd.f32 %v1161, %v461
        %v1167 = vxor.u32 %v1163, 2147483648
        %v1168 = vmul.f32 %v1167, 1.442695
        %v1169 = vpow.pop %v1168
        %v1170 = vadd.f32 %v1169, 1.0
        %v1171 = vrcp.pop %v1170
        %v1172 = vmul.f32 %v1170, %v1171
        %v1173 = vsub.f32 1.0, %v1172
        %v1174 = vmul.f32 %v1171, %v1173
        %v1175 = vadd.f32 %v1171, %v1174
        %vm1176 = vweird.f32 %v1170
        %vm1177 = vweird.f32 %v1171
        %vm1178 = vmor %vm1176, %vm1177
        %v1179 = vsel %vm1178, %v1171, %v1175
        %v1180 = vand.u32 2147483647, %v1170
        %vm1181 = vcmp.eq.f32.partialorder %v1180, 8.507059e+37
        %v1182 = vand.u32 %v1170, 2147483648
        %v1183 = vor.u32 1.1754944e-38, %v1182
        %v1184 = vsel %vm1181, %v1183, %v1179
        %v1185 = vmul.f32 1.0, %v1184
        %v1186 = vxor.u32 %v1164, 2147483648
        %v1187 = vmul.f32 %v1186, 1.442695
        %v1188 = vpow.pop %v1187
        %v1189 = vadd.f32 %v1188, 1.0
        %v1190 = vrcp.pop %v1189
        %v1191 = vmul.f32 %v1189, %v1190
        %v1192 = vsub.f32 1.0, %v1191
        %v1193 = vmul.f32 %v1190, %v1192
        %v1194 = vadd.f32 %v1190, %v1193
        %vm1195 = vweird.f32 %v1189
        %vm1196 = vweird.f32 %v1190
        %vm1197 = vmor %vm1195, %vm1196
        %v1198 = vsel %vm1197, %v1190, %v1194
        %v1199 = vand.u32 2147483647, %v1189
        %vm1200 = vcmp.eq.f32.partialorder %v1199, 8.507059e+37
        %v1201 = vand.u32 %v1189, 2147483648
        %v1202 = vor.u32 1.1754944e-38, %v1201
        %v1203 = vsel %vm1200, %v1202, %v1198
        %v1204 = vmul.f32 1.0, %v1203
        %v1205 = vtanh.pop %v1165
        %v1206 = vxor.u32 %v1166, 2147483648
        %v1207 = vmul.f32 %v1206, 1.442695
        %v1208 = vpow.pop %v1207
        %v1209 = vadd.f32 %v1208, 1.0
        %v1210 = vrcp.pop %v1209
        %v1211 = vmul.f32 %v1209, %v1210
        %v1212 = vsub.f32 1.0, %v1211
        %v1213 = vmul.f32 %v1210, %v1212
        %v1214 = vadd.f32 %v1210, %v1213
        %vm1215 = vweird.f32 %v1209
        %vm1216 = vweird.f32 %v1210
        %vm1217 = vmor %vm1215, %vm1216
        %v1218 = vsel %vm1217, %v1210, %v1214
        %v1219 = vand.u32 2147483647, %v1209
        %vm1220 = vcmp.eq.f32.partialorder %v1219, 8.507059e+37
        %v1221 = vand.u32 %v1209, 2147483648
        %v1222 = vor.u32 1.1754944e-38, %v1221
        %v1223 = vsel %vm1220, %v1222, %v1218
        %v1224 = vmul.f32 1.0, %v1223
        %v1225 = vmul.f32 %v1204, %v847
        %v1226 = vmul.f32 %v1185, %v1205
        %v1227 = vadd.f32 %v1225, %v1226
        %v1228 = vtanh.pop %v1227
        %v1229 = vmul.f32 %v1224, %v1228
        %s1230 = scalar_lea.vmem %s253, 8
        %1231 = vst [vmem:[%s1230] sm:$0xff] %v1229
        %s1232 = scalar_lea.vmem %s247, 64
        %v1233 = vld [vmem:[%s1232] sm:$0xff]
        %v1234 = vld [vmem:[%s1232 + $0x8] sm:$0xff]
        %v1235 = vld [vmem:[%s1232 + $0x10] sm:$0xff]
        %v1236 = vld [vmem:[%s1232 + $0x18] sm:$0xff]
        %1237 = vmatpush.msra.mxu0 %v323
        %1238 = vmatpush.msra.mxu0 %v319
        %1239 = vmatpush.msra.mxu0 %v315
        %1240 = vmatpush.msra.mxu0 %v311
        %1241 = vmatpush.msra.mxu0 %v307
        %1242 = vmatpush.msra.mxu0 %v303
        %1243 = vmatpush.msra.mxu0 %v299
        %1244 = vmatpush.msra.mxu0 %v295
        %1245 = vmatpush.msra.mxu0 %v291
        %1246 = vmatpush.msra.mxu0 %v287
        %1247 = vmatpush.msra.mxu0 %v283
        %1248 = vmatpush.msra.mxu0 %v279
        %1249 = vmatpush.msra.mxu0 %v275
        %1250 = vmatpush.msra.mxu0 %v271
        %1251 = vmatpush.msra.mxu0 %v267
        %1252 = vmatpush.msra.mxu0 %v263
        %1253 = vmatmul.f32.gmra.mxu0 %v1002
        %v1254 = vpop.f32.mrf.mxu0
        %v1255 = vadd.f32 0.0, %v1254
        %1256 = vdwg.mxu0
        %1257 = vmatpush.msra.mxu0 %v324
        %1258 = vmatpush.msra.mxu0 %v320
        %1259 = vmatpush.msra.mxu0 %v316
        %1260 = vmatpush.msra.mxu0 %v312
        %1261 = vmatpush.msra.mxu0 %v308
        %1262 = vmatpush.msra.mxu0 %v304
        %1263 = vmatpush.msra.mxu0 %v300
        %1264 = vmatpush.msra.mxu0 %v296
        %1265 = vmatpush.msra.mxu0 %v292
        %1266 = vmatpush.msra.mxu0 %v288
        %1267 = vmatpush.msra.mxu0 %v284
        %1268 = vmatpush.msra.mxu0 %v280
        %1269 = vmatpush.msra.mxu0 %v276
        %1270 = vmatpush.msra.mxu0 %v272
        %1271 = vmatpush.msra.mxu0 %v268
        %1272 = vmatpush.msra.mxu0 %v264
        %1273 = vmatmul.f32.gmra.mxu0 %v1002
        %v1274 = vpop.f32.mrf.mxu0
        %v1275 = vadd.f32 0.0, %v1274
        %1276 = vdwg.mxu0
        %1277 = vmatpush.msra.mxu0 %v325
        %1278 = vmatpush.msra.mxu0 %v321
        %1279 = vmatpush.msra.mxu0 %v317
        %1280 = vmatpush.msra.mxu0 %v313
        %1281 = vmatpush.msra.mxu0 %v309
        %1282 = vmatpush.msra.mxu0 %v305
        %1283 = vmatpush.msra.mxu0 %v301
        %1284 = vmatpush.msra.mxu0 %v297
        %1285 = vmatpush.msra.mxu0 %v293
        %1286 = vmatpush.msra.mxu0 %v289
        %1287 = vmatpush.msra.mxu0 %v285
        %1288 = vmatpush.msra.mxu0 %v281
        %1289 = vmatpush.msra.mxu0 %v277
        %1290 = vmatpush.msra.mxu0 %v273
        %1291 = vmatpush.msra.mxu0 %v269
        %1292 = vmatpush.msra.mxu0 %v265
        %1293 = vmatmul.f32.gmra.mxu0 %v1002
        %v1294 = vpop.f32.mrf.mxu0
        %v1295 = vadd.f32 0.0, %v1294
        %1296 = vdwg.mxu0
        %1297 = vmatpush.msra.mxu0 %v326
        %1298 = vmatpush.msra.mxu0 %v322
        %1299 = vmatpush.msra.mxu0 %v318
        %1300 = vmatpush.msra.mxu0 %v314
        %1301 = vmatpush.msra.mxu0 %v310
        %1302 = vmatpush.msra.mxu0 %v306
        %1303 = vmatpush.msra.mxu0 %v302
        %1304 = vmatpush.msra.mxu0 %v298
        %1305 = vmatpush.msra.mxu0 %v294
        %1306 = vmatpush.msra.mxu0 %v290
        %1307 = vmatpush.msra.mxu0 %v286
        %1308 = vmatpush.msra.mxu0 %v282
        %1309 = vmatpush.msra.mxu0 %v278
        %1310 = vmatpush.msra.mxu0 %v274
        %1311 = vmatpush.msra.mxu0 %v270
        %1312 = vmatpush.msra.mxu0 %v266
        %1313 = vmatmul.f32.gmra.mxu0 %v1002
        %v1314 = vpop.f32.mrf.mxu0
        %v1315 = vadd.f32 0.0, %v1314
        %1316 = vdwg.mxu0
        %v1317 = vadd.f32 %v1233, %v1255
        %v1318 = vadd.f32 %v1234, %v1275
        %v1319 = vadd.f32 %v1235, %v1295
        %v1320 = vadd.f32 %v1236, %v1315
        %v1321 = vxor.u32 %v1317, 2147483648
        %v1322 = vmul.f32 %v1321, 1.442695
        %v1323 = vpow.pop %v1322
        %v1324 = vadd.f32 %v1323, 1.0
        %v1325 = vrcp.pop %v1324
        %v1326 = vmul.f32 %v1324, %v1325
        %v1327 = vsub.f32 1.0, %v1326
        %v1328 = vmul.f32 %v1325, %v1327
        %v1329 = vadd.f32 %v1325, %v1328
        %vm1330 = vweird.f32 %v1324
        %vm1331 = vweird.f32 %v1325
        %vm1332 = vmor %vm1330, %vm1331
        %v1333 = vsel %vm1332, %v1325, %v1329
        %v1334 = vand.u32 2147483647, %v1324
        %vm1335 = vcmp.eq.f32.partialorder %v1334, 8.507059e+37
        %v1336 = vand.u32 %v1324, 2147483648
        %v1337 = vor.u32 1.1754944e-38, %v1336
        %v1338 = vsel %vm1335, %v1337, %v1333
        %v1339 = vmul.f32 1.0, %v1338
        %v1340 = vxor.u32 %v1318, 2147483648
        %v1341 = vmul.f32 %v1340, 1.442695
        %v1342 = vpow.pop %v1341
        %v1343 = vadd.f32 %v1342, 1.0
        %v1344 = vrcp.pop %v1343
        %v1345 = vmul.f32 %v1343, %v1344
        %v1346 = vsub.f32 1.0, %v1345
        %v1347 = vmul.f32 %v1344, %v1346
        %v1348 = vadd.f32 %v1344, %v1347
        %vm1349 = vweird.f32 %v1343
        %vm1350 = vweird.f32 %v1344
        %vm1351 = vmor %vm1349, %vm1350
        %v1352 = vsel %vm1351, %v1344, %v1348
        %v1353 = vand.u32 2147483647, %v1343
        %vm1354 = vcmp.eq.f32.partialorder %v1353, 8.507059e+37
        %v1355 = vand.u32 %v1343, 2147483648
        %v1356 = vor.u32 1.1754944e-38, %v1355
        %v1357 = vsel %vm1354, %v1356, %v1352
        %v1358 = vmul.f32 1.0, %v1357
        %v1359 = vtanh.pop %v1319
        %v1360 = vxor.u32 %v1320, 2147483648
        %v1361 = vmul.f32 %v1360, 1.442695
        %v1362 = vpow.pop %v1361
        %v1363 = vadd.f32 %v1362, 1.0
        %v1364 = vrcp.pop %v1363
        %v1365 = vmul.f32 %v1363, %v1364
        %v1366 = vsub.f32 1.0, %v1365
        %v1367 = vmul.f32 %v1364, %v1366
        %v1368 = vadd.f32 %v1364, %v1367
        %vm1369 = vweird.f32 %v1363
        %vm1370 = vweird.f32 %v1364
        %vm1371 = vmor %vm1369, %vm1370
        %v1372 = vsel %vm1371, %v1364, %v1368
        %v1373 = vand.u32 2147483647, %v1363
        %vm1374 = vcmp.eq.f32.partialorder %v1373, 8.507059e+37
        %v1375 = vand.u32 %v1363, 2147483648
        %v1376 = vor.u32 1.1754944e-38, %v1375
        %v1377 = vsel %vm1374, %v1376, %v1372
        %v1378 = vmul.f32 1.0, %v1377
        %v1379 = vmul.f32 %v1358, %v1000
        %v1380 = vmul.f32 %v1339, %v1359
        %v1381 = vadd.f32 %v1379, %v1380
        %v1382 = vtanh.pop %v1381
        %v1383 = vmul.f32 %v1378, %v1382
        %1384 = vmatpush.msra.mxu0 %v388
        %1385 = vmatpush.msra.mxu0 %v384
        %1386 = vmatpush.msra.mxu0 %v380
        %1387 = vmatpush.msra.mxu0 %v376
        %1388 = vmatpush.msra.mxu0 %v372
        %1389 = vmatpush.msra.mxu0 %v368
        %1390 = vmatpush.msra.mxu0 %v364
        %1391 = vmatpush.msra.mxu0 %v360
        %1392 = vmatpush.msra.mxu0 %v356
        %1393 = vmatpush.msra.mxu0 %v352
        %1394 = vmatpush.msra.mxu0 %v348
        %1395 = vmatpush.msra.mxu0 %v344
        %1396 = vmatpush.msra.mxu0 %v340
        %1397 = vmatpush.msra.mxu0 %v336
        %1398 = vmatpush.msra.mxu0 %v332
        %1399 = vmatpush.msra.mxu0 %v328
        %1400 = vmatmul.f32.gmra.mxu0 %v1229
        %v1401 = vpop.f32.mrf.mxu0
        %v1402 = vadd.f32 0.0, %v1401
        %1403 = vdwg.mxu0
        %1404 = vmatpush.msra.mxu0 %v389
        %1405 = vmatpush.msra.mxu0 %v385
        %1406 = vmatpush.msra.mxu0 %v381
        %1407 = vmatpush.msra.mxu0 %v377
        %1408 = vmatpush.msra.mxu0 %v373
        %1409 = vmatpush.msra.mxu0 %v369
        %1410 = vmatpush.msra.mxu0 %v365
        %1411 = vmatpush.msra.mxu0 %v361
        %1412 = vmatpush.msra.mxu0 %v357
        %1413 = vmatpush.msra.mxu0 %v353
        %1414 = vmatpush.msra.mxu0 %v349
        %1415 = vmatpush.msra.mxu0 %v345
        %1416 = vmatpush.msra.mxu0 %v341
        %1417 = vmatpush.msra.mxu0 %v337
        %1418 = vmatpush.msra.mxu0 %v333
        %1419 = vmatpush.msra.mxu0 %v329
        %1420 = vmatmul.f32.gmra.mxu0 %v1229
        %v1421 = vpop.f32.mrf.mxu0
        %v1422 = vadd.f32 0.0, %v1421
        %1423 = vdwg.mxu0
        %1424 = vmatpush.msra.mxu0 %v390
        %1425 = vmatpush.msra.mxu0 %v386
        %1426 = vmatpush.msra.mxu0 %v382
        %1427 = vmatpush.msra.mxu0 %v378
        %1428 = vmatpush.msra.mxu0 %v374
        %1429 = vmatpush.msra.mxu0 %v370
        %1430 = vmatpush.msra.mxu0 %v366
        %1431 = vmatpush.msra.mxu0 %v362
        %1432 = vmatpush.msra.mxu0 %v358
        %1433 = vmatpush.msra.mxu0 %v354
        %1434 = vmatpush.msra.mxu0 %v350
        %1435 = vmatpush.msra.mxu0 %v346
        %1436 = vmatpush.msra.mxu0 %v342
        %1437 = vmatpush.msra.mxu0 %v338
        %1438 = vmatpush.msra.mxu0 %v334
        %1439 = vmatpush.msra.mxu0 %v330
        %1440 = vmatmul.f32.gmra.mxu0 %v1229
        %v1441 = vpop.f32.mrf.mxu0
        %v1442 = vadd.f32 0.0, %v1441
        %1443 = vdwg.mxu0
        %1444 = vmatpush.msra.mxu0 %v391
        %1445 = vmatpush.msra.mxu0 %v387
        %1446 = vmatpush.msra.mxu0 %v383
        %1447 = vmatpush.msra.mxu0 %v379
        %1448 = vmatpush.msra.mxu0 %v375
        %1449 = vmatpush.msra.mxu0 %v371
        %1450 = vmatpush.msra.mxu0 %v367
        %1451 = vmatpush.msra.mxu0 %v363
        %1452 = vmatpush.msra.mxu0 %v359
        %1453 = vmatpush.msra.mxu0 %v355
        %1454 = vmatpush.msra.mxu0 %v351
        %1455 = vmatpush.msra.mxu0 %v347
        %1456 = vmatpush.msra.mxu0 %v343
        %1457 = vmatpush.msra.mxu0 %v339
        %1458 = vmatpush.msra.mxu0 %v335
        %1459 = vmatpush.msra.mxu0 %v331
        %1460 = vmatmul.f32.gmra.mxu0 %v1229
        %v1461 = vpop.f32.mrf.mxu0
        %v1462 = vadd.f32 0.0, %v1461
        %1463 = vdwg.mxu0
        %1464 = vmatpush.msra.mxu0 %v452
        %1465 = vmatpush.msra.mxu0 %v448
        %1466 = vmatpush.msra.mxu0 %v444
        %1467 = vmatpush.msra.mxu0 %v440
        %1468 = vmatpush.msra.mxu0 %v436
        %1469 = vmatpush.msra.mxu0 %v432
        %1470 = vmatpush.msra.mxu0 %v428
        %1471 = vmatpush.msra.mxu0 %v424
        %1472 = vmatpush.msra.mxu0 %v420
        %1473 = vmatpush.msra.mxu0 %v416
        %1474 = vmatpush.msra.mxu0 %v412
        %1475 = vmatpush.msra.mxu0 %v408
        %1476 = vmatpush.msra.mxu0 %v404
        %1477 = vmatpush.msra.mxu0 %v400
        %1478 = vmatpush.msra.mxu0 %v396
        %1479 = vmatpush.msra.mxu0 %v392
        %1480 = vmatmul.f32.gmra.mxu0 %v1383
        %v1481 = vpop.f32.mrf.mxu0
        %v1482 = vadd.f32 %v1402, %v1481
        %1483 = vdwg.mxu0
        %1484 = vmatpush.msra.mxu0 %v453
        %1485 = vmatpush.msra.mxu0 %v449
        %1486 = vmatpush.msra.mxu0 %v445
        %1487 = vmatpush.msra.mxu0 %v441
        %1488 = vmatpush.msra.mxu0 %v437
        %1489 = vmatpush.msra.mxu0 %v433
        %1490 = vmatpush.msra.mxu0 %v429
        %1491 = vmatpush.msra.mxu0 %v425
        %1492 = vmatpush.msra.mxu0 %v421
        %1493 = vmatpush.msra.mxu0 %v417
        %1494 = vmatpush.msra.mxu0 %v413
        %1495 = vmatpush.msra.mxu0 %v409
        %1496 = vmatpush.msra.mxu0 %v405
        %1497 = vmatpush.msra.mxu0 %v401
        %1498 = vmatpush.msra.mxu0 %v397
        %1499 = vmatpush.msra.mxu0 %v393
        %1500 = vmatmul.f32.gmra.mxu0 %v1383
        %v1501 = vpop.f32.mrf.mxu0
        %v1502 = vadd.f32 %v1422, %v1501
        %1503 = vdwg.mxu0
        %1504 = vmatpush.msra.mxu0 %v454
        %1505 = vmatpush.msra.mxu0 %v450
        %1506 = vmatpush.msra.mxu0 %v446
        %1507 = vmatpush.msra.mxu0 %v442
        %1508 = vmatpush.msra.mxu0 %v438
        %1509 = vmatpush.msra.mxu0 %v434
        %1510 = vmatpush.msra.mxu0 %v430
        %1511 = vmatpush.msra.mxu0 %v426
        %1512 = vmatpush.msra.mxu0 %v422
        %1513 = vmatpush.msra.mxu0 %v418
        %1514 = vmatpush.msra.mxu0 %v414
        %1515 = vmatpush.msra.mxu0 %v410
        %1516 = vmatpush.msra.mxu0 %v406
        %1517 = vmatpush.msra.mxu0 %v402
        %1518 = vmatpush.msra.mxu0 %v398
        %1519 = vmatpush.msra.mxu0 %v394
        %1520 = vmatmul.f32.gmra.mxu0 %v1383
        %v1521 = vpop.f32.mrf.mxu0
        %v1522 = vadd.f32 %v1442, %v1521
        %1523 = vdwg.mxu0
        %1524 = vmatpush.msra.mxu0 %v455
        %1525 = vmatpush.msra.mxu0 %v451
        %1526 = vmatpush.msra.mxu0 %v447
        %1527 = vmatpush.msra.mxu0 %v443
        %1528 = vmatpush.msra.mxu0 %v439
        %1529 = vmatpush.msra.mxu0 %v435
        %1530 = vmatpush.msra.mxu0 %v431
        %1531 = vmatpush.msra.mxu0 %v427
        %1532 = vmatpush.msra.mxu0 %v423
        %1533 = vmatpush.msra.mxu0 %v419
        %1534 = vmatpush.msra.mxu0 %v415
        %1535 = vmatpush.msra.mxu0 %v411
        %1536 = vmatpush.msra.mxu0 %v407
        %1537 = vmatpush.msra.mxu0 %v403
        %1538 = vmatpush.msra.mxu0 %v399
        %1539 = vmatpush.msra.mxu0 %v395
        %1540 = vmatmul.f32.gmra.mxu0 %v1383
        %v1541 = vpop.f32.mrf.mxu0
        %v1542 = vadd.f32 %v1462, %v1541
        %1543 = vdwg.mxu0
        %v1544 = vadd.f32 %v1482, %v458
        %v1545 = vadd.f32 %v1502, %v459
        %v1546 = vadd.f32 %v1522, %v460
        %v1547 = vadd.f32 %v1542, %v461
        %v1548 = vxor.u32 %v1544, 2147483648
        %v1549 = vmul.f32 %v1548, 1.442695
        %v1550 = vpow.pop %v1549
        %v1551 = vadd.f32 %v1550, 1.0
        %v1552 = vrcp.pop %v1551
        %v1553 = vmul.f32 %v1551, %v1552
        %v1554 = vsub.f32 1.0, %v1553
        %v1555 = vmul.f32 %v1552, %v1554
        %v1556 = vadd.f32 %v1552, %v1555
        %vm1557 = vweird.f32 %v1551
        %vm1558 = vweird.f32 %v1552
        %vm1559 = vmor %vm1557, %vm1558
        %v1560 = vsel %vm1559, %v1552, %v1556
        %v1561 = vand.u32 2147483647, %v1551
        %vm1562 = vcmp.eq.f32.partialorder %v1561, 8.507059e+37
        %v1563 = vand.u32 %v1551, 2147483648
        %v1564 = vor.u32 1.1754944e-38, %v1563
        %v1565 = vsel %vm1562, %v1564, %v1560
        %v1566 = vmul.f32 1.0, %v1565
        %v1567 = vxor.u32 %v1545, 2147483648
        %v1568 = vmul.f32 %v1567, 1.442695
        %v1569 = vpow.pop %v1568
        %v1570 = vadd.f32 %v1569, 1.0
        %v1571 = vrcp.pop %v1570
        %v1572 = vmul.f32 %v1570, %v1571
        %v1573 = vsub.f32 1.0, %v1572
        %v1574 = vmul.f32 %v1571, %v1573
        %v1575 = vadd.f32 %v1571, %v1574
        %vm1576 = vweird.f32 %v1570
        %vm1577 = vweird.f32 %v1571
        %vm1578 = vmor %vm1576, %vm1577
        %v1579 = vsel %vm1578, %v1571, %v1575
        %v1580 = vand.u32 2147483647, %v1570
        %vm1581 = vcmp.eq.f32.partialorder %v1580, 8.507059e+37
        %v1582 = vand.u32 %v1570, 2147483648
        %v1583 = vor.u32 1.1754944e-38, %v1582
        %v1584 = vsel %vm1581, %v1583, %v1579
        %v1585 = vmul.f32 1.0, %v1584
        %v1586 = vtanh.pop %v1546
        %v1587 = vxor.u32 %v1547, 2147483648
        %v1588 = vmul.f32 %v1587, 1.442695
        %v1589 = vpow.pop %v1588
        %v1590 = vadd.f32 %v1589, 1.0
        %v1591 = vrcp.pop %v1590
        %v1592 = vmul.f32 %v1590, %v1591
        %v1593 = vsub.f32 1.0, %v1592
        %v1594 = vmul.f32 %v1591, %v1593
        %v1595 = vadd.f32 %v1591, %v1594
        %vm1596 = vweird.f32 %v1590
        %vm1597 = vweird.f32 %v1591
        %vm1598 = vmor %vm1596, %vm1597
        %v1599 = vsel %vm1598, %v1591, %v1595
        %v1600 = vand.u32 2147483647, %v1590
        %vm1601 = vcmp.eq.f32.partialorder %v1600, 8.507059e+37
        %v1602 = vand.u32 %v1590, 2147483648
        %v1603 = vor.u32 1.1754944e-38, %v1602
        %v1604 = vsel %vm1601, %v1603, %v1599
        %v1605 = vmul.f32 1.0, %v1604
        %v1606 = vmul.f32 %v1585, %v1227
        %v1607 = vmul.f32 %v1566, %v1586
        %v1608 = vadd.f32 %v1606, %v1607
        %v1609 = vtanh.pop %v1608
        %v1610 = vmul.f32 %v1605, %v1609
        %s1611 = scalar_lea.vmem %s253, 16
        %1612 = vst [vmem:[%s1611] sm:$0xff] %v1610
        %s1613 = scalar_lea.vmem %s247, 96
        %v1614 = vld [vmem:[%s1613] sm:$0xff]
        %v1615 = vld [vmem:[%s1613 + $0x8] sm:$0xff]
        %v1616 = vld [vmem:[%s1613 + $0x10] sm:$0xff]
        %v1617 = vld [vmem:[%s1613 + $0x18] sm:$0xff]
        %1618 = vmatpush.msra.mxu0 %v323
        %1619 = vmatpush.msra.mxu0 %v319
        %1620 = vmatpush.msra.mxu0 %v315
        %1621 = vmatpush.msra.mxu0 %v311
        %1622 = vmatpush.msra.mxu0 %v307
        %1623 = vmatpush.msra.mxu0 %v303
        %1624 = vmatpush.msra.mxu0 %v299
        %1625 = vmatpush.msra.mxu0 %v295
        %1626 = vmatpush.msra.mxu0 %v291
        %1627 = vmatpush.msra.mxu0 %v287
        %1628 = vmatpush.msra.mxu0 %v283
        %1629 = vmatpush.msra.mxu0 %v279
        %1630 = vmatpush.msra.mxu0 %v275
        %1631 = vmatpush.msra.mxu0 %v271
        %1632 = vmatpush.msra.mxu0 %v267
        %1633 = vmatpush.msra.mxu0 %v263
        %1634 = vmatmul.f32.gmra.mxu0 %v1383
        %v1635 = vpop.f32.mrf.mxu0
        %v1636 = vadd.f32 0.0, %v1635
        %1637 = vdwg.mxu0
        %1638 = vmatpush.msra.mxu0 %v324
        %1639 = vmatpush.msra.mxu0 %v320
        %1640 = vmatpush.msra.mxu0 %v316
        %1641 = vmatpush.msra.mxu0 %v312
        %1642 = vmatpush.msra.mxu0 %v308
        %1643 = vmatpush.msra.mxu0 %v304
        %1644 = vmatpush.msra.mxu0 %v300
        %1645 = vmatpush.msra.mxu0 %v296
        %1646 = vmatpush.msra.mxu0 %v292
        %1647 = vmatpush.msra.mxu0 %v288
        %1648 = vmatpush.msra.mxu0 %v284
        %1649 = vmatpush.msra.mxu0 %v280
        %1650 = vmatpush.msra.mxu0 %v276
        %1651 = vmatpush.msra.mxu0 %v272
        %1652 = vmatpush.msra.mxu0 %v268
        %1653 = vmatpush.msra.mxu0 %v264
        %1654 = vmatmul.f32.gmra.mxu0 %v1383
        %v1655 = vpop.f32.mrf.mxu0
        %v1656 = vadd.f32 0.0, %v1655
        %1657 = vdwg.mxu0
        %1658 = vmatpush.msra.mxu0 %v325
        %1659 = vmatpush.msra.mxu0 %v321
        %1660 = vmatpush.msra.mxu0 %v317
        %1661 = vmatpush.msra.mxu0 %v313
        %1662 = vmatpush.msra.mxu0 %v309
        %1663 = vmatpush.msra.mxu0 %v305
        %1664 = vmatpush.msra.mxu0 %v301
        %1665 = vmatpush.msra.mxu0 %v297
        %1666 = vmatpush.msra.mxu0 %v293
        %1667 = vmatpush.msra.mxu0 %v289
        %1668 = vmatpush.msra.mxu0 %v285
        %1669 = vmatpush.msra.mxu0 %v281
        %1670 = vmatpush.msra.mxu0 %v277
        %1671 = vmatpush.msra.mxu0 %v273
        %1672 = vmatpush.msra.mxu0 %v269
        %1673 = vmatpush.msra.mxu0 %v265
        %1674 = vmatmul.f32.gmra.mxu0 %v1383
        %v1675 = vpop.f32.mrf.mxu0
        %v1676 = vadd.f32 0.0, %v1675
        %1677 = vdwg.mxu0
        %1678 = vmatpush.msra.mxu0 %v326
        %1679 = vmatpush.msra.mxu0 %v322
        %1680 = vmatpush.msra.mxu0 %v318
        %1681 = vmatpush.msra.mxu0 %v314
        %1682 = vmatpush.msra.mxu0 %v310
        %1683 = vmatpush.msra.mxu0 %v306
        %1684 = vmatpush.msra.mxu0 %v302
        %1685 = vmatpush.msra.mxu0 %v298
        %1686 = vmatpush.msra.mxu0 %v294
        %1687 = vmatpush.msra.mxu0 %v290
        %1688 = vmatpush.msra.mxu0 %v286
        %1689 = vmatpush.msra.mxu0 %v282
        %1690 = vmatpush.msra.mxu0 %v278
        %1691 = vmatpush.msra.mxu0 %v274
        %1692 = vmatpush.msra.mxu0 %v270
        %1693 = vmatpush.msra.mxu0 %v266
        %1694 = vmatmul.f32.gmra.mxu0 %v1383
        %v1695 = vpop.f32.mrf.mxu0
        %v1696 = vadd.f32 0.0, %v1695
        %1697 = vdwg.mxu0
        %v1698 = vadd.f32 %v1614, %v1636
        %v1699 = vadd.f32 %v1615, %v1656
        %v1700 = vadd.f32 %v1616, %v1676
        %v1701 = vadd.f32 %v1617, %v1696
        %v1702 = vxor.u32 %v1698, 2147483648
        %v1703 = vmul.f32 %v1702, 1.442695
        %v1704 = vpow.pop %v1703
        %v1705 = vadd.f32 %v1704, 1.0
        %v1706 = vrcp.pop %v1705
        %v1707 = vmul.f32 %v1705, %v1706
        %v1708 = vsub.f32 1.0, %v1707
        %v1709 = vmul.f32 %v1706, %v1708
        %v1710 = vadd.f32 %v1706, %v1709
        %vm1711 = vweird.f32 %v1705
        %vm1712 = vweird.f32 %v1706
        %vm1713 = vmor %vm1711, %vm1712
        %v1714 = vsel %vm1713, %v1706, %v1710
        %v1715 = vand.u32 2147483647, %v1705
        %vm1716 = vcmp.eq.f32.partialorder %v1715, 8.507059e+37
        %v1717 = vand.u32 %v1705, 2147483648
        %v1718 = vor.u32 1.1754944e-38, %v1717
        %v1719 = vsel %vm1716, %v1718, %v1714
        %v1720 = vmul.f32 1.0, %v1719
        %v1721 = vxor.u32 %v1699, 2147483648
        %v1722 = vmul.f32 %v1721, 1.442695
        %v1723 = vpow.pop %v1722
        %v1724 = vadd.f32 %v1723, 1.0
        %v1725 = vrcp.pop %v1724
        %v1726 = vmul.f32 %v1724, %v1725
        %v1727 = vsub.f32 1.0, %v1726
        %v1728 = vmul.f32 %v1725, %v1727
        %v1729 = vadd.f32 %v1725, %v1728
        %vm1730 = vweird.f32 %v1724
        %vm1731 = vweird.f32 %v1725
        %vm1732 = vmor %vm1730, %vm1731
        %v1733 = vsel %vm1732, %v1725, %v1729
        %v1734 = vand.u32 2147483647, %v1724
        %vm1735 = vcmp.eq.f32.partialorder %v1734, 8.507059e+37
        %v1736 = vand.u32 %v1724, 2147483648
        %v1737 = vor.u32 1.1754944e-38, %v1736
        %v1738 = vsel %vm1735, %v1737, %v1733
        %v1739 = vmul.f32 1.0, %v1738
        %v1740 = vtanh.pop %v1700
        %v1741 = vxor.u32 %v1701, 2147483648
        %v1742 = vmul.f32 %v1741, 1.442695
        %v1743 = vpow.pop %v1742
        %v1744 = vadd.f32 %v1743, 1.0
        %v1745 = vrcp.pop %v1744
        %v1746 = vmul.f32 %v1744, %v1745
        %v1747 = vsub.f32 1.0, %v1746
        %v1748 = vmul.f32 %v1745, %v1747
        %v1749 = vadd.f32 %v1745, %v1748
        %vm1750 = vweird.f32 %v1744
        %vm1751 = vweird.f32 %v1745
        %vm1752 = vmor %vm1750, %vm1751
        %v1753 = vsel %vm1752, %v1745, %v1749
        %v1754 = vand.u32 2147483647, %v1744
        %vm1755 = vcmp.eq.f32.partialorder %v1754, 8.507059e+37
        %v1756 = vand.u32 %v1744, 2147483648
        %v1757 = vor.u32 1.1754944e-38, %v1756
        %v1758 = vsel %vm1755, %v1757, %v1753
        %v1759 = vmul.f32 1.0, %v1758
        %v1760 = vmul.f32 %v1739, %v1381
        %v1761 = vmul.f32 %v1720, %v1740
        %v1762 = vadd.f32 %v1760, %v1761
        %v1763 = vtanh.pop %v1762
        %v1764 = vmul.f32 %v1759, %v1763
        %1765 = vmatpush.msra.mxu0 %v388
        %1766 = vmatpush.msra.mxu0 %v384
        %1767 = vmatpush.msra.mxu0 %v380
        %1768 = vmatpush.msra.mxu0 %v376
        %1769 = vmatpush.msra.mxu0 %v372
        %1770 = vmatpush.msra.mxu0 %v368
        %1771 = vmatpush.msra.mxu0 %v364
        %1772 = vmatpush.msra.mxu0 %v360
        %1773 = vmatpush.msra.mxu0 %v356
        %1774 = vmatpush.msra.mxu0 %v352
        %1775 = vmatpush.msra.mxu0 %v348
        %1776 = vmatpush.msra.mxu0 %v344
        %1777 = vmatpush.msra.mxu0 %v340
        %1778 = vmatpush.msra.mxu0 %v336
        %1779 = vmatpush.msra.mxu0 %v332
        %1780 = vmatpush.msra.mxu0 %v328
        %1781 = vmatmul.f32.gmra.mxu0 %v1610
        %v1782 = vpop.f32.mrf.mxu0
        %v1783 = vadd.f32 0.0, %v1782
        %1784 = vdwg.mxu0
        %1785 = vmatpush.msra.mxu0 %v389
        %1786 = vmatpush.msra.mxu0 %v385
        %1787 = vmatpush.msra.mxu0 %v381
        %1788 = vmatpush.msra.mxu0 %v377
        %1789 = vmatpush.msra.mxu0 %v373
        %1790 = vmatpush.msra.mxu0 %v369
        %1791 = vmatpush.msra.mxu0 %v365
        %1792 = vmatpush.msra.mxu0 %v361
        %1793 = vmatpush.msra.mxu0 %v357
        %1794 = vmatpush.msra.mxu0 %v353
        %1795 = vmatpush.msra.mxu0 %v349
        %1796 = vmatpush.msra.mxu0 %v345
        %1797 = vmatpush.msra.mxu0 %v341
        %1798 = vmatpush.msra.mxu0 %v337
        %1799 = vmatpush.msra.mxu0 %v333
        %1800 = vmatpush.msra.mxu0 %v329
        %1801 = vmatmul.f32.gmra.mxu0 %v1610
        %v1802 = vpop.f32.mrf.mxu0
        %v1803 = vadd.f32 0.0, %v1802
        %1804 = vdwg.mxu0
        %1805 = vmatpush.msra.mxu0 %v390
        %1806 = vmatpush.msra.mxu0 %v386
        %1807 = vmatpush.msra.mxu0 %v382
        %1808 = vmatpush.msra.mxu0 %v378
        %1809 = vmatpush.msra.mxu0 %v374
        %1810 = vmatpush.msra.mxu0 %v370
        %1811 = vmatpush.msra.mxu0 %v366
        %1812 = vmatpush.msra.mxu0 %v362
        %1813 = vmatpush.msra.mxu0 %v358
        %1814 = vmatpush.msra.mxu0 %v354
        %1815 = vmatpush.msra.mxu0 %v350
        %1816 = vmatpush.msra.mxu0 %v346
        %1817 = vmatpush.msra.mxu0 %v342
        %1818 = vmatpush.msra.mxu0 %v338
        %1819 = vmatpush.msra.mxu0 %v334
        %1820 = vmatpush.msra.mxu0 %v330
        %1821 = vmatmul.f32.gmra.mxu0 %v1610
        %v1822 = vpop.f32.mrf.mxu0
        %v1823 = vadd.f32 0.0, %v1822
        %1824 = vdwg.mxu0
        %1825 = vmatpush.msra.mxu0 %v391
        %1826 = vmatpush.msra.mxu0 %v387
        %1827 = vmatpush.msra.mxu0 %v383
        %1828 = vmatpush.msra.mxu0 %v379
        %1829 = vmatpush.msra.mxu0 %v375
        %1830 = vmatpush.msra.mxu0 %v371
        %1831 = vmatpush.msra.mxu0 %v367
        %1832 = vmatpush.msra.mxu0 %v363
        %1833 = vmatpush.msra.mxu0 %v359
        %1834 = vmatpush.msra.mxu0 %v355
        %1835 = vmatpush.msra.mxu0 %v351
        %1836 = vmatpush.msra.mxu0 %v347
        %1837 = vmatpush.msra.mxu0 %v343
        %1838 = vmatpush.msra.mxu0 %v339
        %1839 = vmatpush.msra.mxu0 %v335
        %1840 = vmatpush.msra.mxu0 %v331
        %1841 = vmatmul.f32.gmra.mxu0 %v1610
        %v1842 = vpop.f32.mrf.mxu0
        %v1843 = vadd.f32 0.0, %v1842
        %1844 = vdwg.mxu0
        %1845 = vmatpush.msra.mxu0 %v452
        %1846 = vmatpush.msra.mxu0 %v448
        %1847 = vmatpush.msra.mxu0 %v444
        %1848 = vmatpush.msra.mxu0 %v440
        %1849 = vmatpush.msra.mxu0 %v436
        %1850 = vmatpush.msra.mxu0 %v432
        %1851 = vmatpush.msra.mxu0 %v428
        %1852 = vmatpush.msra.mxu0 %v424
        %1853 = vmatpush.msra.mxu0 %v420
        %1854 = vmatpush.msra.mxu0 %v416
        %1855 = vmatpush.msra.mxu0 %v412
        %1856 = vmatpush.msra.mxu0 %v408
        %1857 = vmatpush.msra.mxu0 %v404
        %1858 = vmatpush.msra.mxu0 %v400
        %1859 = vmatpush.msra.mxu0 %v396
        %1860 = vmatpush.msra.mxu0 %v392
        %1861 = vmatmul.f32.gmra.mxu0 %v1764
        %v1862 = vpop.f32.mrf.mxu0
        %v1863 = vadd.f32 %v1783, %v1862
        %1864 = vdwg.mxu0
        %1865 = vmatpush.msra.mxu0 %v453
        %1866 = vmatpush.msra.mxu0 %v449
        %1867 = vmatpush.msra.mxu0 %v445
        %1868 = vmatpush.msra.mxu0 %v441
        %1869 = vmatpush.msra.mxu0 %v437
        %1870 = vmatpush.msra.mxu0 %v433
        %1871 = vmatpush.msra.mxu0 %v429
        %1872 = vmatpush.msra.mxu0 %v425
        %1873 = vmatpush.msra.mxu0 %v421
        %1874 = vmatpush.msra.mxu0 %v417
        %1875 = vmatpush.msra.mxu0 %v413
        %1876 = vmatpush.msra.mxu0 %v409
        %1877 = vmatpush.msra.mxu0 %v405
        %1878 = vmatpush.msra.mxu0 %v401
        %1879 = vmatpush.msra.mxu0 %v397
        %1880 = vmatpush.msra.mxu0 %v393
        %1881 = vmatmul.f32.gmra.mxu0 %v1764
        %v1882 = vpop.f32.mrf.mxu0
        %v1883 = vadd.f32 %v1803, %v1882
        %1884 = vdwg.mxu0
        %1885 = vmatpush.msra.mxu0 %v454
        %1886 = vmatpush.msra.mxu0 %v450
        %1887 = vmatpush.msra.mxu0 %v446
        %1888 = vmatpush.msra.mxu0 %v442
        %1889 = vmatpush.msra.mxu0 %v438
        %1890 = vmatpush.msra.mxu0 %v434
        %1891 = vmatpush.msra.mxu0 %v430
        %1892 = vmatpush.msra.mxu0 %v426
        %1893 = vmatpush.msra.mxu0 %v422
        %1894 = vmatpush.msra.mxu0 %v418
        %1895 = vmatpush.msra.mxu0 %v414
        %1896 = vmatpush.msra.mxu0 %v410
        %1897 = vmatpush.msra.mxu0 %v406
        %1898 = vmatpush.msra.mxu0 %v402
        %1899 = vmatpush.msra.mxu0 %v398
        %1900 = vmatpush.msra.mxu0 %v394
        %1901 = vmatmul.f32.gmra.mxu0 %v1764
        %v1902 = vpop.f32.mrf.mxu0
        %v1903 = vadd.f32 %v1823, %v1902
        %1904 = vdwg.mxu0
        %1905 = vmatpush.msra.mxu0 %v455
        %1906 = vmatpush.msra.mxu0 %v451
        %1907 = vmatpush.msra.mxu0 %v447
        %1908 = vmatpush.msra.mxu0 %v443
        %1909 = vmatpush.msra.mxu0 %v439
        %1910 = vmatpush.msra.mxu0 %v435
        %1911 = vmatpush.msra.mxu0 %v431
        %1912 = vmatpush.msra.mxu0 %v427
        %1913 = vmatpush.msra.mxu0 %v423
        %1914 = vmatpush.msra.mxu0 %v419
        %1915 = vmatpush.msra.mxu0 %v415
        %1916 = vmatpush.msra.mxu0 %v411
        %1917 = vmatpush.msra.mxu0 %v407
        %1918 = vmatpush.msra.mxu0 %v403
        %1919 = vmatpush.msra.mxu0 %v399
        %1920 = vmatpush.msra.mxu0 %v395
        %1921 = vmatmul.f32.gmra.mxu0 %v1764
        %v1922 = vpop.f32.mrf.mxu0
        %v1923 = vadd.f32 %v1843, %v1922
        %1924 = vdwg.mxu0
        %v1925 = vadd.f32 %v1863, %v458
        %v1926 = vadd.f32 %v1883, %v459
        %v1927 = vadd.f32 %v1903, %v460
        %v1928 = vadd.f32 %v1923, %v461
        %v1929 = vxor.u32 %v1925, 2147483648
        %v1930 = vmul.f32 %v1929, 1.442695
        %v1931 = vpow.pop %v1930
        %v1932 = vadd.f32 %v1931, 1.0
        %v1933 = vrcp.pop %v1932
        %v1934 = vmul.f32 %v1932, %v1933
        %v1935 = vsub.f32 1.0, %v1934
        %v1936 = vmul.f32 %v1933, %v1935
        %v1937 = vadd.f32 %v1933, %v1936
        %vm1938 = vweird.f32 %v1932
        %vm1939 = vweird.f32 %v1933
        %vm1940 = vmor %vm1938, %vm1939
        %v1941 = vsel %vm1940, %v1933, %v1937
        %v1942 = vand.u32 2147483647, %v1932
        %vm1943 = vcmp.eq.f32.partialorder %v1942, 8.507059e+37
        %v1944 = vand.u32 %v1932, 2147483648
        %v1945 = vor.u32 1.1754944e-38, %v1944
        %v1946 = vsel %vm1943, %v1945, %v1941
        %v1947 = vmul.f32 1.0, %v1946
        %v1948 = vxor.u32 %v1926, 2147483648
        %v1949 = vmul.f32 %v1948, 1.442695
        %v1950 = vpow.pop %v1949
        %v1951 = vadd.f32 %v1950, 1.0
        %v1952 = vrcp.pop %v1951
        %v1953 = vmul.f32 %v1951, %v1952
        %v1954 = vsub.f32 1.0, %v1953
        %v1955 = vmul.f32 %v1952, %v1954
        %v1956 = vadd.f32 %v1952, %v1955
        %vm1957 = vweird.f32 %v1951
        %vm1958 = vweird.f32 %v1952
        %vm1959 = vmor %vm1957, %vm1958
        %v1960 = vsel %vm1959, %v1952, %v1956
        %v1961 = vand.u32 2147483647, %v1951
        %vm1962 = vcmp.eq.f32.partialorder %v1961, 8.507059e+37
        %v1963 = vand.u32 %v1951, 2147483648
        %v1964 = vor.u32 1.1754944e-38, %v1963
        %v1965 = vsel %vm1962, %v1964, %v1960
        %v1966 = vmul.f32 1.0, %v1965
        %v1967 = vtanh.pop %v1927
        %v1968 = vxor.u32 %v1928, 2147483648
        %v1969 = vmul.f32 %v1968, 1.442695
        %v1970 = vpow.pop %v1969
        %v1971 = vadd.f32 %v1970, 1.0
        %v1972 = vrcp.pop %v1971
        %v1973 = vmul.f32 %v1971, %v1972
        %v1974 = vsub.f32 1.0, %v1973
        %v1975 = vmul.f32 %v1972, %v1974
        %v1976 = vadd.f32 %v1972, %v1975
        %vm1977 = vweird.f32 %v1971
        %vm1978 = vweird.f32 %v1972
        %vm1979 = vmor %vm1977, %vm1978
        %v1980 = vsel %vm1979, %v1972, %v1976
        %v1981 = vand.u32 2147483647, %v1971
        %vm1982 = vcmp.eq.f32.partialorder %v1981, 8.507059e+37
        %v1983 = vand.u32 %v1971, 2147483648
        %v1984 = vor.u32 1.1754944e-38, %v1983
        %v1985 = vsel %vm1982, %v1984, %v1980
        %v1986 = vmul.f32 1.0, %v1985
        %v1987 = vmul.f32 %v1966, %v1608
        %v1988 = vmul.f32 %v1947, %v1967
        %v1989 = vadd.f32 %v1987, %v1988
        %v1990 = vtanh.pop %v1989
        %v1991 = vmul.f32 %v1986, %v1990
        %s1992 = scalar_lea.vmem %s253, 24
        %1993 = vst [vmem:[%s1992] sm:$0xff] %v1991
        %s1994 = scalar_lea.vmem %s247, 128
        %v1995 = vld [vmem:[%s1994] sm:$0xff]
        %v1996 = vld [vmem:[%s1994 + $0x8] sm:$0xff]
        %v1997 = vld [vmem:[%s1994 + $0x10] sm:$0xff]
        %v1998 = vld [vmem:[%s1994 + $0x18] sm:$0xff]
        %1999 = vmatpush.msra.mxu0 %v323
        %2000 = vmatpush.msra.mxu0 %v319
        %2001 = vmatpush.msra.mxu0 %v315
        %2002 = vmatpush.msra.mxu0 %v311
        %2003 = vmatpush.msra.mxu0 %v307
        %2004 = vmatpush.msra.mxu0 %v303
        %2005 = vmatpush.msra.mxu0 %v299
        %2006 = vmatpush.msra.mxu0 %v295
        %2007 = vmatpush.msra.mxu0 %v291
        %2008 = vmatpush.msra.mxu0 %v287
        %2009 = vmatpush.msra.mxu0 %v283
        %2010 = vmatpush.msra.mxu0 %v279
        %2011 = vmatpush.msra.mxu0 %v275
        %2012 = vmatpush.msra.mxu0 %v271
        %2013 = vmatpush.msra.mxu0 %v267
        %2014 = vmatpush.msra.mxu0 %v263
        %2015 = vmatmul.f32.gmra.mxu0 %v1764
        %v2016 = vpop.f32.mrf.mxu0
        %v2017 = vadd.f32 0.0, %v2016
        %2018 = vdwg.mxu0
        %2019 = vmatpush.msra.mxu0 %v324
        %2020 = vmatpush.msra.mxu0 %v320
        %2021 = vmatpush.msra.mxu0 %v316
        %2022 = vmatpush.msra.mxu0 %v312
        %2023 = vmatpush.msra.mxu0 %v308
        %2024 = vmatpush.msra.mxu0 %v304
        %2025 = vmatpush.msra.mxu0 %v300
        %2026 = vmatpush.msra.mxu0 %v296
        %2027 = vmatpush.msra.mxu0 %v292
        %2028 = vmatpush.msra.mxu0 %v288
        %2029 = vmatpush.msra.mxu0 %v284
        %2030 = vmatpush.msra.mxu0 %v280
        %2031 = vmatpush.msra.mxu0 %v276
        %2032 = vmatpush.msra.mxu0 %v272
        %2033 = vmatpush.msra.mxu0 %v268
        %2034 = vmatpush.msra.mxu0 %v264
        %2035 = vmatmul.f32.gmra.mxu0 %v1764
        %v2036 = vpop.f32.mrf.mxu0
        %v2037 = vadd.f32 0.0, %v2036
        %2038 = vdwg.mxu0
        %2039 = vmatpush.msra.mxu0 %v325
        %2040 = vmatpush.msra.mxu0 %v321
        %2041 = vmatpush.msra.mxu0 %v317
        %2042 = vmatpush.msra.mxu0 %v313
        %2043 = vmatpush.msra.mxu0 %v309
        %2044 = vmatpush.msra.mxu0 %v305
        %2045 = vmatpush.msra.mxu0 %v301
        %2046 = vmatpush.msra.mxu0 %v297
        %2047 = vmatpush.msra.mxu0 %v293
        %2048 = vmatpush.msra.mxu0 %v289
        %2049 = vmatpush.msra.mxu0 %v285
        %2050 = vmatpush.msra.mxu0 %v281
        %2051 = vmatpush.msra.mxu0 %v277
        %2052 = vmatpush.msra.mxu0 %v273
        %2053 = vmatpush.msra.mxu0 %v269
        %2054 = vmatpush.msra.mxu0 %v265
        %2055 = vmatmul.f32.gmra.mxu0 %v1764
        %v2056 = vpop.f32.mrf.mxu0
        %v2057 = vadd.f32 0.0, %v2056
        %2058 = vdwg.mxu0
        %2059 = vmatpush.msra.mxu0 %v326
        %2060 = vmatpush.msra.mxu0 %v322
        %2061 = vmatpush.msra.mxu0 %v318
        %2062 = vmatpush.msra.mxu0 %v314
        %2063 = vmatpush.msra.mxu0 %v310
        %2064 = vmatpush.msra.mxu0 %v306
        %2065 = vmatpush.msra.mxu0 %v302
        %2066 = vmatpush.msra.mxu0 %v298
        %2067 = vmatpush.msra.mxu0 %v294
        %2068 = vmatpush.msra.mxu0 %v290
        %2069 = vmatpush.msra.mxu0 %v286
        %2070 = vmatpush.msra.mxu0 %v282
        %2071 = vmatpush.msra.mxu0 %v278
        %2072 = vmatpush.msra.mxu0 %v274
        %2073 = vmatpush.msra.mxu0 %v270
        %2074 = vmatpush.msra.mxu0 %v266
        %2075 = vmatmul.f32.gmra.mxu0 %v1764
        %v2076 = vpop.f32.mrf.mxu0
        %v2077 = vadd.f32 0.0, %v2076
        %2078 = vdwg.mxu0
        %v2079 = vadd.f32 %v1995, %v2017
        %v2080 = vadd.f32 %v1996, %v2037
        %v2081 = vadd.f32 %v1997, %v2057
        %v2082 = vadd.f32 %v1998, %v2077
        %v2083 = vxor.u32 %v2079, 2147483648
        %v2084 = vmul.f32 %v2083, 1.442695
        %v2085 = vpow.pop %v2084
        %v2086 = vadd.f32 %v2085, 1.0
        %v2087 = vrcp.pop %v2086
        %v2088 = vmul.f32 %v2086, %v2087
        %v2089 = vsub.f32 1.0, %v2088
        %v2090 = vmul.f32 %v2087, %v2089
        %v2091 = vadd.f32 %v2087, %v2090
        %vm2092 = vweird.f32 %v2086
        %vm2093 = vweird.f32 %v2087
        %vm2094 = vmor %vm2092, %vm2093
        %v2095 = vsel %vm2094, %v2087, %v2091
        %v2096 = vand.u32 2147483647, %v2086
        %vm2097 = vcmp.eq.f32.partialorder %v2096, 8.507059e+37
        %v2098 = vand.u32 %v2086, 2147483648
        %v2099 = vor.u32 1.1754944e-38, %v2098
        %v2100 = vsel %vm2097, %v2099, %v2095
        %v2101 = vmul.f32 1.0, %v2100
        %v2102 = vxor.u32 %v2080, 2147483648
        %v2103 = vmul.f32 %v2102, 1.442695
        %v2104 = vpow.pop %v2103
        %v2105 = vadd.f32 %v2104, 1.0
        %v2106 = vrcp.pop %v2105
        %v2107 = vmul.f32 %v2105, %v2106
        %v2108 = vsub.f32 1.0, %v2107
        %v2109 = vmul.f32 %v2106, %v2108
        %v2110 = vadd.f32 %v2106, %v2109
        %vm2111 = vweird.f32 %v2105
        %vm2112 = vweird.f32 %v2106
        %vm2113 = vmor %vm2111, %vm2112
        %v2114 = vsel %vm2113, %v2106, %v2110
        %v2115 = vand.u32 2147483647, %v2105
        %vm2116 = vcmp.eq.f32.partialorder %v2115, 8.507059e+37
        %v2117 = vand.u32 %v2105, 2147483648
        %v2118 = vor.u32 1.1754944e-38, %v2117
        %v2119 = vsel %vm2116, %v2118, %v2114
        %v2120 = vmul.f32 1.0, %v2119
        %v2121 = vtanh.pop %v2081
        %v2122 = vxor.u32 %v2082, 2147483648
        %v2123 = vmul.f32 %v2122, 1.442695
        %v2124 = vpow.pop %v2123
        %v2125 = vadd.f32 %v2124, 1.0
        %v2126 = vrcp.pop %v2125
        %v2127 = vmul.f32 %v2125, %v2126
        %v2128 = vsub.f32 1.0, %v2127
        %v2129 = vmul.f32 %v2126, %v2128
        %v2130 = vadd.f32 %v2126, %v2129
        %vm2131 = vweird.f32 %v2125
        %vm2132 = vweird.f32 %v2126
        %vm2133 = vmor %vm2131, %vm2132
        %v2134 = vsel %vm2133, %v2126, %v2130
        %v2135 = vand.u32 2147483647, %v2125
        %vm2136 = vcmp.eq.f32.partialorder %v2135, 8.507059e+37
        %v2137 = vand.u32 %v2125, 2147483648
        %v2138 = vor.u32 1.1754944e-38, %v2137
        %v2139 = vsel %vm2136, %v2138, %v2134
        %v2140 = vmul.f32 1.0, %v2139
        %v2141 = vmul.f32 %v2120, %v1762
        %v2142 = vmul.f32 %v2101, %v2121
        %v2143 = vadd.f32 %v2141, %v2142
        %v2144 = vtanh.pop %v2143
        %v2145 = vmul.f32 %v2140, %v2144
        %2146 = vmatpush.msra.mxu0 %v388
        %2147 = vmatpush.msra.mxu0 %v384
        %2148 = vmatpush.msra.mxu0 %v380
        %2149 = vmatpush.msra.mxu0 %v376
        %2150 = vmatpush.msra.mxu0 %v372
        %2151 = vmatpush.msra.mxu0 %v368
        %2152 = vmatpush.msra.mxu0 %v364
        %2153 = vmatpush.msra.mxu0 %v360
        %2154 = vmatpush.msra.mxu0 %v356
        %2155 = vmatpush.msra.mxu0 %v352
        %2156 = vmatpush.msra.mxu0 %v348
        %2157 = vmatpush.msra.mxu0 %v344
        %2158 = vmatpush.msra.mxu0 %v340
        %2159 = vmatpush.msra.mxu0 %v336
        %2160 = vmatpush.msra.mxu0 %v332
        %2161 = vmatpush.msra.mxu0 %v328
        %2162 = vmatmul.f32.gmra.mxu0 %v1991
        %v2163 = vpop.f32.mrf.mxu0
        %v2164 = vadd.f32 0.0, %v2163
        %2165 = vdwg.mxu0
        %2166 = vmatpush.msra.mxu0 %v389
        %2167 = vmatpush.msra.mxu0 %v385
        %2168 = vmatpush.msra.mxu0 %v381
        %2169 = vmatpush.msra.mxu0 %v377
        %2170 = vmatpush.msra.mxu0 %v373
        %2171 = vmatpush.msra.mxu0 %v369
        %2172 = vmatpush.msra.mxu0 %v365
        %2173 = vmatpush.msra.mxu0 %v361
        %2174 = vmatpush.msra.mxu0 %v357
        %2175 = vmatpush.msra.mxu0 %v353
        %2176 = vmatpush.msra.mxu0 %v349
        %2177 = vmatpush.msra.mxu0 %v345
        %2178 = vmatpush.msra.mxu0 %v341
        %2179 = vmatpush.msra.mxu0 %v337
        %2180 = vmatpush.msra.mxu0 %v333
        %2181 = vmatpush.msra.mxu0 %v329
        %2182 = vmatmul.f32.gmra.mxu0 %v1991
        %v2183 = vpop.f32.mrf.mxu0
        %v2184 = vadd.f32 0.0, %v2183
        %2185 = vdwg.mxu0
        %2186 = vmatpush.msra.mxu0 %v390
        %2187 = vmatpush.msra.mxu0 %v386
        %2188 = vmatpush.msra.mxu0 %v382
        %2189 = vmatpush.msra.mxu0 %v378
        %2190 = vmatpush.msra.mxu0 %v374
        %2191 = vmatpush.msra.mxu0 %v370
        %2192 = vmatpush.msra.mxu0 %v366
        %2193 = vmatpush.msra.mxu0 %v362
        %2194 = vmatpush.msra.mxu0 %v358
        %2195 = vmatpush.msra.mxu0 %v354
        %2196 = vmatpush.msra.mxu0 %v350
        %2197 = vmatpush.msra.mxu0 %v346
        %2198 = vmatpush.msra.mxu0 %v342
        %2199 = vmatpush.msra.mxu0 %v338
        %2200 = vmatpush.msra.mxu0 %v334
        %2201 = vmatpush.msra.mxu0 %v330
        %2202 = vmatmul.f32.gmra.mxu0 %v1991
        %v2203 = vpop.f32.mrf.mxu0
        %v2204 = vadd.f32 0.0, %v2203
        %2205 = vdwg.mxu0
        %2206 = vmatpush.msra.mxu0 %v391
        %2207 = vmatpush.msra.mxu0 %v387
        %2208 = vmatpush.msra.mxu0 %v383
        %2209 = vmatpush.msra.mxu0 %v379
        %2210 = vmatpush.msra.mxu0 %v375
        %2211 = vmatpush.msra.mxu0 %v371
        %2212 = vmatpush.msra.mxu0 %v367
        %2213 = vmatpush.msra.mxu0 %v363
        %2214 = vmatpush.msra.mxu0 %v359
        %2215 = vmatpush.msra.mxu0 %v355
        %2216 = vmatpush.msra.mxu0 %v351
        %2217 = vmatpush.msra.mxu0 %v347
        %2218 = vmatpush.msra.mxu0 %v343
        %2219 = vmatpush.msra.mxu0 %v339
        %2220 = vmatpush.msra.mxu0 %v335
        %2221 = vmatpush.msra.mxu0 %v331
        %2222 = vmatmul.f32.gmra.mxu0 %v1991
        %v2223 = vpop.f32.mrf.mxu0
        %v2224 = vadd.f32 0.0, %v2223
        %2225 = vdwg.mxu0
        %2226 = vmatpush.msra.mxu0 %v452
        %2227 = vmatpush.msra.mxu0 %v448
        %2228 = vmatpush.msra.mxu0 %v444
        %2229 = vmatpush.msra.mxu0 %v440
        %2230 = vmatpush.msra.mxu0 %v436
        %2231 = vmatpush.msra.mxu0 %v432
        %2232 = vmatpush.msra.mxu0 %v428
        %2233 = vmatpush.msra.mxu0 %v424
        %2234 = vmatpush.msra.mxu0 %v420
        %2235 = vmatpush.msra.mxu0 %v416
        %2236 = vmatpush.msra.mxu0 %v412
        %2237 = vmatpush.msra.mxu0 %v408
        %2238 = vmatpush.msra.mxu0 %v404
        %2239 = vmatpush.msra.mxu0 %v400
        %2240 = vmatpush.msra.mxu0 %v396
        %2241 = vmatpush.msra.mxu0 %v392
        %2242 = vmatmul.f32.gmra.mxu0 %v2145
        %v2243 = vpop.f32.mrf.mxu0
        %v2244 = vadd.f32 %v2164, %v2243
        %2245 = vdwg.mxu0
        %2246 = vmatpush.msra.mxu0 %v453
        %2247 = vmatpush.msra.mxu0 %v449
        %2248 = vmatpush.msra.mxu0 %v445
        %2249 = vmatpush.msra.mxu0 %v441
        %2250 = vmatpush.msra.mxu0 %v437
        %2251 = vmatpush.msra.mxu0 %v433
        %2252 = vmatpush.msra.mxu0 %v429
        %2253 = vmatpush.msra.mxu0 %v425
        %2254 = vmatpush.msra.mxu0 %v421
        %2255 = vmatpush.msra.mxu0 %v417
        %2256 = vmatpush.msra.mxu0 %v413
        %2257 = vmatpush.msra.mxu0 %v409
        %2258 = vmatpush.msra.mxu0 %v405
        %2259 = vmatpush.msra.mxu0 %v401
        %2260 = vmatpush.msra.mxu0 %v397
        %2261 = vmatpush.msra.mxu0 %v393
        %2262 = vmatmul.f32.gmra.mxu0 %v2145
        %v2263 = vpop.f32.mrf.mxu0
        %v2264 = vadd.f32 %v2184, %v2263
        %2265 = vdwg.mxu0
        %2266 = vmatpush.msra.mxu0 %v454
        %2267 = vmatpush.msra.mxu0 %v450
        %2268 = vmatpush.msra.mxu0 %v446
        %2269 = vmatpush.msra.mxu0 %v442
        %2270 = vmatpush.msra.mxu0 %v438
        %2271 = vmatpush.msra.mxu0 %v434
        %2272 = vmatpush.msra.mxu0 %v430
        %2273 = vmatpush.msra.mxu0 %v426
        %2274 = vmatpush.msra.mxu0 %v422
        %2275 = vmatpush.msra.mxu0 %v418
        %2276 = vmatpush.msra.mxu0 %v414
        %2277 = vmatpush.msra.mxu0 %v410
        %2278 = vmatpush.msra.mxu0 %v406
        %2279 = vmatpush.msra.mxu0 %v402
        %2280 = vmatpush.msra.mxu0 %v398
        %2281 = vmatpush.msra.mxu0 %v394
        %2282 = vmatmul.f32.gmra.mxu0 %v2145
        %v2283 = vpop.f32.mrf.mxu0
        %v2284 = vadd.f32 %v2204, %v2283
        %2285 = vdwg.mxu0
        %2286 = vmatpush.msra.mxu0 %v455
        %2287 = vmatpush.msra.mxu0 %v451
        %2288 = vmatpush.msra.mxu0 %v447
        %2289 = vmatpush.msra.mxu0 %v443
        %2290 = vmatpush.msra.mxu0 %v439
        %2291 = vmatpush.msra.mxu0 %v435
        %2292 = vmatpush.msra.mxu0 %v431
        %2293 = vmatpush.msra.mxu0 %v427
        %2294 = vmatpush.msra.mxu0 %v423
        %2295 = vmatpush.msra.mxu0 %v419
        %2296 = vmatpush.msra.mxu0 %v415
        %2297 = vmatpush.msra.mxu0 %v411
        %2298 = vmatpush.msra.mxu0 %v407
        %2299 = vmatpush.msra.mxu0 %v403
        %2300 = vmatpush.msra.mxu0 %v399
        %2301 = vmatpush.msra.mxu0 %v395
        %2302 = vmatmul.f32.gmra.mxu0 %v2145
        %v2303 = vpop.f32.mrf.mxu0
        %v2304 = vadd.f32 %v2224, %v2303
        %2305 = vdwg.mxu0
        %v2306 = vadd.f32 %v2244, %v458
        %v2307 = vadd.f32 %v2264, %v459
        %v2308 = vadd.f32 %v2284, %v460
        %v2309 = vadd.f32 %v2304, %v461
        %v2310 = vxor.u32 %v2306, 2147483648
        %v2311 = vmul.f32 %v2310, 1.442695
        %v2312 = vpow.pop %v2311
        %v2313 = vadd.f32 %v2312, 1.0
        %v2314 = vrcp.pop %v2313
        %v2315 = vmul.f32 %v2313, %v2314
        %v2316 = vsub.f32 1.0, %v2315
        %v2317 = vmul.f32 %v2314, %v2316
        %v2318 = vadd.f32 %v2314, %v2317
        %vm2319 = vweird.f32 %v2313
        %vm2320 = vweird.f32 %v2314
        %vm2321 = vmor %vm2319, %vm2320
        %v2322 = vsel %vm2321, %v2314, %v2318
        %v2323 = vand.u32 2147483647, %v2313
        %vm2324 = vcmp.eq.f32.partialorder %v2323, 8.507059e+37
        %v2325 = vand.u32 %v2313, 2147483648
        %v2326 = vor.u32 1.1754944e-38, %v2325
        %v2327 = vsel %vm2324, %v2326, %v2322
        %v2328 = vmul.f32 1.0, %v2327
        %v2329 = vxor.u32 %v2307, 2147483648
        %v2330 = vmul.f32 %v2329, 1.442695
        %v2331 = vpow.pop %v2330
        %v2332 = vadd.f32 %v2331, 1.0
        %v2333 = vrcp.pop %v2332
        %v2334 = vmul.f32 %v2332, %v2333
        %v2335 = vsub.f32 1.0, %v2334
        %v2336 = vmul.f32 %v2333, %v2335
        %v2337 = vadd.f32 %v2333, %v2336
        %vm2338 = vweird.f32 %v2332
        %vm2339 = vweird.f32 %v2333
        %vm2340 = vmor %vm2338, %vm2339
        %v2341 = vsel %vm2340, %v2333, %v2337
        %v2342 = vand.u32 2147483647, %v2332
        %vm2343 = vcmp.eq.f32.partialorder %v2342, 8.507059e+37
        %v2344 = vand.u32 %v2332, 2147483648
        %v2345 = vor.u32 1.1754944e-38, %v2344
        %v2346 = vsel %vm2343, %v2345, %v2341
        %v2347 = vmul.f32 1.0, %v2346
        %v2348 = vtanh.pop %v2308
        %v2349 = vxor.u32 %v2309, 2147483648
        %v2350 = vmul.f32 %v2349, 1.442695
        %v2351 = vpow.pop %v2350
        %v2352 = vadd.f32 %v2351, 1.0
        %v2353 = vrcp.pop %v2352
        %v2354 = vmul.f32 %v2352, %v2353
        %v2355 = vsub.f32 1.0, %v2354
        %v2356 = vmul.f32 %v2353, %v2355
        %v2357 = vadd.f32 %v2353, %v2356
        %vm2358 = vweird.f32 %v2352
        %vm2359 = vweird.f32 %v2353
        %vm2360 = vmor %vm2358, %vm2359
        %v2361 = vsel %vm2360, %v2353, %v2357
        %v2362 = vand.u32 2147483647, %v2352
        %vm2363 = vcmp.eq.f32.partialorder %v2362, 8.507059e+37
        %v2364 = vand.u32 %v2352, 2147483648
        %v2365 = vor.u32 1.1754944e-38, %v2364
        %v2366 = vsel %vm2363, %v2365, %v2361
        %v2367 = vmul.f32 1.0, %v2366
        %v2368 = vmul.f32 %v2347, %v1989
        %v2369 = vmul.f32 %v2328, %v2348
        %v2370 = vadd.f32 %v2368, %v2369
        %v2371 = vtanh.pop %v2370
        %v2372 = vmul.f32 %v2367, %v2371
        %s2373 = scalar_lea.vmem %s253, 32
        %2374 = vst [vmem:[%s2373] sm:$0xff] %v2372
        %s2375 = scalar_lea.vmem %s247, 160
        %v2376 = vld [vmem:[%s2375] sm:$0xff]
        %v2377 = vld [vmem:[%s2375 + $0x8] sm:$0xff]
        %v2378 = vld [vmem:[%s2375 + $0x10] sm:$0xff]
        %v2379 = vld [vmem:[%s2375 + $0x18] sm:$0xff]
        %2380 = vmatpush.msra.mxu0 %v323
        %2381 = vmatpush.msra.mxu0 %v319
        %2382 = vmatpush.msra.mxu0 %v315
        %2383 = vmatpush.msra.mxu0 %v311
        %2384 = vmatpush.msra.mxu0 %v307
        %2385 = vmatpush.msra.mxu0 %v303
        %2386 = vmatpush.msra.mxu0 %v299
        %2387 = vmatpush.msra.mxu0 %v295
        %2388 = vmatpush.msra.mxu0 %v291
        %2389 = vmatpush.msra.mxu0 %v287
        %2390 = vmatpush.msra.mxu0 %v283
        %2391 = vmatpush.msra.mxu0 %v279
        %2392 = vmatpush.msra.mxu0 %v275
        %2393 = vmatpush.msra.mxu0 %v271
        %2394 = vmatpush.msra.mxu0 %v267
        %2395 = vmatpush.msra.mxu0 %v263
        %2396 = vmatmul.f32.gmra.mxu0 %v2145
        %v2397 = vpop.f32.mrf.mxu0
        %v2398 = vadd.f32 0.0, %v2397
        %2399 = vdwg.mxu0
        %2400 = vmatpush.msra.mxu0 %v324
        %2401 = vmatpush.msra.mxu0 %v320
        %2402 = vmatpush.msra.mxu0 %v316
        %2403 = vmatpush.msra.mxu0 %v312
        %2404 = vmatpush.msra.mxu0 %v308
        %2405 = vmatpush.msra.mxu0 %v304
        %2406 = vmatpush.msra.mxu0 %v300
        %2407 = vmatpush.msra.mxu0 %v296
        %2408 = vmatpush.msra.mxu0 %v292
        %2409 = vmatpush.msra.mxu0 %v288
        %2410 = vmatpush.msra.mxu0 %v284
        %2411 = vmatpush.msra.mxu0 %v280
        %2412 = vmatpush.msra.mxu0 %v276
        %2413 = vmatpush.msra.mxu0 %v272
        %2414 = vmatpush.msra.mxu0 %v268
        %2415 = vmatpush.msra.mxu0 %v264
        %2416 = vmatmul.f32.gmra.mxu0 %v2145
        %v2417 = vpop.f32.mrf.mxu0
        %v2418 = vadd.f32 0.0, %v2417
        %2419 = vdwg.mxu0
        %2420 = vmatpush.msra.mxu0 %v325
        %2421 = vmatpush.msra.mxu0 %v321
        %2422 = vmatpush.msra.mxu0 %v317
        %2423 = vmatpush.msra.mxu0 %v313
        %2424 = vmatpush.msra.mxu0 %v309
        %2425 = vmatpush.msra.mxu0 %v305
        %2426 = vmatpush.msra.mxu0 %v301
        %2427 = vmatpush.msra.mxu0 %v297
        %2428 = vmatpush.msra.mxu0 %v293
        %2429 = vmatpush.msra.mxu0 %v289
        %2430 = vmatpush.msra.mxu0 %v285
        %2431 = vmatpush.msra.mxu0 %v281
        %2432 = vmatpush.msra.mxu0 %v277
        %2433 = vmatpush.msra.mxu0 %v273
        %2434 = vmatpush.msra.mxu0 %v269
        %2435 = vmatpush.msra.mxu0 %v265
        %2436 = vmatmul.f32.gmra.mxu0 %v2145
        %v2437 = vpop.f32.mrf.mxu0
        %v2438 = vadd.f32 0.0, %v2437
        %2439 = vdwg.mxu0
        %2440 = vmatpush.msra.mxu0 %v326
        %2441 = vmatpush.msra.mxu0 %v322
        %2442 = vmatpush.msra.mxu0 %v318
        %2443 = vmatpush.msra.mxu0 %v314
        %2444 = vmatpush.msra.mxu0 %v310
        %2445 = vmatpush.msra.mxu0 %v306
        %2446 = vmatpush.msra.mxu0 %v302
        %2447 = vmatpush.msra.mxu0 %v298
        %2448 = vmatpush.msra.mxu0 %v294
        %2449 = vmatpush.msra.mxu0 %v290
        %2450 = vmatpush.msra.mxu0 %v286
        %2451 = vmatpush.msra.mxu0 %v282
        %2452 = vmatpush.msra.mxu0 %v278
        %2453 = vmatpush.msra.mxu0 %v274
        %2454 = vmatpush.msra.mxu0 %v270
        %2455 = vmatpush.msra.mxu0 %v266
        %2456 = vmatmul.f32.gmra.mxu0 %v2145
        %v2457 = vpop.f32.mrf.mxu0
        %v2458 = vadd.f32 0.0, %v2457
        %2459 = vdwg.mxu0
        %v2460 = vadd.f32 %v2376, %v2398
        %v2461 = vadd.f32 %v2377, %v2418
        %v2462 = vadd.f32 %v2378, %v2438
        %v2463 = vadd.f32 %v2379, %v2458
        %v2464 = vxor.u32 %v2460, 2147483648
        %v2465 = vmul.f32 %v2464, 1.442695
        %v2466 = vpow.pop %v2465
        %v2467 = vadd.f32 %v2466, 1.0
        %v2468 = vrcp.pop %v2467
        %v2469 = vmul.f32 %v2467, %v2468
        %v2470 = vsub.f32 1.0, %v2469
        %v2471 = vmul.f32 %v2468, %v2470
        %v2472 = vadd.f32 %v2468, %v2471
        %vm2473 = vweird.f32 %v2467
        %vm2474 = vweird.f32 %v2468
        %vm2475 = vmor %vm2473, %vm2474
        %v2476 = vsel %vm2475, %v2468, %v2472
        %v2477 = vand.u32 2147483647, %v2467
        %vm2478 = vcmp.eq.f32.partialorder %v2477, 8.507059e+37
        %v2479 = vand.u32 %v2467, 2147483648
        %v2480 = vor.u32 1.1754944e-38, %v2479
        %v2481 = vsel %vm2478, %v2480, %v2476
        %v2482 = vmul.f32 1.0, %v2481
        %v2483 = vxor.u32 %v2461, 2147483648
        %v2484 = vmul.f32 %v2483, 1.442695
        %v2485 = vpow.pop %v2484
        %v2486 = vadd.f32 %v2485, 1.0
        %v2487 = vrcp.pop %v2486
        %v2488 = vmul.f32 %v2486, %v2487
        %v2489 = vsub.f32 1.0, %v2488
        %v2490 = vmul.f32 %v2487, %v2489
        %v2491 = vadd.f32 %v2487, %v2490
        %vm2492 = vweird.f32 %v2486
        %vm2493 = vweird.f32 %v2487
        %vm2494 = vmor %vm2492, %vm2493
        %v2495 = vsel %vm2494, %v2487, %v2491
        %v2496 = vand.u32 2147483647, %v2486
        %vm2497 = vcmp.eq.f32.partialorder %v2496, 8.507059e+37
        %v2498 = vand.u32 %v2486, 2147483648
        %v2499 = vor.u32 1.1754944e-38, %v2498
        %v2500 = vsel %vm2497, %v2499, %v2495
        %v2501 = vmul.f32 1.0, %v2500
        %v2502 = vtanh.pop %v2462
        %v2503 = vxor.u32 %v2463, 2147483648
        %v2504 = vmul.f32 %v2503, 1.442695
        %v2505 = vpow.pop %v2504
        %v2506 = vadd.f32 %v2505, 1.0
        %v2507 = vrcp.pop %v2506
        %v2508 = vmul.f32 %v2506, %v2507
        %v2509 = vsub.f32 1.0, %v2508
        %v2510 = vmul.f32 %v2507, %v2509
        %v2511 = vadd.f32 %v2507, %v2510
        %vm2512 = vweird.f32 %v2506
        %vm2513 = vweird.f32 %v2507
        %vm2514 = vmor %vm2512, %vm2513
        %v2515 = vsel %vm2514, %v2507, %v2511
        %v2516 = vand.u32 2147483647, %v2506
        %vm2517 = vcmp.eq.f32.partialorder %v2516, 8.507059e+37
        %v2518 = vand.u32 %v2506, 2147483648
        %v2519 = vor.u32 1.1754944e-38, %v2518
        %v2520 = vsel %vm2517, %v2519, %v2515
        %v2521 = vmul.f32 1.0, %v2520
        %v2522 = vmul.f32 %v2501, %v2143
        %v2523 = vmul.f32 %v2482, %v2502
        %v2524 = vadd.f32 %v2522, %v2523
        %v2525 = vtanh.pop %v2524
        %v2526 = vmul.f32 %v2521, %v2525
        %2527 = vmatpush.msra.mxu0 %v388
        %2528 = vmatpush.msra.mxu0 %v384
        %2529 = vmatpush.msra.mxu0 %v380
        %2530 = vmatpush.msra.mxu0 %v376
        %2531 = vmatpush.msra.mxu0 %v372
        %2532 = vmatpush.msra.mxu0 %v368
        %2533 = vmatpush.msra.mxu0 %v364
        %2534 = vmatpush.msra.mxu0 %v360
        %2535 = vmatpush.msra.mxu0 %v356
        %2536 = vmatpush.msra.mxu0 %v352
        %2537 = vmatpush.msra.mxu0 %v348
        %2538 = vmatpush.msra.mxu0 %v344
        %2539 = vmatpush.msra.mxu0 %v340
        %2540 = vmatpush.msra.mxu0 %v336
        %2541 = vmatpush.msra.mxu0 %v332
        %2542 = vmatpush.msra.mxu0 %v328
        %2543 = vmatmul.f32.gmra.mxu0 %v2372
        %v2544 = vpop.f32.mrf.mxu0
        %v2545 = vadd.f32 0.0, %v2544
        %2546 = vdwg.mxu0
        %2547 = vmatpush.msra.mxu0 %v389
        %2548 = vmatpush.msra.mxu0 %v385
        %2549 = vmatpush.msra.mxu0 %v381
        %2550 = vmatpush.msra.mxu0 %v377
        %2551 = vmatpush.msra.mxu0 %v373
        %2552 = vmatpush.msra.mxu0 %v369
        %2553 = vmatpush.msra.mxu0 %v365
        %2554 = vmatpush.msra.mxu0 %v361
        %2555 = vmatpush.msra.mxu0 %v357
        %2556 = vmatpush.msra.mxu0 %v353
        %2557 = vmatpush.msra.mxu0 %v349
        %2558 = vmatpush.msra.mxu0 %v345
        %2559 = vmatpush.msra.mxu0 %v341
        %2560 = vmatpush.msra.mxu0 %v337
        %2561 = vmatpush.msra.mxu0 %v333
        %2562 = vmatpush.msra.mxu0 %v329
        %2563 = vmatmul.f32.gmra.mxu0 %v2372
        %v2564 = vpop.f32.mrf.mxu0
        %v2565 = vadd.f32 0.0, %v2564
        %2566 = vdwg.mxu0
        %2567 = vmatpush.msra.mxu0 %v390
        %2568 = vmatpush.msra.mxu0 %v386
        %2569 = vmatpush.msra.mxu0 %v382
        %2570 = vmatpush.msra.mxu0 %v378
        %2571 = vmatpush.msra.mxu0 %v374
        %2572 = vmatpush.msra.mxu0 %v370
        %2573 = vmatpush.msra.mxu0 %v366
        %2574 = vmatpush.msra.mxu0 %v362
        %2575 = vmatpush.msra.mxu0 %v358
        %2576 = vmatpush.msra.mxu0 %v354
        %2577 = vmatpush.msra.mxu0 %v350
        %2578 = vmatpush.msra.mxu0 %v346
        %2579 = vmatpush.msra.mxu0 %v342
        %2580 = vmatpush.msra.mxu0 %v338
        %2581 = vmatpush.msra.mxu0 %v334
        %2582 = vmatpush.msra.mxu0 %v330
        %2583 = vmatmul.f32.gmra.mxu0 %v2372
        %v2584 = vpop.f32.mrf.mxu0
        %v2585 = vadd.f32 0.0, %v2584
        %2586 = vdwg.mxu0
        %2587 = vmatpush.msra.mxu0 %v391
        %2588 = vmatpush.msra.mxu0 %v387
        %2589 = vmatpush.msra.mxu0 %v383
        %2590 = vmatpush.msra.mxu0 %v379
        %2591 = vmatpush.msra.mxu0 %v375
        %2592 = vmatpush.msra.mxu0 %v371
        %2593 = vmatpush.msra.mxu0 %v367
        %2594 = vmatpush.msra.mxu0 %v363
        %2595 = vmatpush.msra.mxu0 %v359
        %2596 = vmatpush.msra.mxu0 %v355
        %2597 = vmatpush.msra.mxu0 %v351
        %2598 = vmatpush.msra.mxu0 %v347
        %2599 = vmatpush.msra.mxu0 %v343
        %2600 = vmatpush.msra.mxu0 %v339
        %2601 = vmatpush.msra.mxu0 %v335
        %2602 = vmatpush.msra.mxu0 %v331
        %2603 = vmatmul.f32.gmra.mxu0 %v2372
        %v2604 = vpop.f32.mrf.mxu0
        %v2605 = vadd.f32 0.0, %v2604
        %2606 = vdwg.mxu0
        %2607 = vmatpush.msra.mxu0 %v452
        %2608 = vmatpush.msra.mxu0 %v448
        %2609 = vmatpush.msra.mxu0 %v444
        %2610 = vmatpush.msra.mxu0 %v440
        %2611 = vmatpush.msra.mxu0 %v436
        %2612 = vmatpush.msra.mxu0 %v432
        %2613 = vmatpush.msra.mxu0 %v428
        %2614 = vmatpush.msra.mxu0 %v424
        %2615 = vmatpush.msra.mxu0 %v420
        %2616 = vmatpush.msra.mxu0 %v416
        %2617 = vmatpush.msra.mxu0 %v412
        %2618 = vmatpush.msra.mxu0 %v408
        %2619 = vmatpush.msra.mxu0 %v404
        %2620 = vmatpush.msra.mxu0 %v400
        %2621 = vmatpush.msra.mxu0 %v396
        %2622 = vmatpush.msra.mxu0 %v392
        %2623 = vmatmul.f32.gmra.mxu0 %v2526
        %v2624 = vpop.f32.mrf.mxu0
        %v2625 = vadd.f32 %v2545, %v2624
        %2626 = vdwg.mxu0
        %2627 = vmatpush.msra.mxu0 %v453
        %2628 = vmatpush.msra.mxu0 %v449
        %2629 = vmatpush.msra.mxu0 %v445
        %2630 = vmatpush.msra.mxu0 %v441
        %2631 = vmatpush.msra.mxu0 %v437
        %2632 = vmatpush.msra.mxu0 %v433
        %2633 = vmatpush.msra.mxu0 %v429
        %2634 = vmatpush.msra.mxu0 %v425
        %2635 = vmatpush.msra.mxu0 %v421
        %2636 = vmatpush.msra.mxu0 %v417
        %2637 = vmatpush.msra.mxu0 %v413
        %2638 = vmatpush.msra.mxu0 %v409
        %2639 = vmatpush.msra.mxu0 %v405
        %2640 = vmatpush.msra.mxu0 %v401
        %2641 = vmatpush.msra.mxu0 %v397
        %2642 = vmatpush.msra.mxu0 %v393
        %2643 = vmatmul.f32.gmra.mxu0 %v2526
        %v2644 = vpop.f32.mrf.mxu0
        %v2645 = vadd.f32 %v2565, %v2644
        %2646 = vdwg.mxu0
        %2647 = vmatpush.msra.mxu0 %v454
        %2648 = vmatpush.msra.mxu0 %v450
        %2649 = vmatpush.msra.mxu0 %v446
        %2650 = vmatpush.msra.mxu0 %v442
        %2651 = vmatpush.msra.mxu0 %v438
        %2652 = vmatpush.msra.mxu0 %v434
        %2653 = vmatpush.msra.mxu0 %v430
        %2654 = vmatpush.msra.mxu0 %v426
        %2655 = vmatpush.msra.mxu0 %v422
        %2656 = vmatpush.msra.mxu0 %v418
        %2657 = vmatpush.msra.mxu0 %v414
        %2658 = vmatpush.msra.mxu0 %v410
        %2659 = vmatpush.msra.mxu0 %v406
        %2660 = vmatpush.msra.mxu0 %v402
        %2661 = vmatpush.msra.mxu0 %v398
        %2662 = vmatpush.msra.mxu0 %v394
        %2663 = vmatmul.f32.gmra.mxu0 %v2526
        %v2664 = vpop.f32.mrf.mxu0
        %v2665 = vadd.f32 %v2585, %v2664
        %2666 = vdwg.mxu0
        %2667 = vmatpush.msra.mxu0 %v455
        %2668 = vmatpush.msra.mxu0 %v451
        %2669 = vmatpush.msra.mxu0 %v447
        %2670 = vmatpush.msra.mxu0 %v443
        %2671 = vmatpush.msra.mxu0 %v439
        %2672 = vmatpush.msra.mxu0 %v435
        %2673 = vmatpush.msra.mxu0 %v431
        %2674 = vmatpush.msra.mxu0 %v427
        %2675 = vmatpush.msra.mxu0 %v423
        %2676 = vmatpush.msra.mxu0 %v419
        %2677 = vmatpush.msra.mxu0 %v415
        %2678 = vmatpush.msra.mxu0 %v411
        %2679 = vmatpush.msra.mxu0 %v407
        %2680 = vmatpush.msra.mxu0 %v403
        %2681 = vmatpush.msra.mxu0 %v399
        %2682 = vmatpush.msra.mxu0 %v395
        %2683 = vmatmul.f32.gmra.mxu0 %v2526
        %v2684 = vpop.f32.mrf.mxu0
        %v2685 = vadd.f32 %v2605, %v2684
        %2686 = vdwg.mxu0
        %v2687 = vadd.f32 %v2625, %v458
        %v2688 = vadd.f32 %v2645, %v459
        %v2689 = vadd.f32 %v2665, %v460
        %v2690 = vadd.f32 %v2685, %v461
        %v2691 = vxor.u32 %v2687, 2147483648
        %v2692 = vmul.f32 %v2691, 1.442695
        %v2693 = vpow.pop %v2692
        %v2694 = vadd.f32 %v2693, 1.0
        %v2695 = vrcp.pop %v2694
        %v2696 = vmul.f32 %v2694, %v2695
        %v2697 = vsub.f32 1.0, %v2696
        %v2698 = vmul.f32 %v2695, %v2697
        %v2699 = vadd.f32 %v2695, %v2698
        %vm2700 = vweird.f32 %v2694
        %vm2701 = vweird.f32 %v2695
        %vm2702 = vmor %vm2700, %vm2701
        %v2703 = vsel %vm2702, %v2695, %v2699
        %v2704 = vand.u32 2147483647, %v2694
        %vm2705 = vcmp.eq.f32.partialorder %v2704, 8.507059e+37
        %v2706 = vand.u32 %v2694, 2147483648
        %v2707 = vor.u32 1.1754944e-38, %v2706
        %v2708 = vsel %vm2705, %v2707, %v2703
        %v2709 = vmul.f32 1.0, %v2708
        %v2710 = vxor.u32 %v2688, 2147483648
        %v2711 = vmul.f32 %v2710, 1.442695
        %v2712 = vpow.pop %v2711
        %v2713 = vadd.f32 %v2712, 1.0
        %v2714 = vrcp.pop %v2713
        %v2715 = vmul.f32 %v2713, %v2714
        %v2716 = vsub.f32 1.0, %v2715
        %v2717 = vmul.f32 %v2714, %v2716
        %v2718 = vadd.f32 %v2714, %v2717
        %vm2719 = vweird.f32 %v2713
        %vm2720 = vweird.f32 %v2714
        %vm2721 = vmor %vm2719, %vm2720
        %v2722 = vsel %vm2721, %v2714, %v2718
        %v2723 = vand.u32 2147483647, %v2713
        %vm2724 = vcmp.eq.f32.partialorder %v2723, 8.507059e+37
        %v2725 = vand.u32 %v2713, 2147483648
        %v2726 = vor.u32 1.1754944e-38, %v2725
        %v2727 = vsel %vm2724, %v2726, %v2722
        %v2728 = vmul.f32 1.0, %v2727
        %v2729 = vtanh.pop %v2689
        %v2730 = vxor.u32 %v2690, 2147483648
        %v2731 = vmul.f32 %v2730, 1.442695
        %v2732 = vpow.pop %v2731
        %v2733 = vadd.f32 %v2732, 1.0
        %v2734 = vrcp.pop %v2733
        %v2735 = vmul.f32 %v2733, %v2734
        %v2736 = vsub.f32 1.0, %v2735
        %v2737 = vmul.f32 %v2734, %v2736
        %v2738 = vadd.f32 %v2734, %v2737
        %vm2739 = vweird.f32 %v2733
        %vm2740 = vweird.f32 %v2734
        %vm2741 = vmor %vm2739, %vm2740
        %v2742 = vsel %vm2741, %v2734, %v2738
        %v2743 = vand.u32 2147483647, %v2733
        %vm2744 = vcmp.eq.f32.partialorder %v2743, 8.507059e+37
        %v2745 = vand.u32 %v2733, 2147483648
        %v2746 = vor.u32 1.1754944e-38, %v2745
        %v2747 = vsel %vm2744, %v2746, %v2742
        %v2748 = vmul.f32 1.0, %v2747
        %v2749 = vmul.f32 %v2728, %v2370
        %v2750 = vmul.f32 %v2709, %v2729
        %v2751 = vadd.f32 %v2749, %v2750
        %v2752 = vtanh.pop %v2751
        %v2753 = vmul.f32 %v2748, %v2752
        %s2754 = scalar_lea.vmem %s253, 40
        %2755 = vst [vmem:[%s2754] sm:$0xff] %v2753
        %s2756 = scalar_lea.vmem %s247, 192
        %v2757 = vld [vmem:[%s2756] sm:$0xff]
        %v2758 = vld [vmem:[%s2756 + $0x8] sm:$0xff]
        %v2759 = vld [vmem:[%s2756 + $0x10] sm:$0xff]
        %v2760 = vld [vmem:[%s2756 + $0x18] sm:$0xff]
        %2761 = vmatpush.msra.mxu0 %v323
        %2762 = vmatpush.msra.mxu0 %v319
        %2763 = vmatpush.msra.mxu0 %v315
        %2764 = vmatpush.msra.mxu0 %v311
        %2765 = vmatpush.msra.mxu0 %v307
        %2766 = vmatpush.msra.mxu0 %v303
        %2767 = vmatpush.msra.mxu0 %v299
        %2768 = vmatpush.msra.mxu0 %v295
        %2769 = vmatpush.msra.mxu0 %v291
        %2770 = vmatpush.msra.mxu0 %v287
        %2771 = vmatpush.msra.mxu0 %v283
        %2772 = vmatpush.msra.mxu0 %v279
        %2773 = vmatpush.msra.mxu0 %v275
        %2774 = vmatpush.msra.mxu0 %v271
        %2775 = vmatpush.msra.mxu0 %v267
        %2776 = vmatpush.msra.mxu0 %v263
        %2777 = vmatmul.f32.gmra.mxu0 %v2526
        %v2778 = vpop.f32.mrf.mxu0
        %v2779 = vadd.f32 0.0, %v2778
        %2780 = vdwg.mxu0
        %2781 = vmatpush.msra.mxu0 %v324
        %2782 = vmatpush.msra.mxu0 %v320
        %2783 = vmatpush.msra.mxu0 %v316
        %2784 = vmatpush.msra.mxu0 %v312
        %2785 = vmatpush.msra.mxu0 %v308
        %2786 = vmatpush.msra.mxu0 %v304
        %2787 = vmatpush.msra.mxu0 %v300
        %2788 = vmatpush.msra.mxu0 %v296
        %2789 = vmatpush.msra.mxu0 %v292
        %2790 = vmatpush.msra.mxu0 %v288
        %2791 = vmatpush.msra.mxu0 %v284
        %2792 = vmatpush.msra.mxu0 %v280
        %2793 = vmatpush.msra.mxu0 %v276
        %2794 = vmatpush.msra.mxu0 %v272
        %2795 = vmatpush.msra.mxu0 %v268
        %2796 = vmatpush.msra.mxu0 %v264
        %2797 = vmatmul.f32.gmra.mxu0 %v2526
        %v2798 = vpop.f32.mrf.mxu0
        %v2799 = vadd.f32 0.0, %v2798
        %2800 = vdwg.mxu0
        %2801 = vmatpush.msra.mxu0 %v325
        %2802 = vmatpush.msra.mxu0 %v321
        %2803 = vmatpush.msra.mxu0 %v317
        %2804 = vmatpush.msra.mxu0 %v313
        %2805 = vmatpush.msra.mxu0 %v309
        %2806 = vmatpush.msra.mxu0 %v305
        %2807 = vmatpush.msra.mxu0 %v301
        %2808 = vmatpush.msra.mxu0 %v297
        %2809 = vmatpush.msra.mxu0 %v293
        %2810 = vmatpush.msra.mxu0 %v289
        %2811 = vmatpush.msra.mxu0 %v285
        %2812 = vmatpush.msra.mxu0 %v281
        %2813 = vmatpush.msra.mxu0 %v277
        %2814 = vmatpush.msra.mxu0 %v273
        %2815 = vmatpush.msra.mxu0 %v269
        %2816 = vmatpush.msra.mxu0 %v265
        %2817 = vmatmul.f32.gmra.mxu0 %v2526
        %v2818 = vpop.f32.mrf.mxu0
        %v2819 = vadd.f32 0.0, %v2818
        %2820 = vdwg.mxu0
        %2821 = vmatpush.msra.mxu0 %v326
        %2822 = vmatpush.msra.mxu0 %v322
        %2823 = vmatpush.msra.mxu0 %v318
        %2824 = vmatpush.msra.mxu0 %v314
        %2825 = vmatpush.msra.mxu0 %v310
        %2826 = vmatpush.msra.mxu0 %v306
        %2827 = vmatpush.msra.mxu0 %v302
        %2828 = vmatpush.msra.mxu0 %v298
        %2829 = vmatpush.msra.mxu0 %v294
        %2830 = vmatpush.msra.mxu0 %v290
        %2831 = vmatpush.msra.mxu0 %v286
        %2832 = vmatpush.msra.mxu0 %v282
        %2833 = vmatpush.msra.mxu0 %v278
        %2834 = vmatpush.msra.mxu0 %v274
        %2835 = vmatpush.msra.mxu0 %v270
        %2836 = vmatpush.msra.mxu0 %v266
        %2837 = vmatmul.f32.gmra.mxu0 %v2526
        %v2838 = vpop.f32.mrf.mxu0
        %v2839 = vadd.f32 0.0, %v2838
        %2840 = vdwg.mxu0
        %v2841 = vadd.f32 %v2757, %v2779
        %v2842 = vadd.f32 %v2758, %v2799
        %v2843 = vadd.f32 %v2759, %v2819
        %v2844 = vadd.f32 %v2760, %v2839
        %v2845 = vxor.u32 %v2841, 2147483648
        %v2846 = vmul.f32 %v2845, 1.442695
        %v2847 = vpow.pop %v2846
        %v2848 = vadd.f32 %v2847, 1.0
        %v2849 = vrcp.pop %v2848
        %v2850 = vmul.f32 %v2848, %v2849
        %v2851 = vsub.f32 1.0, %v2850
        %v2852 = vmul.f32 %v2849, %v2851
        %v2853 = vadd.f32 %v2849, %v2852
        %vm2854 = vweird.f32 %v2848
        %vm2855 = vweird.f32 %v2849
        %vm2856 = vmor %vm2854, %vm2855
        %v2857 = vsel %vm2856, %v2849, %v2853
        %v2858 = vand.u32 2147483647, %v2848
        %vm2859 = vcmp.eq.f32.partialorder %v2858, 8.507059e+37
        %v2860 = vand.u32 %v2848, 2147483648
        %v2861 = vor.u32 1.1754944e-38, %v2860
        %v2862 = vsel %vm2859, %v2861, %v2857
        %v2863 = vmul.f32 1.0, %v2862
        %v2864 = vxor.u32 %v2842, 2147483648
        %v2865 = vmul.f32 %v2864, 1.442695
        %v2866 = vpow.pop %v2865
        %v2867 = vadd.f32 %v2866, 1.0
        %v2868 = vrcp.pop %v2867
        %v2869 = vmul.f32 %v2867, %v2868
        %v2870 = vsub.f32 1.0, %v2869
        %v2871 = vmul.f32 %v2868, %v2870
        %v2872 = vadd.f32 %v2868, %v2871
        %vm2873 = vweird.f32 %v2867
        %vm2874 = vweird.f32 %v2868
        %vm2875 = vmor %vm2873, %vm2874
        %v2876 = vsel %vm2875, %v2868, %v2872
        %v2877 = vand.u32 2147483647, %v2867
        %vm2878 = vcmp.eq.f32.partialorder %v2877, 8.507059e+37
        %v2879 = vand.u32 %v2867, 2147483648
        %v2880 = vor.u32 1.1754944e-38, %v2879
        %v2881 = vsel %vm2878, %v2880, %v2876
        %v2882 = vmul.f32 1.0, %v2881
        %v2883 = vtanh.pop %v2843
        %v2884 = vxor.u32 %v2844, 2147483648
        %v2885 = vmul.f32 %v2884, 1.442695
        %v2886 = vpow.pop %v2885
        %v2887 = vadd.f32 %v2886, 1.0
        %v2888 = vrcp.pop %v2887
        %v2889 = vmul.f32 %v2887, %v2888
        %v2890 = vsub.f32 1.0, %v2889
        %v2891 = vmul.f32 %v2888, %v2890
        %v2892 = vadd.f32 %v2888, %v2891
        %vm2893 = vweird.f32 %v2887
        %vm2894 = vweird.f32 %v2888
        %vm2895 = vmor %vm2893, %vm2894
        %v2896 = vsel %vm2895, %v2888, %v2892
        %v2897 = vand.u32 2147483647, %v2887
        %vm2898 = vcmp.eq.f32.partialorder %v2897, 8.507059e+37
        %v2899 = vand.u32 %v2887, 2147483648
        %v2900 = vor.u32 1.1754944e-38, %v2899
        %v2901 = vsel %vm2898, %v2900, %v2896
        %v2902 = vmul.f32 1.0, %v2901
        %v2903 = vmul.f32 %v2882, %v2524
        %v2904 = vmul.f32 %v2863, %v2883
        %v2905 = vadd.f32 %v2903, %v2904
        %v2906 = vtanh.pop %v2905
        %v2907 = vmul.f32 %v2902, %v2906
        %2908 = vmatpush.msra.mxu0 %v388
        %2909 = vmatpush.msra.mxu0 %v384
        %2910 = vmatpush.msra.mxu0 %v380
        %2911 = vmatpush.msra.mxu0 %v376
        %2912 = vmatpush.msra.mxu0 %v372
        %2913 = vmatpush.msra.mxu0 %v368
        %2914 = vmatpush.msra.mxu0 %v364
        %2915 = vmatpush.msra.mxu0 %v360
        %2916 = vmatpush.msra.mxu0 %v356
        %2917 = vmatpush.msra.mxu0 %v352
        %2918 = vmatpush.msra.mxu0 %v348
        %2919 = vmatpush.msra.mxu0 %v344
        %2920 = vmatpush.msra.mxu0 %v340
        %2921 = vmatpush.msra.mxu0 %v336
        %2922 = vmatpush.msra.mxu0 %v332
        %2923 = vmatpush.msra.mxu0 %v328
        %2924 = vmatmul.f32.gmra.mxu0 %v2753
        %v2925 = vpop.f32.mrf.mxu0
        %v2926 = vadd.f32 0.0, %v2925
        %2927 = vdwg.mxu0
        %2928 = vmatpush.msra.mxu0 %v389
        %2929 = vmatpush.msra.mxu0 %v385
        %2930 = vmatpush.msra.mxu0 %v381
        %2931 = vmatpush.msra.mxu0 %v377
        %2932 = vmatpush.msra.mxu0 %v373
        %2933 = vmatpush.msra.mxu0 %v369
        %2934 = vmatpush.msra.mxu0 %v365
        %2935 = vmatpush.msra.mxu0 %v361
        %2936 = vmatpush.msra.mxu0 %v357
        %2937 = vmatpush.msra.mxu0 %v353
        %2938 = vmatpush.msra.mxu0 %v349
        %2939 = vmatpush.msra.mxu0 %v345
        %2940 = vmatpush.msra.mxu0 %v341
        %2941 = vmatpush.msra.mxu0 %v337
        %2942 = vmatpush.msra.mxu0 %v333
        %2943 = vmatpush.msra.mxu0 %v329
        %2944 = vmatmul.f32.gmra.mxu0 %v2753
        %v2945 = vpop.f32.mrf.mxu0
        %v2946 = vadd.f32 0.0, %v2945
        %2947 = vdwg.mxu0
        %2948 = vmatpush.msra.mxu0 %v390
        %2949 = vmatpush.msra.mxu0 %v386
        %2950 = vmatpush.msra.mxu0 %v382
        %2951 = vmatpush.msra.mxu0 %v378
        %2952 = vmatpush.msra.mxu0 %v374
        %2953 = vmatpush.msra.mxu0 %v370
        %2954 = vmatpush.msra.mxu0 %v366
        %2955 = vmatpush.msra.mxu0 %v362
        %2956 = vmatpush.msra.mxu0 %v358
        %2957 = vmatpush.msra.mxu0 %v354
        %2958 = vmatpush.msra.mxu0 %v350
        %2959 = vmatpush.msra.mxu0 %v346
        %2960 = vmatpush.msra.mxu0 %v342
        %2961 = vmatpush.msra.mxu0 %v338
        %2962 = vmatpush.msra.mxu0 %v334
        %2963 = vmatpush.msra.mxu0 %v330
        %2964 = vmatmul.f32.gmra.mxu0 %v2753
        %v2965 = vpop.f32.mrf.mxu0
        %v2966 = vadd.f32 0.0, %v2965
        %2967 = vdwg.mxu0
        %2968 = vmatpush.msra.mxu0 %v391
        %2969 = vmatpush.msra.mxu0 %v387
        %2970 = vmatpush.msra.mxu0 %v383
        %2971 = vmatpush.msra.mxu0 %v379
        %2972 = vmatpush.msra.mxu0 %v375
        %2973 = vmatpush.msra.mxu0 %v371
        %2974 = vmatpush.msra.mxu0 %v367
        %2975 = vmatpush.msra.mxu0 %v363
        %2976 = vmatpush.msra.mxu0 %v359
        %2977 = vmatpush.msra.mxu0 %v355
        %2978 = vmatpush.msra.mxu0 %v351
        %2979 = vmatpush.msra.mxu0 %v347
        %2980 = vmatpush.msra.mxu0 %v343
        %2981 = vmatpush.msra.mxu0 %v339
        %2982 = vmatpush.msra.mxu0 %v335
        %2983 = vmatpush.msra.mxu0 %v331
        %2984 = vmatmul.f32.gmra.mxu0 %v2753
        %v2985 = vpop.f32.mrf.mxu0
        %v2986 = vadd.f32 0.0, %v2985
        %2987 = vdwg.mxu0
        %2988 = vmatpush.msra.mxu0 %v452
        %2989 = vmatpush.msra.mxu0 %v448
        %2990 = vmatpush.msra.mxu0 %v444
        %2991 = vmatpush.msra.mxu0 %v440
        %2992 = vmatpush.msra.mxu0 %v436
        %2993 = vmatpush.msra.mxu0 %v432
        %2994 = vmatpush.msra.mxu0 %v428
        %2995 = vmatpush.msra.mxu0 %v424
        %2996 = vmatpush.msra.mxu0 %v420
        %2997 = vmatpush.msra.mxu0 %v416
        %2998 = vmatpush.msra.mxu0 %v412
        %2999 = vmatpush.msra.mxu0 %v408
        %3000 = vmatpush.msra.mxu0 %v404
        %3001 = vmatpush.msra.mxu0 %v400
        %3002 = vmatpush.msra.mxu0 %v396
        %3003 = vmatpush.msra.mxu0 %v392
        %3004 = vmatmul.f32.gmra.mxu0 %v2907
        %v3005 = vpop.f32.mrf.mxu0
        %v3006 = vadd.f32 %v2926, %v3005
        %3007 = vdwg.mxu0
        %3008 = vmatpush.msra.mxu0 %v453
        %3009 = vmatpush.msra.mxu0 %v449
        %3010 = vmatpush.msra.mxu0 %v445
        %3011 = vmatpush.msra.mxu0 %v441
        %3012 = vmatpush.msra.mxu0 %v437
        %3013 = vmatpush.msra.mxu0 %v433
        %3014 = vmatpush.msra.mxu0 %v429
        %3015 = vmatpush.msra.mxu0 %v425
        %3016 = vmatpush.msra.mxu0 %v421
        %3017 = vmatpush.msra.mxu0 %v417
        %3018 = vmatpush.msra.mxu0 %v413
        %3019 = vmatpush.msra.mxu0 %v409
        %3020 = vmatpush.msra.mxu0 %v405
        %3021 = vmatpush.msra.mxu0 %v401
        %3022 = vmatpush.msra.mxu0 %v397
        %3023 = vmatpush.msra.mxu0 %v393
        %3024 = vmatmul.f32.gmra.mxu0 %v2907
        %v3025 = vpop.f32.mrf.mxu0
        %v3026 = vadd.f32 %v2946, %v3025
        %3027 = vdwg.mxu0
        %3028 = vmatpush.msra.mxu0 %v454
        %3029 = vmatpush.msra.mxu0 %v450
        %3030 = vmatpush.msra.mxu0 %v446
        %3031 = vmatpush.msra.mxu0 %v442
        %3032 = vmatpush.msra.mxu0 %v438
        %3033 = vmatpush.msra.mxu0 %v434
        %3034 = vmatpush.msra.mxu0 %v430
        %3035 = vmatpush.msra.mxu0 %v426
        %3036 = vmatpush.msra.mxu0 %v422
        %3037 = vmatpush.msra.mxu0 %v418
        %3038 = vmatpush.msra.mxu0 %v414
        %3039 = vmatpush.msra.mxu0 %v410
        %3040 = vmatpush.msra.mxu0 %v406
        %3041 = vmatpush.msra.mxu0 %v402
        %3042 = vmatpush.msra.mxu0 %v398
        %3043 = vmatpush.msra.mxu0 %v394
        %3044 = vmatmul.f32.gmra.mxu0 %v2907
        %v3045 = vpop.f32.mrf.mxu0
        %v3046 = vadd.f32 %v2966, %v3045
        %3047 = vdwg.mxu0
        %3048 = vmatpush.msra.mxu0 %v455
        %3049 = vmatpush.msra.mxu0 %v451
        %3050 = vmatpush.msra.mxu0 %v447
        %3051 = vmatpush.msra.mxu0 %v443
        %3052 = vmatpush.msra.mxu0 %v439
        %3053 = vmatpush.msra.mxu0 %v435
        %3054 = vmatpush.msra.mxu0 %v431
        %3055 = vmatpush.msra.mxu0 %v427
        %3056 = vmatpush.msra.mxu0 %v423
        %3057 = vmatpush.msra.mxu0 %v419
        %3058 = vmatpush.msra.mxu0 %v415
        %3059 = vmatpush.msra.mxu0 %v411
        %3060 = vmatpush.msra.mxu0 %v407
        %3061 = vmatpush.msra.mxu0 %v403
        %3062 = vmatpush.msra.mxu0 %v399
        %3063 = vmatpush.msra.mxu0 %v395
        %3064 = vmatmul.f32.gmra.mxu0 %v2907
        %v3065 = vpop.f32.mrf.mxu0
        %v3066 = vadd.f32 %v2986, %v3065
        %3067 = vdwg.mxu0
        %v3068 = vadd.f32 %v3006, %v458
        %v3069 = vadd.f32 %v3026, %v459
        %v3070 = vadd.f32 %v3046, %v460
        %v3071 = vadd.f32 %v3066, %v461
        %v3072 = vxor.u32 %v3068, 2147483648
        %v3073 = vmul.f32 %v3072, 1.442695
        %v3074 = vpow.pop %v3073
        %v3075 = vadd.f32 %v3074, 1.0
        %v3076 = vrcp.pop %v3075
        %v3077 = vmul.f32 %v3075, %v3076
        %v3078 = vsub.f32 1.0, %v3077
        %v3079 = vmul.f32 %v3076, %v3078
        %v3080 = vadd.f32 %v3076, %v3079
        %vm3081 = vweird.f32 %v3075
        %vm3082 = vweird.f32 %v3076
        %vm3083 = vmor %vm3081, %vm3082
        %v3084 = vsel %vm3083, %v3076, %v3080
        %v3085 = vand.u32 2147483647, %v3075
        %vm3086 = vcmp.eq.f32.partialorder %v3085, 8.507059e+37
        %v3087 = vand.u32 %v3075, 2147483648
        %v3088 = vor.u32 1.1754944e-38, %v3087
        %v3089 = vsel %vm3086, %v3088, %v3084
        %v3090 = vmul.f32 1.0, %v3089
        %v3091 = vxor.u32 %v3069, 2147483648
        %v3092 = vmul.f32 %v3091, 1.442695
        %v3093 = vpow.pop %v3092
        %v3094 = vadd.f32 %v3093, 1.0
        %v3095 = vrcp.pop %v3094
        %v3096 = vmul.f32 %v3094, %v3095
        %v3097 = vsub.f32 1.0, %v3096
        %v3098 = vmul.f32 %v3095, %v3097
        %v3099 = vadd.f32 %v3095, %v3098
        %vm3100 = vweird.f32 %v3094
        %vm3101 = vweird.f32 %v3095
        %vm3102 = vmor %vm3100, %vm3101
        %v3103 = vsel %vm3102, %v3095, %v3099
        %v3104 = vand.u32 2147483647, %v3094
        %vm3105 = vcmp.eq.f32.partialorder %v3104, 8.507059e+37
        %v3106 = vand.u32 %v3094, 2147483648
        %v3107 = vor.u32 1.1754944e-38, %v3106
        %v3108 = vsel %vm3105, %v3107, %v3103
        %v3109 = vmul.f32 1.0, %v3108
        %v3110 = vtanh.pop %v3070
        %v3111 = vxor.u32 %v3071, 2147483648
        %v3112 = vmul.f32 %v3111, 1.442695
        %v3113 = vpow.pop %v3112
        %v3114 = vadd.f32 %v3113, 1.0
        %v3115 = vrcp.pop %v3114
        %v3116 = vmul.f32 %v3114, %v3115
        %v3117 = vsub.f32 1.0, %v3116
        %v3118 = vmul.f32 %v3115, %v3117
        %v3119 = vadd.f32 %v3115, %v3118
        %vm3120 = vweird.f32 %v3114
        %vm3121 = vweird.f32 %v3115
        %vm3122 = vmor %vm3120, %vm3121
        %v3123 = vsel %vm3122, %v3115, %v3119
        %v3124 = vand.u32 2147483647, %v3114
        %vm3125 = vcmp.eq.f32.partialorder %v3124, 8.507059e+37
        %v3126 = vand.u32 %v3114, 2147483648
        %v3127 = vor.u32 1.1754944e-38, %v3126
        %v3128 = vsel %vm3125, %v3127, %v3123
        %v3129 = vmul.f32 1.0, %v3128
        %v3130 = vmul.f32 %v3109, %v2751
        %v3131 = vmul.f32 %v3090, %v3110
        %v3132 = vadd.f32 %v3130, %v3131
        %v3133 = vtanh.pop %v3132
        %v3134 = vmul.f32 %v3129, %v3133
        %s3135 = scalar_lea.vmem %s253, 48
        %3136 = vst [vmem:[%s3135] sm:$0xff] %v3134
        %s3137 = scalar_lea.vmem %s247, 224
        %v3138 = vld [vmem:[%s3137] sm:$0xff]
        %v3139 = vld [vmem:[%s3137 + $0x8] sm:$0xff]
        %v3140 = vld [vmem:[%s3137 + $0x10] sm:$0xff]
        %v3141 = vld [vmem:[%s3137 + $0x18] sm:$0xff]
        %3142 = vmatpush.msra.mxu0 %v323
        %3143 = vmatpush.msra.mxu0 %v319
        %3144 = vmatpush.msra.mxu0 %v315
        %3145 = vmatpush.msra.mxu0 %v311
        %3146 = vmatpush.msra.mxu0 %v307
        %3147 = vmatpush.msra.mxu0 %v303
        %3148 = vmatpush.msra.mxu0 %v299
        %3149 = vmatpush.msra.mxu0 %v295
        %3150 = vmatpush.msra.mxu0 %v291
        %3151 = vmatpush.msra.mxu0 %v287
        %3152 = vmatpush.msra.mxu0 %v283
        %3153 = vmatpush.msra.mxu0 %v279
        %3154 = vmatpush.msra.mxu0 %v275
        %3155 = vmatpush.msra.mxu0 %v271
        %3156 = vmatpush.msra.mxu0 %v267
        %3157 = vmatpush.msra.mxu0 %v263
        %3158 = vmatmul.f32.gmra.mxu0 %v2907
        %v3159 = vpop.f32.mrf.mxu0
        %v3160 = vadd.f32 0.0, %v3159
        %3161 = vdwg.mxu0
        %3162 = vmatpush.msra.mxu0 %v324
        %3163 = vmatpush.msra.mxu0 %v320
        %3164 = vmatpush.msra.mxu0 %v316
        %3165 = vmatpush.msra.mxu0 %v312
        %3166 = vmatpush.msra.mxu0 %v308
        %3167 = vmatpush.msra.mxu0 %v304
        %3168 = vmatpush.msra.mxu0 %v300
        %3169 = vmatpush.msra.mxu0 %v296
        %3170 = vmatpush.msra.mxu0 %v292
        %3171 = vmatpush.msra.mxu0 %v288
        %3172 = vmatpush.msra.mxu0 %v284
        %3173 = vmatpush.msra.mxu0 %v280
        %3174 = vmatpush.msra.mxu0 %v276
        %3175 = vmatpush.msra.mxu0 %v272
        %3176 = vmatpush.msra.mxu0 %v268
        %3177 = vmatpush.msra.mxu0 %v264
        %3178 = vmatmul.f32.gmra.mxu0 %v2907
        %v3179 = vpop.f32.mrf.mxu0
        %v3180 = vadd.f32 0.0, %v3179
        %3181 = vdwg.mxu0
        %3182 = vmatpush.msra.mxu0 %v325
        %3183 = vmatpush.msra.mxu0 %v321
        %3184 = vmatpush.msra.mxu0 %v317
        %3185 = vmatpush.msra.mxu0 %v313
        %3186 = vmatpush.msra.mxu0 %v309
        %3187 = vmatpush.msra.mxu0 %v305
        %3188 = vmatpush.msra.mxu0 %v301
        %3189 = vmatpush.msra.mxu0 %v297
        %3190 = vmatpush.msra.mxu0 %v293
        %3191 = vmatpush.msra.mxu0 %v289
        %3192 = vmatpush.msra.mxu0 %v285
        %3193 = vmatpush.msra.mxu0 %v281
        %3194 = vmatpush.msra.mxu0 %v277
        %3195 = vmatpush.msra.mxu0 %v273
        %3196 = vmatpush.msra.mxu0 %v269
        %3197 = vmatpush.msra.mxu0 %v265
        %3198 = vmatmul.f32.gmra.mxu0 %v2907
        %v3199 = vpop.f32.mrf.mxu0
        %v3200 = vadd.f32 0.0, %v3199
        %3201 = vdwg.mxu0
        %3202 = vmatpush.msra.mxu0 %v326
        %3203 = vmatpush.msra.mxu0 %v322
        %3204 = vmatpush.msra.mxu0 %v318
        %3205 = vmatpush.msra.mxu0 %v314
        %3206 = vmatpush.msra.mxu0 %v310
        %3207 = vmatpush.msra.mxu0 %v306
        %3208 = vmatpush.msra.mxu0 %v302
        %3209 = vmatpush.msra.mxu0 %v298
        %3210 = vmatpush.msra.mxu0 %v294
        %3211 = vmatpush.msra.mxu0 %v290
        %3212 = vmatpush.msra.mxu0 %v286
        %3213 = vmatpush.msra.mxu0 %v282
        %3214 = vmatpush.msra.mxu0 %v278
        %3215 = vmatpush.msra.mxu0 %v274
        %3216 = vmatpush.msra.mxu0 %v270
        %3217 = vmatpush.msra.mxu0 %v266
        %3218 = vmatmul.f32.gmra.mxu0 %v2907
        %v3219 = vpop.f32.mrf.mxu0
        %v3220 = vadd.f32 0.0, %v3219
        %3221 = vdwg.mxu0
        %v3222 = vadd.f32 %v3138, %v3160
        %v3223 = vadd.f32 %v3139, %v3180
        %v3224 = vadd.f32 %v3140, %v3200
        %v3225 = vadd.f32 %v3141, %v3220
        %v3226 = vxor.u32 %v3222, 2147483648
        %v3227 = vmul.f32 %v3226, 1.442695
        %v3228 = vpow.pop %v3227
        %v3229 = vadd.f32 %v3228, 1.0
        %v3230 = vrcp.pop %v3229
        %v3231 = vmul.f32 %v3229, %v3230
        %v3232 = vsub.f32 1.0, %v3231
        %v3233 = vmul.f32 %v3230, %v3232
        %v3234 = vadd.f32 %v3230, %v3233
        %vm3235 = vweird.f32 %v3229
        %vm3236 = vweird.f32 %v3230
        %vm3237 = vmor %vm3235, %vm3236
        %v3238 = vsel %vm3237, %v3230, %v3234
        %v3239 = vand.u32 2147483647, %v3229
        %vm3240 = vcmp.eq.f32.partialorder %v3239, 8.507059e+37
        %v3241 = vand.u32 %v3229, 2147483648
        %v3242 = vor.u32 1.1754944e-38, %v3241
        %v3243 = vsel %vm3240, %v3242, %v3238
        %v3244 = vmul.f32 1.0, %v3243
        %v3245 = vxor.u32 %v3223, 2147483648
        %v3246 = vmul.f32 %v3245, 1.442695
        %v3247 = vpow.pop %v3246
        %v3248 = vadd.f32 %v3247, 1.0
        %v3249 = vrcp.pop %v3248
        %v3250 = vmul.f32 %v3248, %v3249
        %v3251 = vsub.f32 1.0, %v3250
        %v3252 = vmul.f32 %v3249, %v3251
        %v3253 = vadd.f32 %v3249, %v3252
        %vm3254 = vweird.f32 %v3248
        %vm3255 = vweird.f32 %v3249
        %vm3256 = vmor %vm3254, %vm3255
        %v3257 = vsel %vm3256, %v3249, %v3253
        %v3258 = vand.u32 2147483647, %v3248
        %vm3259 = vcmp.eq.f32.partialorder %v3258, 8.507059e+37
        %v3260 = vand.u32 %v3248, 2147483648
        %v3261 = vor.u32 1.1754944e-38, %v3260
        %v3262 = vsel %vm3259, %v3261, %v3257
        %v3263 = vmul.f32 1.0, %v3262
        %v3264 = vtanh.pop %v3224
        %v3265 = vxor.u32 %v3225, 2147483648
        %v3266 = vmul.f32 %v3265, 1.442695
        %v3267 = vpow.pop %v3266
        %v3268 = vadd.f32 %v3267, 1.0
        %v3269 = vrcp.pop %v3268
        %v3270 = vmul.f32 %v3268, %v3269
        %v3271 = vsub.f32 1.0, %v3270
        %v3272 = vmul.f32 %v3269, %v3271
        %v3273 = vadd.f32 %v3269, %v3272
        %vm3274 = vweird.f32 %v3268
        %vm3275 = vweird.f32 %v3269
        %vm3276 = vmor %vm3274, %vm3275
        %v3277 = vsel %vm3276, %v3269, %v3273
        %v3278 = vand.u32 2147483647, %v3268
        %vm3279 = vcmp.eq.f32.partialorder %v3278, 8.507059e+37
        %v3280 = vand.u32 %v3268, 2147483648
        %v3281 = vor.u32 1.1754944e-38, %v3280
        %v3282 = vsel %vm3279, %v3281, %v3277
        %v3283 = vmul.f32 1.0, %v3282
        %v3284 = vmul.f32 %v3263, %v2905
        %v3285 = vmul.f32 %v3244, %v3264
        %v3286 = vadd.f32 %v3284, %v3285
        %v3287 = vtanh.pop %v3286
        %v3288 = vmul.f32 %v3283, %v3287
        %3289 = vmatpush.msra.mxu0 %v388
        %3290 = vmatpush.msra.mxu0 %v384
        %3291 = vmatpush.msra.mxu0 %v380
        %3292 = vmatpush.msra.mxu0 %v376
        %3293 = vmatpush.msra.mxu0 %v372
        %3294 = vmatpush.msra.mxu0 %v368
        %3295 = vmatpush.msra.mxu0 %v364
        %3296 = vmatpush.msra.mxu0 %v360
        %3297 = vmatpush.msra.mxu0 %v356
        %3298 = vmatpush.msra.mxu0 %v352
        %3299 = vmatpush.msra.mxu0 %v348
        %3300 = vmatpush.msra.mxu0 %v344
        %3301 = vmatpush.msra.mxu0 %v340
        %3302 = vmatpush.msra.mxu0 %v336
        %3303 = vmatpush.msra.mxu0 %v332
        %3304 = vmatpush.msra.mxu0 %v328
        %3305 = vmatmul.f32.gmra.mxu0 %v3134
        %v3306 = vpop.f32.mrf.mxu0
        %v3307 = vadd.f32 0.0, %v3306
        %3308 = vdwg.mxu0
        %3309 = vmatpush.msra.mxu0 %v389
        %3310 = vmatpush.msra.mxu0 %v385
        %3311 = vmatpush.msra.mxu0 %v381
        %3312 = vmatpush.msra.mxu0 %v377
        %3313 = vmatpush.msra.mxu0 %v373
        %3314 = vmatpush.msra.mxu0 %v369
        %3315 = vmatpush.msra.mxu0 %v365
        %3316 = vmatpush.msra.mxu0 %v361
        %3317 = vmatpush.msra.mxu0 %v357
        %3318 = vmatpush.msra.mxu0 %v353
        %3319 = vmatpush.msra.mxu0 %v349
        %3320 = vmatpush.msra.mxu0 %v345
        %3321 = vmatpush.msra.mxu0 %v341
        %3322 = vmatpush.msra.mxu0 %v337
        %3323 = vmatpush.msra.mxu0 %v333
        %3324 = vmatpush.msra.mxu0 %v329
        %3325 = vmatmul.f32.gmra.mxu0 %v3134
        %v3326 = vpop.f32.mrf.mxu0
        %v3327 = vadd.f32 0.0, %v3326
        %3328 = vdwg.mxu0
        %3329 = vmatpush.msra.mxu0 %v390
        %3330 = vmatpush.msra.mxu0 %v386
        %3331 = vmatpush.msra.mxu0 %v382
        %3332 = vmatpush.msra.mxu0 %v378
        %3333 = vmatpush.msra.mxu0 %v374
        %3334 = vmatpush.msra.mxu0 %v370
        %3335 = vmatpush.msra.mxu0 %v366
        %3336 = vmatpush.msra.mxu0 %v362
        %3337 = vmatpush.msra.mxu0 %v358
        %3338 = vmatpush.msra.mxu0 %v354
        %3339 = vmatpush.msra.mxu0 %v350
        %3340 = vmatpush.msra.mxu0 %v346
        %3341 = vmatpush.msra.mxu0 %v342
        %3342 = vmatpush.msra.mxu0 %v338
        %3343 = vmatpush.msra.mxu0 %v334
        %3344 = vmatpush.msra.mxu0 %v330
        %3345 = vmatmul.f32.gmra.mxu0 %v3134
        %v3346 = vpop.f32.mrf.mxu0
        %v3347 = vadd.f32 0.0, %v3346
        %3348 = vdwg.mxu0
        %3349 = vmatpush.msra.mxu0 %v391
        %3350 = vmatpush.msra.mxu0 %v387
        %3351 = vmatpush.msra.mxu0 %v383
        %3352 = vmatpush.msra.mxu0 %v379
        %3353 = vmatpush.msra.mxu0 %v375
        %3354 = vmatpush.msra.mxu0 %v371
        %3355 = vmatpush.msra.mxu0 %v367
        %3356 = vmatpush.msra.mxu0 %v363
        %3357 = vmatpush.msra.mxu0 %v359
        %3358 = vmatpush.msra.mxu0 %v355
        %3359 = vmatpush.msra.mxu0 %v351
        %3360 = vmatpush.msra.mxu0 %v347
        %3361 = vmatpush.msra.mxu0 %v343
        %3362 = vmatpush.msra.mxu0 %v339
        %3363 = vmatpush.msra.mxu0 %v335
        %3364 = vmatpush.msra.mxu0 %v331
        %3365 = vmatmul.f32.gmra.mxu0 %v3134
        %v3366 = vpop.f32.mrf.mxu0
        %v3367 = vadd.f32 0.0, %v3366
        %3368 = vdwg.mxu0
        %3369 = vmatpush.msra.mxu0 %v452
        %3370 = vmatpush.msra.mxu0 %v448
        %3371 = vmatpush.msra.mxu0 %v444
        %3372 = vmatpush.msra.mxu0 %v440
        %3373 = vmatpush.msra.mxu0 %v436
        %3374 = vmatpush.msra.mxu0 %v432
        %3375 = vmatpush.msra.mxu0 %v428
        %3376 = vmatpush.msra.mxu0 %v424
        %3377 = vmatpush.msra.mxu0 %v420
        %3378 = vmatpush.msra.mxu0 %v416
        %3379 = vmatpush.msra.mxu0 %v412
        %3380 = vmatpush.msra.mxu0 %v408
        %3381 = vmatpush.msra.mxu0 %v404
        %3382 = vmatpush.msra.mxu0 %v400
        %3383 = vmatpush.msra.mxu0 %v396
        %3384 = vmatpush.msra.mxu0 %v392
        %3385 = vmatmul.f32.gmra.mxu0 %v3288
        %v3386 = vpop.f32.mrf.mxu0
        %v3387 = vadd.f32 %v3307, %v3386
        %3388 = vdwg.mxu0
        %3389 = vmatpush.msra.mxu0 %v453
        %3390 = vmatpush.msra.mxu0 %v449
        %3391 = vmatpush.msra.mxu0 %v445
        %3392 = vmatpush.msra.mxu0 %v441
        %3393 = vmatpush.msra.mxu0 %v437
        %3394 = vmatpush.msra.mxu0 %v433
        %3395 = vmatpush.msra.mxu0 %v429
        %3396 = vmatpush.msra.mxu0 %v425
        %3397 = vmatpush.msra.mxu0 %v421
        %3398 = vmatpush.msra.mxu0 %v417
        %3399 = vmatpush.msra.mxu0 %v413
        %3400 = vmatpush.msra.mxu0 %v409
        %3401 = vmatpush.msra.mxu0 %v405
        %3402 = vmatpush.msra.mxu0 %v401
        %3403 = vmatpush.msra.mxu0 %v397
        %3404 = vmatpush.msra.mxu0 %v393
        %3405 = vmatmul.f32.gmra.mxu0 %v3288
        %v3406 = vpop.f32.mrf.mxu0
        %v3407 = vadd.f32 %v3327, %v3406
        %3408 = vdwg.mxu0
        %3409 = vmatpush.msra.mxu0 %v454
        %3410 = vmatpush.msra.mxu0 %v450
        %3411 = vmatpush.msra.mxu0 %v446
        %3412 = vmatpush.msra.mxu0 %v442
        %3413 = vmatpush.msra.mxu0 %v438
        %3414 = vmatpush.msra.mxu0 %v434
        %3415 = vmatpush.msra.mxu0 %v430
        %3416 = vmatpush.msra.mxu0 %v426
        %3417 = vmatpush.msra.mxu0 %v422
        %3418 = vmatpush.msra.mxu0 %v418
        %3419 = vmatpush.msra.mxu0 %v414
        %3420 = vmatpush.msra.mxu0 %v410
        %3421 = vmatpush.msra.mxu0 %v406
        %3422 = vmatpush.msra.mxu0 %v402
        %3423 = vmatpush.msra.mxu0 %v398
        %3424 = vmatpush.msra.mxu0 %v394
        %3425 = vmatmul.f32.gmra.mxu0 %v3288
        %v3426 = vpop.f32.mrf.mxu0
        %v3427 = vadd.f32 %v3347, %v3426
        %3428 = vdwg.mxu0
        %3429 = vmatpush.msra.mxu0 %v455
        %3430 = vmatpush.msra.mxu0 %v451
        %3431 = vmatpush.msra.mxu0 %v447
        %3432 = vmatpush.msra.mxu0 %v443
        %3433 = vmatpush.msra.mxu0 %v439
        %3434 = vmatpush.msra.mxu0 %v435
        %3435 = vmatpush.msra.mxu0 %v431
        %3436 = vmatpush.msra.mxu0 %v427
        %3437 = vmatpush.msra.mxu0 %v423
        %3438 = vmatpush.msra.mxu0 %v419
        %3439 = vmatpush.msra.mxu0 %v415
        %3440 = vmatpush.msra.mxu0 %v411
        %3441 = vmatpush.msra.mxu0 %v407
        %3442 = vmatpush.msra.mxu0 %v403
        %3443 = vmatpush.msra.mxu0 %v399
        %3444 = vmatpush.msra.mxu0 %v395
        %3445 = vmatmul.f32.gmra.mxu0 %v3288
        %v3446 = vpop.f32.mrf.mxu0
        %v3447 = vadd.f32 %v3367, %v3446
        %3448 = vdwg.mxu0
        %v3449 = vadd.f32 %v3387, %v458
        %v3450 = vadd.f32 %v3407, %v459
        %v3451 = vadd.f32 %v3427, %v460
        %v3452 = vadd.f32 %v3447, %v461
        %v3453 = vxor.u32 %v3449, 2147483648
        %v3454 = vmul.f32 %v3453, 1.442695
        %v3455 = vpow.pop %v3454
        %v3456 = vadd.f32 %v3455, 1.0
        %v3457 = vrcp.pop %v3456
        %v3458 = vmul.f32 %v3456, %v3457
        %v3459 = vsub.f32 1.0, %v3458
        %v3460 = vmul.f32 %v3457, %v3459
        %v3461 = vadd.f32 %v3457, %v3460
        %vm3462 = vweird.f32 %v3456
        %vm3463 = vweird.f32 %v3457
        %vm3464 = vmor %vm3462, %vm3463
        %v3465 = vsel %vm3464, %v3457, %v3461
        %v3466 = vand.u32 2147483647, %v3456
        %vm3467 = vcmp.eq.f32.partialorder %v3466, 8.507059e+37
        %v3468 = vand.u32 %v3456, 2147483648
        %v3469 = vor.u32 1.1754944e-38, %v3468
        %v3470 = vsel %vm3467, %v3469, %v3465
        %v3471 = vmul.f32 1.0, %v3470
        %v3472 = vxor.u32 %v3450, 2147483648
        %v3473 = vmul.f32 %v3472, 1.442695
        %v3474 = vpow.pop %v3473
        %v3475 = vadd.f32 %v3474, 1.0
        %v3476 = vrcp.pop %v3475
        %v3477 = vmul.f32 %v3475, %v3476
        %v3478 = vsub.f32 1.0, %v3477
        %v3479 = vmul.f32 %v3476, %v3478
        %v3480 = vadd.f32 %v3476, %v3479
        %vm3481 = vweird.f32 %v3475
        %vm3482 = vweird.f32 %v3476
        %vm3483 = vmor %vm3481, %vm3482
        %v3484 = vsel %vm3483, %v3476, %v3480
        %v3485 = vand.u32 2147483647, %v3475
        %vm3486 = vcmp.eq.f32.partialorder %v3485, 8.507059e+37
        %v3487 = vand.u32 %v3475, 2147483648
        %v3488 = vor.u32 1.1754944e-38, %v3487
        %v3489 = vsel %vm3486, %v3488, %v3484
        %v3490 = vmul.f32 1.0, %v3489
        %v3491 = vtanh.pop %v3451
        %v3492 = vxor.u32 %v3452, 2147483648
        %v3493 = vmul.f32 %v3492, 1.442695
        %v3494 = vpow.pop %v3493
        %v3495 = vadd.f32 %v3494, 1.0
        %v3496 = vrcp.pop %v3495
        %v3497 = vmul.f32 %v3495, %v3496
        %v3498 = vsub.f32 1.0, %v3497
        %v3499 = vmul.f32 %v3496, %v3498
        %v3500 = vadd.f32 %v3496, %v3499
        %vm3501 = vweird.f32 %v3495
        %vm3502 = vweird.f32 %v3496
        %vm3503 = vmor %vm3501, %vm3502
        %v3504 = vsel %vm3503, %v3496, %v3500
        %v3505 = vand.u32 2147483647, %v3495
        %vm3506 = vcmp.eq.f32.partialorder %v3505, 8.507059e+37
        %v3507 = vand.u32 %v3495, 2147483648
        %v3508 = vor.u32 1.1754944e-38, %v3507
        %v3509 = vsel %vm3506, %v3508, %v3504
        %v3510 = vmul.f32 1.0, %v3509
        %v3511 = vmul.f32 %v3490, %v3132
        %v3512 = vmul.f32 %v3471, %v3491
        %v3513 = vadd.f32 %v3511, %v3512
        %v3514 = vtanh.pop %v3513
        %v3515 = vmul.f32 %v3510, %v3514
        %s3516 = scalar_lea.vmem %s253, 56
        %3517 = vst [vmem:[%s3516] sm:$0xff] %v3515
        %3518 = vst [vmem:[#allocation2] sm:$0xff] %v3288
        %3519 = vst [vmem:[#allocation3] sm:$0xff] %v3286
        %3520 = vst [vmem:[%s467] sm:$0xff] %v3515
        %3521 = vst [vmem:[%s470] sm:$0xff] %v3513
        %p3522 = scmp.eq.s32.totalorder %s20, 1
        // Predicated region
        $region41: #{lstm_forward.1} parent=35 // pred_check
          %p3523 = pneg %p3522
        $region42: #{lstm_forward.1} parent=35 // pred_check_branch
          %3525 = sbr.rel (%p3523) target = $region44
        $region43: #{lstm_forward.1} parent=35 // pred_region
          %3526 = vst [vmem:[#allocation4] sm:$0xff] %v3515
          %3527 = vst [vmem:[#allocation6] sm:$0xff] %v3513
        $region44: #{lstm_forward.1} parent=35 // pred_fallthru
          _
        %s3528 = smul.u32 8, %s20
        %p3529 = scmp.lt.s32.totalorder %s3528, 15
        %s3530 = scalar_select %p3529, %s3528, 15
        %s3531 = smul.addr %s3530, 8
        %s3532 = scalar_lea.vmem %s4, %s3531
        // Predicated region
        $region45: #{lstm_forward.1} parent=35 // pred_check
          %p3533 = pneg %p127
        $region46: #{lstm_forward.1} parent=35 // pred_check_branch
          %3535 = sbr.rel (%p3533) target = $region48
        $region47: #{lstm_forward.1} parent=35 // pred_region
          %s3536 = smul.u32 8, %s20
        $region48: #{lstm_forward.1} parent=35 // pred_fallthru
          _
        // Predicated region
        $region49: #{lstm_forward.1} parent=35 // pred_check
          %p3537 = pneg %p148
        $region50: #{lstm_forward.1} parent=35 // pred_check_branch
          %3539 = sbr.rel (%p3537) target = $region52
        $region51: #{lstm_forward.1} parent=35 // pred_region
          %3541 = vsyncadd [#allocation5], 0
          %s3543 = sshll.u32 [#allocation4], 4
          %s3544 = int_to_ptr.vmem [resolvable:$true] %s3543
          %s3545 = sshll.u32 %s5, 4
          %s3546 = int_to_ptr.hbm [resolvable:$true] %s3545
          %3548 = dma.vmem_to_hbm [thread:$0]  %s3544, 128, %s3546, [#allocation5]
        $region52: #{lstm_forward.1} parent=35 // pred_fallthru
          _
        // Predicated region
        $region53: #{lstm_forward.1} parent=35 // pred_check
          %p3549 = pneg %p169
        $region54: #{lstm_forward.1} parent=35 // pred_check_branch
          %3551 = sbr.rel (%p3549) target = $region56
        $region55: #{lstm_forward.1} parent=35 // pred_region
          %3553 = vsyncadd [#allocation7], 0
          %s3555 = sshll.u32 [#allocation6], 4
          %s3556 = int_to_ptr.vmem [resolvable:$true] %s3555
          %s3557 = sshll.u32 %s6, 4
          %s3558 = int_to_ptr.hbm [resolvable:$true] %s3557
          %3560 = dma.vmem_to_hbm [thread:$0]  %s3556, 128, %s3558, [#allocation7]
        $region56: #{lstm_forward.1} parent=35 // pred_fallthru
          _
        // Predicated region
        $region57: #{lstm_forward.1} parent=35 // pred_check
          %p3561 = pneg %p148
        $region58: #{lstm_forward.1} parent=35 // pred_check_branch
          %3563 = sbr.rel (%p3561) target = $region60
        $region59: #{lstm_forward.1} parent=35 // pred_region
          %3565 = dma.done [#allocation5], 128
        $region60: #{lstm_forward.1} parent=35 // pred_fallthru
          _
        // Predicated region
        $region61: #{lstm_forward.1} parent=35 // pred_check
          %p3566 = pneg %p169
        $region62: #{lstm_forward.1} parent=35 // pred_check_branch
          %3568 = sbr.rel (%p3566) target = $region64
        $region63: #{lstm_forward.1} parent=35 // pred_region
          %3570 = dma.done [#allocation7], 128
        $region64: #{lstm_forward.1} parent=35 // pred_fallthru
          _
      $region36: #{lstm_forward.1} parent=5 // pred_fallthru
        _
      %p3571 = scmp.le.s32.totalorder 2, %s15
      // Predicated region
      $region65: #{lstm_forward.1} parent=5 // pred_check
        %p3572 = pneg %p3571
      $region66: #{lstm_forward.1} parent=5 // pred_check_branch
        %3574 = sbr.rel (%p3572) target = $region68
      $region67: #{lstm_forward.1} parent=5 // pred_region
        %s3575 = ssub.s32 %s15, 2
        // Predicated region
        $region69: #{lstm_forward.1} parent=67 // pred_check
          %p3576 = pneg %p133
        $region70: #{lstm_forward.1} parent=67 // pred_check_branch
          %3578 = sbr.rel (%p3576) target = $region72
        $region71: #{lstm_forward.1} parent=67 // pred_region
          %s3579 = smul.u32 8, %s21
          %p3580 = scmp.lt.s32.totalorder %s3579, 15
          %s3581 = scalar_select %p3580, %s3579, 15
          %s3582 = smul.addr %s3581, 8
          %s3583 = scalar_lea.vmem %s4, %s3582
        $region72: #{lstm_forward.1} parent=67 // pred_fallthru
          _
      $region68: #{lstm_forward.1} parent=5 // pred_fallthru
        _
    $region6: #{lstm_forward.1} parent=1 // loop_footer
      %s19 = sadd.s32 1, %s15
    $region7: #{lstm_forward.1} parent=1 // loop_footer_branch
      %14 = sbr.rel target = $region3
    $region8: #{lstm_forward.1} parent=1 // loop_exit
      _
    %3584 = vsyncpa [#allocation5], 1
    %s3585 = scalar_lea.sflag [#allocation5], 1
    %3586 = vsyncpa %s3585, 1
    %3587 = vsyncpa [#allocation7], 1

</llo_original>
